<compile_context>
chip_gen: v5e
topology: v5e:2x2
jax: 0.10.0
libtpu: 0.0.40
codegen_flags: <defaults>
</compile_context>

<pallas_src>
import numpy as np
import jax
import jax.numpy as jnp
from jax.experimental import pallas as pl
from jax.experimental.pallas import tpu as pltpu

NUM_JOINTS = 17
SUBSETS = [[0, 5, 6, 11, 12], [7, 8, 13, 14], [9, 10, 15, 16]]
NBLK = sum(len(s) for s in SUBSETS)          # 13 active (level, joint) blocks
NBLK_PAD = 14                                # pad to 14 blocks -> 14*64 = 896 = 7*128 lanes
HD, EH, OUT = 64, 64, 128                    # module defaults: hidden, edge_hidden, out_dim
SLAB_W = 64                                  # input slab width (>= 3*17 + 1)


def build_adjacency():
    """Replicates adj_phys_i / adj_cross_i from __init__ (reference only)."""
    phys, cross = [], []
    for subset in SUBSETS:
        A = np.zeros((NUM_JOINTS, NUM_JOINTS), np.float32)
        for u in subset:
            for v in subset:
                if u != v:
                    A[u, v] = 1.0
        phys.append(A)
    for i, subset in enumerate(SUBSETS):
        C = np.zeros((NUM_JOINTS, NUM_JOINTS), np.float32)
        if i > 0:
            for u in subset:
                for v in SUBSETS[i - 1]:
                    C[u, v] = C[v, u] = 1.0
        if i < len(SUBSETS) - 1:
            for u in subset:
                for v in SUBSETS[i + 1]:
                    C[u, v] = C[v, u] = 1.0
        cross.append(C)
    return np.stack(phys), np.stack(cross)


def init_params(key, input_dim=2, hd=HD, eh=EH, out_dim=OUT):
    """PyTorch-Linear-style init (uniform +-1/sqrt(fan_in)); weights stored [in, out]."""
    ks = jax.random.split(key, 6)

    def lin(k, fan_in, shape):
        bound = 1.0 / float(np.sqrt(fan_in))
        return jax.random.uniform(k, shape, jnp.float32, -bound, bound)

    total = 3 * hd + 3 * eh
    return {
        "W_lvl": lin(ks[0], input_dim + 1, (3, input_dim + 1, hd)),   # 3 level MLPs
        "b_lvl": lin(ks[1], input_dim + 1, (3, hd)),
        "We":    lin(ks[2], 2 * hd, (2 * hd, eh)),                    # edge MLP
        "be":    lin(ks[3], 2 * hd, (eh,)),
        "Wp":    lin(ks[4], total, (total, out_dim)),                 # final projection
        "bp":    lin(ks[5], total, (out_dim,)),
    }


def _make_kernel(hd, eh, n_joints, subsets):
    nlev = len(subsets)
    nw = NBLK_PAD * hd
    assert 3 * n_joints + 1 <= SLAB_W
    # Static guarantees behind the masked-max identities used below:
    #  - every level has >= 2 in-subset joints (exclusive max over a non-empty set)
    #  - every level has >= 1 adjacent subset, which supplies the zero-V cross
    #    neighbours that the 0-clamped prefix/suffix maxima and z_adj rely on.
    for i, sub in enumerate(subsets):
        assert len(sub) >= 2, "each level needs >=2 in-subset joints"
        assert ((i > 0 and len(subsets[i - 1]) > 0) or
                (i + 1 < nlev and len(subsets[i + 1]) > 0)), \
            "each level needs >=1 adjacent subset"

    n_adj = []                               # joints in adjacent subsets per level (static)
    for i in range(nlev):
        c = (len(subsets[i - 1]) if i > 0 else 0) + \
            (len(subsets[i + 1]) if i + 1 < nlev else 0)
        n_adj.append(float(c))
    inv_j = 1.0 / float(n_joints)

    def kernel(x_ref, wsel_ref, bl_ref, we_ref, be_ref, wp_ref, bp_ref,
               out_ref, fscr_ref):
        X = x_ref[...]                                       # [B, SLAB_W] f32
        Bb = X.shape[0]
        vld = X[:, 3 * n_joints:3 * n_joints + 1]            # [B, 1]

        # ---- per-detection min/max normalisation, built lane-dense ----
        x = X[:, 0:n_joints]
        y = X[:, n_joints:2 * n_joints]
        x_min = jnp.min(x, axis=1, keepdims=True)
        x_max = jnp.max(x, axis=1, keepdims=True)
        y_min = jnp.min(y, axis=1, keepdims=True)
        y_max = jnp.max(y, axis=1, keepdims=True)
        # EUP approximate reciprocal; the 1e-6 keeps zero-range (padded) rows finite
        # (padded rows are sliced off in the wrapper anyway).
        rx = pl.reciprocal(x_max - x_min + 1e-6, approx=True)
        ry = pl.reciprocal(y_max - y_min + 1e-6, approx=True)
        lane = jax.lax.broadcasted_iota(jnp.int32, (Bb, SLAB_W), 1)
        offs = jnp.where(lane < n_joints, x_min,
                         jnp.where(lane < 2 * n_joints, y_min, 0.0))
        scal = jnp.where(lane < n_joints, rx,
                         jnp.where(lane < 2 * n_joints, ry,
                                   jnp.where(lane < 3 * n_joints, 1.0, 0.0)))
        stage = ((X - offs) * scal).astype(jnp.bfloat16)     # [B,64] = [knx|kny|s|0]

        # ---- one fused K=64 dot: hidden blocks + replicated scores ----
        hs = jnp.dot(stage, wsel_ref[...],
                     preferred_element_type=jnp.float32)     # [B, 2*nw]
        h = jnp.maximum(hs[:, :nw] + bl_ref[...], 0.0)       # [B, nw]  13 blocks + zero pad
        s_rep = hs[:, nw:]                                   # [B, nw]  score of block's joint
        m = h * s_rep                                        # lane-dense h * score

        # ---- per level: msum, pooled-H, feat blocks streamed into scratch ----
        pooled_h = []
        blk = 0
        for lvl, subset in enumerate(subsets):
            ns = len(subset)
            cols = [slice((blk + t) * hd, (blk + t + 1) * hd) for t in range(ns)]
            msum = m[:, cols[0]]
            for t in range(1, ns):
                msum = msum + m[:, cols[t]]
            for t in range(ns):
                # H_j = msum - m_j (A_phys row = subset sum minus self);  feat_j = H_j * s_j
                feat = (msum - m[:, cols[t]]) * s_rep[:, cols[t]]
                fscr_ref[(blk + t) * Bb:(blk + t + 1) * Bb, :] = feat.astype(jnp.bfloat16)
            pooled_h.append(msum * ((ns - 1) * inv_j))       # mean_j H = (ns-1)*msum/17
            blk += ns

        # ---- one fused edge dot over all 13 blocks: [13B,64] @ [64, 2*eh] ----
        # we = [We1-We2 | We2]  so  uv = [U | V]  with msg(j,k) = relu(U_j + V_k + be).
        uv = jnp.dot(fscr_ref[...], we_ref[...],
                     preferred_element_type=jnp.float32)     # [13*B, 2*eh] f32
        be = be_ref[...]                                     # [1, eh]

        pooled_z = []
        blk = 0
        for lvl, subset in enumerate(subsets):
            ns = len(subset)
            U = [uv[(blk + t) * Bb:(blk + t + 1) * Bb, 0:eh] for t in range(ns)]
            V = [uv[(blk + t) * Bb:(blk + t + 1) * Bb, eh:2 * eh] for t in range(ns)]

            # 0-clamped prefix/suffix running maxima: vex[t] = max(0, V_{t'} for t' != t).
            # The 0 is the exact V of the cross-level neighbours (their feat == 0).
            pre = [None] * ns
            run = None
            for t in range(1, ns):
                run = jnp.maximum(V[t - 1], 0.0) if run is None else jnp.maximum(run, V[t - 1])
                pre[t] = run
            suf = [None] * ns
            run = None
            for t in range(ns - 2, -1, -1):
                run = jnp.maximum(V[t + 1], 0.0) if run is None else jnp.maximum(run, V[t + 1])
                suf[t] = run

            z_sum = None
            for t in range(ns):
                if pre[t] is None:
                    vex = suf[t]
                elif suf[t] is None:
                    vex = pre[t]
                else:
                    vex = jnp.maximum(pre[t], suf[t])
                z = jnp.maximum(U[t] + vex + be, 0.0)        # max_k relu(U_j + V_k + be)
                z_sum = z if z_sum is None else z_sum + z

            v_all = V[0]                                     # unclamped max for cross joints
            for t in range(1, ns):
                v_all = jnp.maximum(v_all, V[t])
            z_adj = jnp.maximum(v_all + be, 0.0)             # shared by adjacent-subset joints

            pooled_z.append((z_sum + n_adj[lvl] * z_adj) * inv_j)   # mean_j Z
            blk += ns

        parts = []
        for lvl in range(nlev):
            parts.append(pooled_h[lvl])
            parts.append(pooled_z[lvl])
        pooled = jnp.concatenate(parts, axis=1)              # [B, 3*(hd+eh)]
        out = jnp.dot(pooled.astype(jnp.bfloat16), wp_ref[...],
                      preferred_element_type=jnp.float32) + bp_ref[...]
        out_ref[...] = out * vld                             # `None` detections -> zero rows

    return kernel


def _round_up(a, m):
    return ((a + m - 1) // m) * m


def _pack_weights(params, hd, eh, out_dim):
    W_lvl = np.asarray(params["W_lvl"], np.float32)       # [3, 3, hd]
    b_lvl = np.asarray(params["b_lvl"], np.float32)       # [3, hd]
    We = np.asarray(params["We"], np.float32)             # [2*hd, eh]
    be = np.asarray(params["be"], np.float32)             # [eh]
    Wp = np.asarray(params["Wp"], np.float32)             # [3*(hd+eh), out]
    bp = np.asarray(params["bp"], np.float32)             # [out]

    nw = NBLK_PAD * hd
    # One combined slab: columns [0:nw) = block-expanded level-MLP weights,
    # columns [nw:2nw) = 0/1 score selector (same staging operand feeds both).
    wsel = np.zeros((SLAB_W, 2 * nw), np.float32)
    bl = np.zeros((1, nw), np.float32)
    blk = 0
    for i, subset in enumerate(SUBSETS):
        for j in subset:
            c0 = blk * hd
            wsel[j,                  c0:c0 + hd] = W_lvl[i, 0]        # x weight row
            wsel[NUM_JOINTS + j,     c0:c0 + hd] = W_lvl[i, 1]        # y weight row
            wsel[2 * NUM_JOINTS + j, c0:c0 + hd] = W_lvl[i, 2]        # score weight row
            wsel[2 * NUM_JOINTS + j, nw + c0:nw + c0 + hd] = 1.0      # score selector
            bl[0, c0:c0 + hd] = b_lvl[i]
            blk += 1
    we = np.concatenate([We[:hd] - We[hd:], We[hd:]], axis=1)         # [hd, 2*eh]

    return (jnp.asarray(wsel, jnp.bfloat16),
            jnp.asarray(bl, jnp.float32),
            jnp.asarray(we, jnp.bfloat16),
            jnp.asarray(be.reshape(1, eh), jnp.float32),
            jnp.asarray(Wp, jnp.bfloat16),
            jnp.asarray(bp.reshape(1, out_dim), jnp.float32))


def hierarchical_skeletal_encoder(kpts, scores, valid, params,
                                  block_b=128, hd=HD, eh=EH, out_dim=OUT):
    N, J = kpts.shape[0], NUM_JOINTS
    nw = NBLK_PAD * hd

    # >= 2 grid steps when possible so both v7x TensorCores get work; multiples of 16
    # keep the bf16 feat-scratch row blocks tile-aligned. Raise block_b (256-512) on
    # single-TC v5e/v6e for large N to amortise the ~0.35us per-step overhead.
    cap = _round_up(max(16, -(-N // 2)), 16)
    B = max(16, min(_round_up(block_b, 16), cap))
    Npad = _round_up(N, B)
    grid_n = Npad // B

    # lane-dense input slab [Npad, 64] = [x(17) | y(17) | scores(17) | valid | 0-pad]
    X = jnp.zeros((Npad, SLAB_W), jnp.float32)
    X = X.at[:N, 0:J].set(kpts[..., 0])
    X = X.at[:N, J:2 * J].set(kpts[..., 1])
    X = X.at[:N, 2 * J:3 * J].set(scores)
    X = X.at[:N, 3 * J].set(valid)

    wsel, bl, we, be, wp, bp = _pack_weights(params, hd, eh, out_dim)
    kernel = _make_kernel(hd, eh, J, SUBSETS)

    out = pl.pallas_call(
        kernel,
        out_shape=jax.ShapeDtypeStruct((Npad, out_dim), jnp.float32),
        grid=(grid_n,),
        in_specs=[
            pl.BlockSpec((B, SLAB_W), lambda n: (n, 0)),               # input slab
            pl.BlockSpec((SLAB_W, 2 * nw), lambda n: (0, 0)),          # level-MLP + selector slab
            pl.BlockSpec((1, nw), lambda n: (0, 0)),                   # level-MLP biases
            pl.BlockSpec((hd, 2 * eh), lambda n: (0, 0)),              # edge weights [We1-We2|We2]
            pl.BlockSpec((1, eh), lambda n: (0, 0)),                   # edge bias
            pl.BlockSpec((3 * (hd + eh), out_dim), lambda n: (0, 0)),  # projection weights
            pl.BlockSpec((1, out_dim), lambda n: (0, 0)),              # projection bias
        ],
        out_specs=pl.BlockSpec((B, out_dim), lambda n: (n, 0)),
        scratch_shapes=[pltpu.VMEM((NBLK * B, hd), jnp.bfloat16)],     # fused-edge-dot operand
        compiler_params=pltpu.CompilerParams(dimension_semantics=("parallel",)),
    )(X, wsel, bl, we, be, wp, bp)
    return out[:N]


def reference_forward(kpts, scores, valid, params, A_phys, A_cross, hd, eh, out_dim):
    """Pure NumPy re-implementation mirroring the PyTorch forward loop-for-loop."""
    W_lvl, b_lvl = params["W_lvl"], params["b_lvl"]
    We, be = params["We"], params["be"]
    Wp, bp = params["Wp"], params["bp"]
    A_exp = A_phys + A_cross
    N = kpts.shape[0]
    outs = np.zeros((N, out_dim), np.float32)
    for n in range(N):
        if valid[n] == 0:
            continue  # matches `None` -> zeros
        k = kpts[n]
        s = scores[n][:, None]
        mn, mx = k.min(0, keepdims=True), k.max(0, keepdims=True)
        kn = (k - mn) / (mx - mn + 1e-6)
        P = np.concatenate([kn, s], axis=-1)
        H_levels = []
        for i in range(3):
            h = np.maximum(P @ W_lvl[i] + b_lvl[i], 0.0)
            H_levels.append(A_phys[i] @ (h * s))
        pooled = []
        for i, H in enumerate(H_levels):
            Z = np.zeros((NUM_JOINTS, eh), np.float32)
            for j in range(NUM_JOINTS):
                nbrs = np.nonzero(A_exp[i][j] > 0)[0]
                msgs = []
                for kk in nbrs:
                    fj = H[j] * s[j]
                    fk = H[kk] * s[kk]
                    ef = np.concatenate([fj, fk - fj], axis=-1)
                    msgs.append(np.maximum(ef @ We + be, 0.0))
                if msgs:
                    Z[j] = np.stack(msgs, 0).max(0)
            Fi = np.concatenate([H, Z], axis=-1)
            pooled.append(Fi.mean(0))
        ff = np.concatenate(pooled, axis=-1)
        outs[n] = ff @ Wp + bp
    return outs


if __name__ == "__main__":
    N, J = 128, NUM_JOINTS
    key = jax.random.PRNGKey(0)
    kp_key, sc_key, v_key, par_key = jax.random.split(key, 4)
    kpts = jax.random.uniform(kp_key, (N, J, 2), jnp.float32, 0.0, 200.0)
    scores = jax.random.uniform(sc_key, (N, J), jnp.float32, 0.0, 1.0)
    valid = (jax.random.uniform(v_key, (N,)) > 0.15).astype(jnp.float32)  # some `None` detections

    params = init_params(par_key, hd=HD, eh=EH, out_dim=OUT)

    # N=128 -> B=64 -> grid of 2 "parallel" steps (keeps both v7x TensorCores busy).
    out = hierarchical_skeletal_encoder(kpts, scores, valid, params, block_b=128)
    out = jax.block_until_ready(out)

    A_phys, A_cross = build_adjacency()
    ref = reference_forward(np.asarray(kpts), np.asarray(scores), np.asarray(valid),
                            {k: np.asarray(v) for k, v in params.items()},
                            A_phys, A_cross, HD, EH, OUT)
    # bf16 MXU operands (incl. the selector-replicated scores) + approx reciprocal
    # with f32 accumulation / f32 VPU math -> a few e-3 absolute error expected.
    np.testing.assert_allclose(np.asarray(out), ref, rtol=4e-2, atol=4e-2)
    print("KERNEL_OK")
</pallas_src>

<mosaic_0001>
module attributes {stable_mosaic.version = 11 : i64} {
  func.func @kernel(%arg0: i32, %arg1: memref<64x64xf32, #tpu.memory_space<vmem>>, %arg2: memref<64x1792xbf16, #tpu.memory_space<vmem>>, %arg3: memref<1x896xf32, #tpu.memory_space<vmem>>, %arg4: memref<64x128xbf16, #tpu.memory_space<vmem>>, %arg5: memref<1x64xf32, #tpu.memory_space<vmem>>, %arg6: memref<384x128xbf16, #tpu.memory_space<vmem>>, %arg7: memref<1x128xf32, #tpu.memory_space<vmem>>, %arg8: memref<64x128xf32, #tpu.memory_space<vmem>>, %arg9: memref<832x64xbf16, #tpu.memory_space<vmem>>) attributes {dimension_semantics = [#tpu.dimension_semantics<parallel>], iteration_bounds = array<i64: 2>, scalar_prefetch = 0 : i64, scratch_operands = 1 : i64, tpu.core_type = #tpu.core_type<tc>, window_params = [{transform_indices = @transform_0, window_bounds = array<i64: 64, 64>}, {pipeline_mode = #tpu.pipeline_mode<synchronous>, transform_indices = @transform_1, window_bounds = array<i64: 64, 1792>}, {pipeline_mode = #tpu.pipeline_mode<synchronous>, transform_indices = @transform_2, window_bounds = array<i64: 1, 896>}, {pipeline_mode = #tpu.pipeline_mode<synchronous>, transform_indices = @transform_3, window_bounds = array<i64: 64, 128>}, {pipeline_mode = #tpu.pipeline_mode<synchronous>, transform_indices = @transform_4, window_bounds = array<i64: 1, 64>}, {pipeline_mode = #tpu.pipeline_mode<synchronous>, transform_indices = @transform_5, window_bounds = array<i64: 384, 128>}, {pipeline_mode = #tpu.pipeline_mode<synchronous>, transform_indices = @transform_6, window_bounds = array<i64: 1, 128>}, {transform_indices = @transform_7, window_bounds = array<i64: 64, 128>}]} {
    %c0 = arith.constant 0 : index
    %c0_0 = arith.constant 0 : index
    %0 = vector.load %arg1[%c0, %c0_0] : memref<64x64xf32, #tpu.memory_space<vmem>>, vector<64x64xf32>
    %1 = vector.extract_strided_slice %0 {offsets = [0, 51], sizes = [64, 1], strides = [1, 1]} : vector<64x64xf32> to vector<64x1xf32>
    %2 = vector.extract_strided_slice %0 {offsets = [0, 0], sizes = [64, 17], strides = [1, 1]} : vector<64x64xf32> to vector<64x17xf32>
    %3 = vector.extract_strided_slice %0 {offsets = [0, 17], sizes = [64, 17], strides = [1, 1]} : vector<64x64xf32> to vector<64x17xf32>
    %cst = arith.constant dense<0x7F800000> : vector<64xf32>
    %4 = vector.multi_reduction <minimumf>, %2, %cst [1] : vector<64x17xf32> to vector<64xf32>
    %5 = vector.shape_cast %4 : vector<64xf32> to vector<64x1xf32>
    %cst_1 = arith.constant dense<0xFF800000> : vector<64xf32>
    %6 = vector.multi_reduction <maximumf>, %2, %cst_1 [1] : vector<64x17xf32> to vector<64xf32>
    %7 = vector.shape_cast %6 : vector<64xf32> to vector<64x1xf32>
    %cst_2 = arith.constant dense<0x7F800000> : vector<64xf32>
    %8 = vector.multi_reduction <minimumf>, %3, %cst_2 [1] : vector<64x17xf32> to vector<64xf32>
    %9 = vector.shape_cast %8 : vector<64xf32> to vector<64x1xf32>
    %cst_3 = arith.constant dense<0xFF800000> : vector<64xf32>
    %10 = vector.multi_reduction <maximumf>, %3, %cst_3 [1] : vector<64x17xf32> to vector<64xf32>
    %11 = vector.shape_cast %10 : vector<64xf32> to vector<64x1xf32>
    %12 = arith.subf %7, %5 : vector<64x1xf32>
    %cst_4 = arith.constant 9.99999997E-7 : f32
    %13 = vector.broadcast %cst_4 : f32 to vector<64x1xf32>
    %14 = arith.addf %12, %13 : vector<64x1xf32>
    %15 = tpu.reciprocal %14 {approx = true} : vector<64x1xf32> -> vector<64x1xf32>
    %16 = arith.subf %11, %9 : vector<64x1xf32>
    %cst_5 = arith.constant 9.99999997E-7 : f32
    %17 = vector.broadcast %cst_5 : f32 to vector<64x1xf32>
    %18 = arith.addf %16, %17 : vector<64x1xf32>
    %19 = tpu.reciprocal %18 {approx = true} : vector<64x1xf32> -> vector<64x1xf32>
    %20 = tpu.iota {dimensions = array<i32: 1>} : vector<64x64xi32>
    %c17_i32 = arith.constant 17 : i32
    %21 = vector.broadcast %c17_i32 : i32 to vector<64x64xi32>
    %22 = arith.cmpi slt, %20, %21 : vector<64x64xi32>
    %c34_i32 = arith.constant 34 : i32
    %23 = vector.broadcast %c34_i32 : i32 to vector<64x64xi32>
    %24 = arith.cmpi slt, %20, %23 : vector<64x64xi32>
    %cst_6 = arith.constant 0.000000e+00 : f32
    %25 = vector.shape_cast %9 : vector<64x1xf32> to vector<64x1xf32>
    %26 = vector.broadcast %25 : vector<64x1xf32> to vector<64x64xf32>
    %27 = vector.broadcast %cst_6 : f32 to vector<64x64xf32>
    %28 = arith.select %24, %26, %27 : vector<64x64xi1>, vector<64x64xf32>
    %29 = vector.shape_cast %5 : vector<64x1xf32> to vector<64x1xf32>
    %30 = vector.broadcast %29 : vector<64x1xf32> to vector<64x64xf32>
    %31 = arith.select %22, %30, %28 : vector<64x64xi1>, vector<64x64xf32>
    %c17_i32_7 = arith.constant 17 : i32
    %32 = vector.broadcast %c17_i32_7 : i32 to vector<64x64xi32>
    %33 = arith.cmpi slt, %20, %32 : vector<64x64xi32>
    %c34_i32_8 = arith.constant 34 : i32
    %34 = vector.broadcast %c34_i32_8 : i32 to vector<64x64xi32>
    %35 = arith.cmpi slt, %20, %34 : vector<64x64xi32>
    %c51_i32 = arith.constant 51 : i32
    %36 = vector.broadcast %c51_i32 : i32 to vector<64x64xi32>
    %37 = arith.cmpi slt, %20, %36 : vector<64x64xi32>
    %cst_9 = arith.constant 1.000000e+00 : f32
    %cst_10 = arith.constant 0.000000e+00 : f32
    %38 = vector.broadcast %cst_9 : f32 to vector<64x64xf32>
    %39 = vector.broadcast %cst_10 : f32 to vector<64x64xf32>
    %40 = arith.select %37, %38, %39 : vector<64x64xi1>, vector<64x64xf32>
    %41 = vector.shape_cast %19 : vector<64x1xf32> to vector<64x1xf32>
    %42 = vector.broadcast %41 : vector<64x1xf32> to vector<64x64xf32>
    %43 = arith.select %35, %42, %40 : vector<64x64xi1>, vector<64x64xf32>
    %44 = vector.shape_cast %15 : vector<64x1xf32> to vector<64x1xf32>
    %45 = vector.broadcast %44 : vector<64x1xf32> to vector<64x64xf32>
    %46 = arith.select %33, %45, %43 : vector<64x64xi1>, vector<64x64xf32>
    %47 = arith.subf %0, %31 : vector<64x64xf32>
    %48 = arith.mulf %47, %46 : vector<64x64xf32>
    %49 = arith.truncf %48 : vector<64x64xf32> to vector<64x64xbf16>
    %c0_11 = arith.constant 0 : index
    %c0_12 = arith.constant 0 : index
    %50 = vector.load %arg2[%c0_11, %c0_12] : memref<64x1792xbf16, #tpu.memory_space<vmem>>, vector<64x1792xbf16>
    %cst_13 = arith.constant dense<0.000000e+00> : vector<64x1792xf32>
    %51 = tpu.matmul %49, %50, %cst_13 {dimension_numbers = #tpu.dot_dimension_numbers<[1], [0], [0], [1], [0, 0, 1, 1], [], []>} : vector<64x64xbf16>, vector<64x1792xbf16>, vector<64x1792xf32> -> vector<64x1792xf32>
    %52 = vector.extract_strided_slice %51 {offsets = [0, 0], sizes = [64, 896], strides = [1, 1]} : vector<64x1792xf32> to vector<64x896xf32>
    %c0_14 = arith.constant 0 : index
    %c0_15 = arith.constant 0 : index
    %53 = vector.load %arg3[%c0_14, %c0_15] : memref<1x896xf32, #tpu.memory_space<vmem>>, vector<1x896xf32>
    %54 = vector.broadcast %53 : vector<1x896xf32> to vector<64x896xf32>
    %55 = arith.addf %52, %54 : vector<64x896xf32>
    %cst_16 = arith.constant 0.000000e+00 : f32
    %56 = vector.broadcast %cst_16 : f32 to vector<64x896xf32>
    %57 = arith.maximumf %55, %56 : vector<64x896xf32>
    %58 = vector.extract_strided_slice %51 {offsets = [0, 896], sizes = [64, 896], strides = [1, 1]} : vector<64x1792xf32> to vector<64x896xf32>
    %59 = arith.mulf %57, %58 : vector<64x896xf32>
    %60 = vector.extract_strided_slice %59 {offsets = [0, 0], sizes = [64, 64], strides = [1, 1]} : vector<64x896xf32> to vector<64x64xf32>
    %61 = vector.extract_strided_slice %59 {offsets = [0, 64], sizes = [64, 64], strides = [1, 1]} : vector<64x896xf32> to vector<64x64xf32>
    %62 = arith.addf %60, %61 : vector<64x64xf32>
    %63 = vector.extract_strided_slice %59 {offsets = [0, 128], sizes = [64, 64], strides = [1, 1]} : vector<64x896xf32> to vector<64x64xf32>
    %64 = arith.addf %62, %63 : vector<64x64xf32>
    %65 = vector.extract_strided_slice %59 {offsets = [0, 192], sizes = [64, 64], strides = [1, 1]} : vector<64x896xf32> to vector<64x64xf32>
    %66 = arith.addf %64, %65 : vector<64x64xf32>
    %67 = vector.extract_strided_slice %59 {offsets = [0, 256], sizes = [64, 64], strides = [1, 1]} : vector<64x896xf32> to vector<64x64xf32>
    %68 = arith.addf %66, %67 : vector<64x64xf32>
    %69 = vector.extract_strided_slice %59 {offsets = [0, 0], sizes = [64, 64], strides = [1, 1]} : vector<64x896xf32> to vector<64x64xf32>
    %70 = arith.subf %68, %69 : vector<64x64xf32>
    %71 = vector.extract_strided_slice %58 {offsets = [0, 0], sizes = [64, 64], strides = [1, 1]} : vector<64x896xf32> to vector<64x64xf32>
    %72 = arith.mulf %70, %71 : vector<64x64xf32>
    %73 = arith.truncf %72 : vector<64x64xf32> to vector<64x64xbf16>
    %c0_17 = arith.constant 0 : index
    %c0_18 = arith.constant 0 : index
    %74 = vector.load %arg9[%c0_17, %c0_18] : memref<832x64xbf16, #tpu.memory_space<vmem>>, vector<64x64xbf16>
    tpu.vector_store %arg9[%c0_17, %c0_18], %73 {strides = array<i32>} : memref<832x64xbf16, #tpu.memory_space<vmem>>, vector<64x64xbf16>,
    %75 = vector.extract_strided_slice %59 {offsets = [0, 64], sizes = [64, 64], strides = [1, 1]} : vector<64x896xf32> to vector<64x64xf32>
    %76 = arith.subf %68, %75 : vector<64x64xf32>
    %77 = vector.extract_strided_slice %58 {offsets = [0, 64], sizes = [64, 64], strides = [1, 1]} : vector<64x896xf32> to vector<64x64xf32>
    %78 = arith.mulf %76, %77 : vector<64x64xf32>
    %79 = arith.truncf %78 : vector<64x64xf32> to vector<64x64xbf16>
    %c64 = arith.constant 64 : index
    %c0_19 = arith.constant 0 : index
    %80 = vector.load %arg9[%c64, %c0_19] : memref<832x64xbf16, #tpu.memory_space<vmem>>, vector<64x64xbf16>
    tpu.vector_store %arg9[%c64, %c0_19], %79 {strides = array<i32>} : memref<832x64xbf16, #tpu.memory_space<vmem>>, vector<64x64xbf16>,
    %81 = vector.extract_strided_slice %59 {offsets = [0, 128], sizes = [64, 64], strides = [1, 1]} : vector<64x896xf32> to vector<64x64xf32>
    %82 = arith.subf %68, %81 : vector<64x64xf32>
    %83 = vector.extract_strided_slice %58 {offsets = [0, 128], sizes = [64, 64], strides = [1, 1]} : vector<64x896xf32> to vector<64x64xf32>
    %84 = arith.mulf %82, %83 : vector<64x64xf32>
    %85 = arith.truncf %84 : vector<64x64xf32> to vector<64x64xbf16>
    %c128 = arith.constant 128 : index
    %c0_20 = arith.constant 0 : index
    %86 = vector.load %arg9[%c128, %c0_20] : memref<832x64xbf16, #tpu.memory_space<vmem>>, vector<64x64xbf16>
    tpu.vector_store %arg9[%c128, %c0_20], %85 {strides = array<i32>} : memref<832x64xbf16, #tpu.memory_space<vmem>>, vector<64x64xbf16>,
    %87 = vector.extract_strided_slice %59 {offsets = [0, 192], sizes = [64, 64], strides = [1, 1]} : vector<64x896xf32> to vector<64x64xf32>
    %88 = arith.subf %68, %87 : vector<64x64xf32>
    %89 = vector.extract_strided_slice %58 {offsets = [0, 192], sizes = [64, 64], strides = [1, 1]} : vector<64x896xf32> to vector<64x64xf32>
    %90 = arith.mulf %88, %89 : vector<64x64xf32>
    %91 = arith.truncf %90 : vector<64x64xf32> to vector<64x64xbf16>
    %c192 = arith.constant 192 : index
    %c0_21 = arith.constant 0 : index
    %92 = vector.load %arg9[%c192, %c0_21] : memref<832x64xbf16, #tpu.memory_space<vmem>>, vector<64x64xbf16>
    tpu.vector_store %arg9[%c192, %c0_21], %91 {strides = array<i32>} : memref<832x64xbf16, #tpu.memory_space<vmem>>, vector<64x64xbf16>,
    %93 = vector.extract_strided_slice %59 {offsets = [0, 256], sizes = [64, 64], strides = [1, 1]} : vector<64x896xf32> to vector<64x64xf32>
    %94 = arith.subf %68, %93 : vector<64x64xf32>
    %95 = vector.extract_strided_slice %58 {offsets = [0, 256], sizes = [64, 64], strides = [1, 1]} : vector<64x896xf32> to vector<64x64xf32>
    %96 = arith.mulf %94, %95 : vector<64x64xf32>
    %97 = arith.truncf %96 : vector<64x64xf32> to vector<64x64xbf16>
    %c256 = arith.constant 256 : index
    %c0_22 = arith.constant 0 : index
    %98 = vector.load %arg9[%c256, %c0_22] : memref<832x64xbf16, #tpu.memory_space<vmem>>, vector<64x64xbf16>
    tpu.vector_store %arg9[%c256, %c0_22], %97 {strides = array<i32>} : memref<832x64xbf16, #tpu.memory_space<vmem>>, vector<64x64xbf16>,
    %cst_23 = arith.constant 0.235294119 : f32
    %99 = vector.broadcast %cst_23 : f32 to vector<64x64xf32>
    %100 = arith.mulf %68, %99 : vector<64x64xf32>
    %101 = vector.extract_strided_slice %59 {offsets = [0, 320], sizes = [64, 64], strides = [1, 1]} : vector<64x896xf32> to vector<64x64xf32>
    %102 = vector.extract_strided_slice %59 {offsets = [0, 384], sizes = [64, 64], strides = [1, 1]} : vector<64x896xf32> to vector<64x64xf32>
    %103 = arith.addf %101, %102 : vector<64x64xf32>
    %104 = vector.extract_strided_slice %59 {offsets = [0, 448], sizes = [64, 64], strides = [1, 1]} : vector<64x896xf32> to vector<64x64xf32>
    %105 = arith.addf %103, %104 : vector<64x64xf32>
    %106 = vector.extract_strided_slice %59 {offsets = [0, 512], sizes = [64, 64], strides = [1, 1]} : vector<64x896xf32> to vector<64x64xf32>
    %107 = arith.addf %105, %106 : vector<64x64xf32>
    %108 = vector.extract_strided_slice %59 {offsets = [0, 320], sizes = [64, 64], strides = [1, 1]} : vector<64x896xf32> to vector<64x64xf32>
    %109 = arith.subf %107, %108 : vector<64x64xf32>
    %110 = vector.extract_strided_slice %58 {offsets = [0, 320], sizes = [64, 64], strides = [1, 1]} : vector<64x896xf32> to vector<64x64xf32>
    %111 = arith.mulf %109, %110 : vector<64x64xf32>
    %112 = arith.truncf %111 : vector<64x64xf32> to vector<64x64xbf16>
    %c320 = arith.constant 320 : index
    %c0_24 = arith.constant 0 : index
    %113 = vector.load %arg9[%c320, %c0_24] : memref<832x64xbf16, #tpu.memory_space<vmem>>, vector<64x64xbf16>
    tpu.vector_store %arg9[%c320, %c0_24], %112 {strides = array<i32>} : memref<832x64xbf16, #tpu.memory_space<vmem>>, vector<64x64xbf16>,
    %114 = vector.extract_strided_slice %59 {offsets = [0, 384], sizes = [64, 64], strides = [1, 1]} : vector<64x896xf32> to vector<64x64xf32>
    %115 = arith.subf %107, %114 : vector<64x64xf32>
    %116 = vector.extract_strided_slice %58 {offsets = [0, 384], sizes = [64, 64], strides = [1, 1]} : vector<64x896xf32> to vector<64x64xf32>
    %117 = arith.mulf %115, %116 : vector<64x64xf32>
    %118 = arith.truncf %117 : vector<64x64xf32> to vector<64x64xbf16>
    %c384 = arith.constant 384 : index
    %c0_25 = arith.constant 0 : index
    %119 = vector.load %arg9[%c384, %c0_25] : memref<832x64xbf16, #tpu.memory_space<vmem>>, vector<64x64xbf16>
    tpu.vector_store %arg9[%c384, %c0_25], %118 {strides = array<i32>} : memref<832x64xbf16, #tpu.memory_space<vmem>>, vector<64x64xbf16>,
    %120 = vector.extract_strided_slice %59 {offsets = [0, 448], sizes = [64, 64], strides = [1, 1]} : vector<64x896xf32> to vector<64x64xf32>
    %121 = arith.subf %107, %120 : vector<64x64xf32>
    %122 = vector.extract_strided_slice %58 {offsets = [0, 448], sizes = [64, 64], strides = [1, 1]} : vector<64x896xf32> to vector<64x64xf32>
    %123 = arith.mulf %121, %122 : vector<64x64xf32>
    %124 = arith.truncf %123 : vector<64x64xf32> to vector<64x64xbf16>
    %c448 = arith.constant 448 : index
    %c0_26 = arith.constant 0 : index
    %125 = vector.load %arg9[%c448, %c0_26] : memref<832x64xbf16, #tpu.memory_space<vmem>>, vector<64x64xbf16>
    tpu.vector_store %arg9[%c448, %c0_26], %124 {strides = array<i32>} : memref<832x64xbf16, #tpu.memory_space<vmem>>, vector<64x64xbf16>,
    %126 = vector.extract_strided_slice %59 {offsets = [0, 512], sizes = [64, 64], strides = [1, 1]} : vector<64x896xf32> to vector<64x64xf32>
    %127 = arith.subf %107, %126 : vector<64x64xf32>
    %128 = vector.extract_strided_slice %58 {offsets = [0, 512], sizes = [64, 64], strides = [1, 1]} : vector<64x896xf32> to vector<64x64xf32>
    %129 = arith.mulf %127, %128 : vector<64x64xf32>
    %130 = arith.truncf %129 : vector<64x64xf32> to vector<64x64xbf16>
    %c512 = arith.constant 512 : index
    %c0_27 = arith.constant 0 : index
    %131 = vector.load %arg9[%c512, %c0_27] : memref<832x64xbf16, #tpu.memory_space<vmem>>, vector<64x64xbf16>
    tpu.vector_store %arg9[%c512, %c0_27], %130 {strides = array<i32>} : memref<832x64xbf16, #tpu.memory_space<vmem>>, vector<64x64xbf16>,
    %cst_28 = arith.constant 0.176470593 : f32
    %132 = vector.broadcast %cst_28 : f32 to vector<64x64xf32>
    %133 = arith.mulf %107, %132 : vector<64x64xf32>
    %134 = vector.extract_strided_slice %59 {offsets = [0, 576], sizes = [64, 64], strides = [1, 1]} : vector<64x896xf32> to vector<64x64xf32>
    %135 = vector.extract_strided_slice %59 {offsets = [0, 640], sizes = [64, 64], strides = [1, 1]} : vector<64x896xf32> to vector<64x64xf32>
    %136 = arith.addf %134, %135 : vector<64x64xf32>
    %137 = vector.extract_strided_slice %59 {offsets = [0, 704], sizes = [64, 64], strides = [1, 1]} : vector<64x896xf32> to vector<64x64xf32>
    %138 = arith.addf %136, %137 : vector<64x64xf32>
    %139 = vector.extract_strided_slice %59 {offsets = [0, 768], sizes = [64, 64], strides = [1, 1]} : vector<64x896xf32> to vector<64x64xf32>
    %140 = arith.addf %138, %139 : vector<64x64xf32>
    %141 = vector.extract_strided_slice %59 {offsets = [0, 576], sizes = [64, 64], strides = [1, 1]} : vector<64x896xf32> to vector<64x64xf32>
    %142 = arith.subf %140, %141 : vector<64x64xf32>
    %143 = vector.extract_strided_slice %58 {offsets = [0, 576], sizes = [64, 64], strides = [1, 1]} : vector<64x896xf32> to vector<64x64xf32>
    %144 = arith.mulf %142, %143 : vector<64x64xf32>
    %145 = arith.truncf %144 : vector<64x64xf32> to vector<64x64xbf16>
    %c576 = arith.constant 576 : index
    %c0_29 = arith.constant 0 : index
    %146 = vector.load %arg9[%c576, %c0_29] : memref<832x64xbf16, #tpu.memory_space<vmem>>, vector<64x64xbf16>
    tpu.vector_store %arg9[%c576, %c0_29], %145 {strides = array<i32>} : memref<832x64xbf16, #tpu.memory_space<vmem>>, vector<64x64xbf16>,
    %147 = vector.extract_strided_slice %59 {offsets = [0, 640], sizes = [64, 64], strides = [1, 1]} : vector<64x896xf32> to vector<64x64xf32>
    %148 = arith.subf %140, %147 : vector<64x64xf32>
    %149 = vector.extract_strided_slice %58 {offsets = [0, 640], sizes = [64, 64], strides = [1, 1]} : vector<64x896xf32> to vector<64x64xf32>
    %150 = arith.mulf %148, %149 : vector<64x64xf32>
    %151 = arith.truncf %150 : vector<64x64xf32> to vector<64x64xbf16>
    %c640 = arith.constant 640 : index
    %c0_30 = arith.constant 0 : index
    %152 = vector.load %arg9[%c640, %c0_30] : memref<832x64xbf16, #tpu.memory_space<vmem>>, vector<64x64xbf16>
    tpu.vector_store %arg9[%c640, %c0_30], %151 {strides = array<i32>} : memref<832x64xbf16, #tpu.memory_space<vmem>>, vector<64x64xbf16>,
    %153 = vector.extract_strided_slice %59 {offsets = [0, 704], sizes = [64, 64], strides = [1, 1]} : vector<64x896xf32> to vector<64x64xf32>
    %154 = arith.subf %140, %153 : vector<64x64xf32>
    %155 = vector.extract_strided_slice %58 {offsets = [0, 704], sizes = [64, 64], strides = [1, 1]} : vector<64x896xf32> to vector<64x64xf32>
    %156 = arith.mulf %154, %155 : vector<64x64xf32>
    %157 = arith.truncf %156 : vector<64x64xf32> to vector<64x64xbf16>
    %c704 = arith.constant 704 : index
    %c0_31 = arith.constant 0 : index
    %158 = vector.load %arg9[%c704, %c0_31] : memref<832x64xbf16, #tpu.memory_space<vmem>>, vector<64x64xbf16>
    tpu.vector_store %arg9[%c704, %c0_31], %157 {strides = array<i32>} : memref<832x64xbf16, #tpu.memory_space<vmem>>, vector<64x64xbf16>,
    %159 = vector.extract_strided_slice %59 {offsets = [0, 768], sizes = [64, 64], strides = [1, 1]} : vector<64x896xf32> to vector<64x64xf32>
    %160 = arith.subf %140, %159 : vector<64x64xf32>
    %161 = vector.extract_strided_slice %58 {offsets = [0, 768], sizes = [64, 64], strides = [1, 1]} : vector<64x896xf32> to vector<64x64xf32>
    %162 = arith.mulf %160, %161 : vector<64x64xf32>
    %163 = arith.truncf %162 : vector<64x64xf32> to vector<64x64xbf16>
    %c768 = arith.constant 768 : index
    %c0_32 = arith.constant 0 : index
    %164 = vector.load %arg9[%c768, %c0_32] : memref<832x64xbf16, #tpu.memory_space<vmem>>, vector<64x64xbf16>
    tpu.vector_store %arg9[%c768, %c0_32], %163 {strides = array<i32>} : memref<832x64xbf16, #tpu.memory_space<vmem>>, vector<64x64xbf16>,
    %cst_33 = arith.constant 0.176470593 : f32
    %165 = vector.broadcast %cst_33 : f32 to vector<64x64xf32>
    %166 = arith.mulf %140, %165 : vector<64x64xf32>
    %c0_34 = arith.constant 0 : index
    %c0_35 = arith.constant 0 : index
    %167 = vector.load %arg9[%c0_34, %c0_35] : memref<832x64xbf16, #tpu.memory_space<vmem>>, vector<832x64xbf16>
    %c0_36 = arith.constant 0 : index
    %c0_37 = arith.constant 0 : index
    %168 = vector.load %arg4[%c0_36, %c0_37] : memref<64x128xbf16, #tpu.memory_space<vmem>>, vector<64x128xbf16>
    %cst_38 = arith.constant dense<0.000000e+00> : vector<832x128xf32>
    %169 = tpu.matmul %167, %168, %cst_38 {dimension_numbers = #tpu.dot_dimension_numbers<[1], [0], [0], [1], [0, 0, 1, 1], [], []>} : vector<832x64xbf16>, vector<64x128xbf16>, vector<832x128xf32> -> vector<832x128xf32>
    %c0_39 = arith.constant 0 : index
    %c0_40 = arith.constant 0 : index
    %170 = vector.load %arg5[%c0_39, %c0_40] : memref<1x64xf32, #tpu.memory_space<vmem>>, vector<1x64xf32>
    %171 = vector.extract_strided_slice %169 {offsets = [0, 0], sizes = [64, 64], strides = [1, 1]} : vector<832x128xf32> to vector<64x64xf32>
    %172 = vector.extract_strided_slice %169 {offsets = [64, 0], sizes = [64, 64], strides = [1, 1]} : vector<832x128xf32> to vector<64x64xf32>
    %173 = vector.extract_strided_slice %169 {offsets = [128, 0], sizes = [64, 64], strides = [1, 1]} : vector<832x128xf32> to vector<64x64xf32>
    %174 = vector.extract_strided_slice %169 {offsets = [192, 0], sizes = [64, 64], strides = [1, 1]} : vector<832x128xf32> to vector<64x64xf32>
    %175 = vector.extract_strided_slice %169 {offsets = [256, 0], sizes = [64, 64], strides = [1, 1]} : vector<832x128xf32> to vector<64x64xf32>
    %176 = vector.extract_strided_slice %169 {offsets = [0, 64], sizes = [64, 64], strides = [1, 1]} : vector<832x128xf32> to vector<64x64xf32>
    %177 = vector.extract_strided_slice %169 {offsets = [64, 64], sizes = [64, 64], strides = [1, 1]} : vector<832x128xf32> to vector<64x64xf32>
    %178 = vector.extract_strided_slice %169 {offsets = [128, 64], sizes = [64, 64], strides = [1, 1]} : vector<832x128xf32> to vector<64x64xf32>
    %179 = vector.extract_strided_slice %169 {offsets = [192, 64], sizes = [64, 64], strides = [1, 1]} : vector<832x128xf32> to vector<64x64xf32>
    %180 = vector.extract_strided_slice %169 {offsets = [256, 64], sizes = [64, 64], strides = [1, 1]} : vector<832x128xf32> to vector<64x64xf32>
    %cst_41 = arith.constant 0.000000e+00 : f32
    %181 = vector.broadcast %cst_41 : f32 to vector<64x64xf32>
    %182 = arith.maximumf %176, %181 : vector<64x64xf32>
    %183 = arith.maximumf %182, %177 : vector<64x64xf32>
    %184 = arith.maximumf %183, %178 : vector<64x64xf32>
    %185 = arith.maximumf %184, %179 : vector<64x64xf32>
    %cst_42 = arith.constant 0.000000e+00 : f32
    %186 = vector.broadcast %cst_42 : f32 to vector<64x64xf32>
    %187 = arith.maximumf %180, %186 : vector<64x64xf32>
    %188 = arith.maximumf %187, %179 : vector<64x64xf32>
    %189 = arith.maximumf %188, %178 : vector<64x64xf32>
    %190 = arith.maximumf %189, %177 : vector<64x64xf32>
    %191 = arith.addf %171, %190 : vector<64x64xf32>
    %192 = vector.broadcast %170 : vector<1x64xf32> to vector<64x64xf32>
    %193 = arith.addf %191, %192 : vector<64x64xf32>
    %cst_43 = arith.constant 0.000000e+00 : f32
    %194 = vector.broadcast %cst_43 : f32 to vector<64x64xf32>
    %195 = arith.maximumf %193, %194 : vector<64x64xf32>
    %196 = arith.maximumf %182, %189 : vector<64x64xf32>
    %197 = arith.addf %172, %196 : vector<64x64xf32>
    %198 = vector.broadcast %170 : vector<1x64xf32> to vector<64x64xf32>
    %199 = arith.addf %197, %198 : vector<64x64xf32>
    %cst_44 = arith.constant 0.000000e+00 : f32
    %200 = vector.broadcast %cst_44 : f32 to vector<64x64xf32>
    %201 = arith.maximumf %199, %200 : vector<64x64xf32>
    %202 = arith.addf %195, %201 : vector<64x64xf32>
    %203 = arith.maximumf %183, %188 : vector<64x64xf32>
    %204 = arith.addf %173, %203 : vector<64x64xf32>
    %205 = vector.broadcast %170 : vector<1x64xf32> to vector<64x64xf32>
    %206 = arith.addf %204, %205 : vector<64x64xf32>
    %cst_45 = arith.constant 0.000000e+00 : f32
    %207 = vector.broadcast %cst_45 : f32 to vector<64x64xf32>
    %208 = arith.maximumf %206, %207 : vector<64x64xf32>
    %209 = arith.addf %202, %208 : vector<64x64xf32>
    %210 = arith.maximumf %184, %187 : vector<64x64xf32>
    %211 = arith.addf %174, %210 : vector<64x64xf32>
    %212 = vector.broadcast %170 : vector<1x64xf32> to vector<64x64xf32>
    %213 = arith.addf %211, %212 : vector<64x64xf32>
    %cst_46 = arith.constant 0.000000e+00 : f32
    %214 = vector.broadcast %cst_46 : f32 to vector<64x64xf32>
    %215 = arith.maximumf %213, %214 : vector<64x64xf32>
    %216 = arith.addf %209, %215 : vector<64x64xf32>
    %217 = arith.addf %175, %185 : vector<64x64xf32>
    %218 = vector.broadcast %170 : vector<1x64xf32> to vector<64x64xf32>
    %219 = arith.addf %217, %218 : vector<64x64xf32>
    %cst_47 = arith.constant 0.000000e+00 : f32
    %220 = vector.broadcast %cst_47 : f32 to vector<64x64xf32>
    %221 = arith.maximumf %219, %220 : vector<64x64xf32>
    %222 = arith.addf %216, %221 : vector<64x64xf32>
    %223 = arith.maximumf %176, %177 : vector<64x64xf32>
    %224 = arith.maximumf %223, %178 : vector<64x64xf32>
    %225 = arith.maximumf %224, %179 : vector<64x64xf32>
    %226 = arith.maximumf %225, %180 : vector<64x64xf32>
    %227 = vector.broadcast %170 : vector<1x64xf32> to vector<64x64xf32>
    %228 = arith.addf %226, %227 : vector<64x64xf32>
    %cst_48 = arith.constant 0.000000e+00 : f32
    %229 = vector.broadcast %cst_48 : f32 to vector<64x64xf32>
    %230 = arith.maximumf %228, %229 : vector<64x64xf32>
    %cst_49 = arith.constant 4.000000e+00 : f32
    %231 = vector.broadcast %cst_49 : f32 to vector<64x64xf32>
    %232 = arith.mulf %231, %230 : vector<64x64xf32>
    %233 = arith.addf %222, %232 : vector<64x64xf32>
    %cst_50 = arith.constant 0.0588235296 : f32
    %234 = vector.broadcast %cst_50 : f32 to vector<64x64xf32>
    %235 = arith.mulf %233, %234 : vector<64x64xf32>
    %236 = vector.extract_strided_slice %169 {offsets = [320, 0], sizes = [64, 64], strides = [1, 1]} : vector<832x128xf32> to vector<64x64xf32>
    %237 = vector.extract_strided_slice %169 {offsets = [384, 0], sizes = [64, 64], strides = [1, 1]} : vector<832x128xf32> to vector<64x64xf32>
    %238 = vector.extract_strided_slice %169 {offsets = [448, 0], sizes = [64, 64], strides = [1, 1]} : vector<832x128xf32> to vector<64x64xf32>
    %239 = vector.extract_strided_slice %169 {offsets = [512, 0], sizes = [64, 64], strides = [1, 1]} : vector<832x128xf32> to vector<64x64xf32>
    %240 = vector.extract_strided_slice %169 {offsets = [320, 64], sizes = [64, 64], strides = [1, 1]} : vector<832x128xf32> to vector<64x64xf32>
    %241 = vector.extract_strided_slice %169 {offsets = [384, 64], sizes = [64, 64], strides = [1, 1]} : vector<832x128xf32> to vector<64x64xf32>
    %242 = vector.extract_strided_slice %169 {offsets = [448, 64], sizes = [64, 64], strides = [1, 1]} : vector<832x128xf32> to vector<64x64xf32>
    %243 = vector.extract_strided_slice %169 {offsets = [512, 64], sizes = [64, 64], strides = [1, 1]} : vector<832x128xf32> to vector<64x64xf32>
    %cst_51 = arith.constant 0.000000e+00 : f32
    %244 = vector.broadcast %cst_51 : f32 to vector<64x64xf32>
    %245 = arith.maximumf %240, %244 : vector<64x64xf32>
    %246 = arith.maximumf %245, %241 : vector<64x64xf32>
    %247 = arith.maximumf %246, %242 : vector<64x64xf32>
    %cst_52 = arith.constant 0.000000e+00 : f32
    %248 = vector.broadcast %cst_52 : f32 to vector<64x64xf32>
    %249 = arith.maximumf %243, %248 : vector<64x64xf32>
    %250 = arith.maximumf %249, %242 : vector<64x64xf32>
    %251 = arith.maximumf %250, %241 : vector<64x64xf32>
    %252 = arith.addf %236, %251 : vector<64x64xf32>
    %253 = vector.broadcast %170 : vector<1x64xf32> to vector<64x64xf32>
    %254 = arith.addf %252, %253 : vector<64x64xf32>
    %cst_53 = arith.constant 0.000000e+00 : f32
    %255 = vector.broadcast %cst_53 : f32 to vector<64x64xf32>
    %256 = arith.maximumf %254, %255 : vector<64x64xf32>
    %257 = arith.maximumf %245, %250 : vector<64x64xf32>
    %258 = arith.addf %237, %257 : vector<64x64xf32>
    %259 = vector.broadcast %170 : vector<1x64xf32> to vector<64x64xf32>
    %260 = arith.addf %258, %259 : vector<64x64xf32>
    %cst_54 = arith.constant 0.000000e+00 : f32
    %261 = vector.broadcast %cst_54 : f32 to vector<64x64xf32>
    %262 = arith.maximumf %260, %261 : vector<64x64xf32>
    %263 = arith.addf %256, %262 : vector<64x64xf32>
    %264 = arith.maximumf %246, %249 : vector<64x64xf32>
    %265 = arith.addf %238, %264 : vector<64x64xf32>
    %266 = vector.broadcast %170 : vector<1x64xf32> to vector<64x64xf32>
    %267 = arith.addf %265, %266 : vector<64x64xf32>
    %cst_55 = arith.constant 0.000000e+00 : f32
    %268 = vector.broadcast %cst_55 : f32 to vector<64x64xf32>
    %269 = arith.maximumf %267, %268 : vector<64x64xf32>
    %270 = arith.addf %263, %269 : vector<64x64xf32>
    %271 = arith.addf %239, %247 : vector<64x64xf32>
    %272 = vector.broadcast %170 : vector<1x64xf32> to vector<64x64xf32>
    %273 = arith.addf %271, %272 : vector<64x64xf32>
    %cst_56 = arith.constant 0.000000e+00 : f32
    %274 = vector.broadcast %cst_56 : f32 to vector<64x64xf32>
    %275 = arith.maximumf %273, %274 : vector<64x64xf32>
    %276 = arith.addf %270, %275 : vector<64x64xf32>
    %277 = arith.maximumf %240, %241 : vector<64x64xf32>
    %278 = arith.maximumf %277, %242 : vector<64x64xf32>
    %279 = arith.maximumf %278, %243 : vector<64x64xf32>
    %280 = vector.broadcast %170 : vector<1x64xf32> to vector<64x64xf32>
    %281 = arith.addf %279, %280 : vector<64x64xf32>
    %cst_57 = arith.constant 0.000000e+00 : f32
    %282 = vector.broadcast %cst_57 : f32 to vector<64x64xf32>
    %283 = arith.maximumf %281, %282 : vector<64x64xf32>
    %cst_58 = arith.constant 9.000000e+00 : f32
    %284 = vector.broadcast %cst_58 : f32 to vector<64x64xf32>
    %285 = arith.mulf %284, %283 : vector<64x64xf32>
    %286 = arith.addf %276, %285 : vector<64x64xf32>
    %cst_59 = arith.constant 0.0588235296 : f32
    %287 = vector.broadcast %cst_59 : f32 to vector<64x64xf32>
    %288 = arith.mulf %286, %287 : vector<64x64xf32>
    %289 = vector.extract_strided_slice %169 {offsets = [576, 0], sizes = [64, 64], strides = [1, 1]} : vector<832x128xf32> to vector<64x64xf32>
    %290 = vector.extract_strided_slice %169 {offsets = [640, 0], sizes = [64, 64], strides = [1, 1]} : vector<832x128xf32> to vector<64x64xf32>
    %291 = vector.extract_strided_slice %169 {offsets = [704, 0], sizes = [64, 64], strides = [1, 1]} : vector<832x128xf32> to vector<64x64xf32>
    %292 = vector.extract_strided_slice %169 {offsets = [768, 0], sizes = [64, 64], strides = [1, 1]} : vector<832x128xf32> to vector<64x64xf32>
    %293 = vector.extract_strided_slice %169 {offsets = [576, 64], sizes = [64, 64], strides = [1, 1]} : vector<832x128xf32> to vector<64x64xf32>
    %294 = vector.extract_strided_slice %169 {offsets = [640, 64], sizes = [64, 64], strides = [1, 1]} : vector<832x128xf32> to vector<64x64xf32>
    %295 = vector.extract_strided_slice %169 {offsets = [704, 64], sizes = [64, 64], strides = [1, 1]} : vector<832x128xf32> to vector<64x64xf32>
    %296 = vector.extract_strided_slice %169 {offsets = [768, 64], sizes = [64, 64], strides = [1, 1]} : vector<832x128xf32> to vector<64x64xf32>
    %cst_60 = arith.constant 0.000000e+00 : f32
    %297 = vector.broadcast %cst_60 : f32 to vector<64x64xf32>
    %298 = arith.maximumf %293, %297 : vector<64x64xf32>
    %299 = arith.maximumf %298, %294 : vector<64x64xf32>
    %300 = arith.maximumf %299, %295 : vector<64x64xf32>
    %cst_61 = arith.constant 0.000000e+00 : f32
    %301 = vector.broadcast %cst_61 : f32 to vector<64x64xf32>
    %302 = arith.maximumf %296, %301 : vector<64x64xf32>
    %303 = arith.maximumf %302, %295 : vector<64x64xf32>
    %304 = arith.maximumf %303, %294 : vector<64x64xf32>
    %305 = arith.addf %289, %304 : vector<64x64xf32>
    %306 = vector.broadcast %170 : vector<1x64xf32> to vector<64x64xf32>
    %307 = arith.addf %305, %306 : vector<64x64xf32>
    %cst_62 = arith.constant 0.000000e+00 : f32
    %308 = vector.broadcast %cst_62 : f32 to vector<64x64xf32>
    %309 = arith.maximumf %307, %308 : vector<64x64xf32>
    %310 = arith.maximumf %298, %303 : vector<64x64xf32>
    %311 = arith.addf %290, %310 : vector<64x64xf32>
    %312 = vector.broadcast %170 : vector<1x64xf32> to vector<64x64xf32>
    %313 = arith.addf %311, %312 : vector<64x64xf32>
    %cst_63 = arith.constant 0.000000e+00 : f32
    %314 = vector.broadcast %cst_63 : f32 to vector<64x64xf32>
    %315 = arith.maximumf %313, %314 : vector<64x64xf32>
    %316 = arith.addf %309, %315 : vector<64x64xf32>
    %317 = arith.maximumf %299, %302 : vector<64x64xf32>
    %318 = arith.addf %291, %317 : vector<64x64xf32>
    %319 = vector.broadcast %170 : vector<1x64xf32> to vector<64x64xf32>
    %320 = arith.addf %318, %319 : vector<64x64xf32>
    %cst_64 = arith.constant 0.000000e+00 : f32
    %321 = vector.broadcast %cst_64 : f32 to vector<64x64xf32>
    %322 = arith.maximumf %320, %321 : vector<64x64xf32>
    %323 = arith.addf %316, %322 : vector<64x64xf32>
    %324 = arith.addf %292, %300 : vector<64x64xf32>
    %325 = vector.broadcast %170 : vector<1x64xf32> to vector<64x64xf32>
    %326 = arith.addf %324, %325 : vector<64x64xf32>
    %cst_65 = arith.constant 0.000000e+00 : f32
    %327 = vector.broadcast %cst_65 : f32 to vector<64x64xf32>
    %328 = arith.maximumf %326, %327 : vector<64x64xf32>
    %329 = arith.addf %323, %328 : vector<64x64xf32>
    %330 = arith.maximumf %293, %294 : vector<64x64xf32>
    %331 = arith.maximumf %330, %295 : vector<64x64xf32>
    %332 = arith.maximumf %331, %296 : vector<64x64xf32>
    %333 = vector.broadcast %170 : vector<1x64xf32> to vector<64x64xf32>
    %334 = arith.addf %332, %333 : vector<64x64xf32>
    %cst_66 = arith.constant 0.000000e+00 : f32
    %335 = vector.broadcast %cst_66 : f32 to vector<64x64xf32>
    %336 = arith.maximumf %334, %335 : vector<64x64xf32>
    %cst_67 = arith.constant 4.000000e+00 : f32
    %337 = vector.broadcast %cst_67 : f32 to vector<64x64xf32>
    %338 = arith.mulf %337, %336 : vector<64x64xf32>
    %339 = arith.addf %329, %338 : vector<64x64xf32>
    %cst_68 = arith.constant 0.0588235296 : f32
    %340 = vector.broadcast %cst_68 : f32 to vector<64x64xf32>
    %341 = arith.mulf %339, %340 : vector<64x64xf32>
    %342 = tpu.concatenate %100, %235, %133, %288, %166, %341 in 1 : vector<64x64xf32>, vector<64x64xf32>, vector<64x64xf32>, vector<64x64xf32>, vector<64x64xf32>, vector<64x64xf32> -> vector<64x384xf32>
    %343 = arith.truncf %342 : vector<64x384xf32> to vector<64x384xbf16>
    %c0_69 = arith.constant 0 : index
    %c0_70 = arith.constant 0 : index
    %344 = vector.load %arg6[%c0_69, %c0_70] : memref<384x128xbf16, #tpu.memory_space<vmem>>, vector<384x128xbf16>
    %cst_71 = arith.constant dense<0.000000e+00> : vector<64x128xf32>
    %345 = tpu.matmul %343, %344, %cst_71 {dimension_numbers = #tpu.dot_dimension_numbers<[1], [0], [0], [1], [0, 0, 1, 1], [], []>} : vector<64x384xbf16>, vector<384x128xbf16>, vector<64x128xf32> -> vector<64x128xf32>
    %c0_72 = arith.constant 0 : index
    %c0_73 = arith.constant 0 : index
    %346 = vector.load %arg7[%c0_72, %c0_73] : memref<1x128xf32, #tpu.memory_space<vmem>>, vector<1x128xf32>
    %347 = vector.broadcast %346 : vector<1x128xf32> to vector<64x128xf32>
    %348 = arith.addf %345, %347 : vector<64x128xf32>
    %349 = vector.broadcast %1 : vector<64x1xf32> to vector<64x128xf32>
    %350 = arith.mulf %348, %349 : vector<64x128xf32>
    %c0_74 = arith.constant 0 : index
    %c0_75 = arith.constant 0 : index
    %351 = vector.load %arg8[%c0_74, %c0_75] : memref<64x128xf32, #tpu.memory_space<vmem>>, vector<64x128xf32>
    tpu.vector_store %arg8[%c0_74, %c0_75], %350 {strides = array<i32>} : memref<64x128xf32, #tpu.memory_space<vmem>>, vector<64x128xf32>,
    return
  }
  func.func @transform_0(%arg0: i32) -> (i32, i32) {
    %c0_i32 = arith.constant 0 : i32
    %c0_i32_0 = arith.constant 0 : i32
    return %arg0, %c0_i32 : i32, i32
  }
  func.func @transform_1(%arg0: i32) -> (i32, i32) {
    %c0_i32 = arith.constant 0 : i32
    %c0_i32_0 = arith.constant 0 : i32
    %c0_i32_1 = arith.constant 0 : i32
    return %c0_i32, %c0_i32_0 : i32, i32
  }
  func.func @transform_2(%arg0: i32) -> (i32, i32) {
    %c0_i32 = arith.constant 0 : i32
    %c0_i32_0 = arith.constant 0 : i32
    %c0_i32_1 = arith.constant 0 : i32
    return %c0_i32, %c0_i32_0 : i32, i32
  }
  func.func @transform_3(%arg0: i32) -> (i32, i32) {
    %c0_i32 = arith.constant 0 : i32
    %c0_i32_0 = arith.constant 0 : i32
    %c0_i32_1 = arith.constant 0 : i32
    return %c0_i32, %c0_i32_0 : i32, i32
  }
  func.func @transform_4(%arg0: i32) -> (i32, i32) {
    %c0_i32 = arith.constant 0 : i32
    %c0_i32_0 = arith.constant 0 : i32
    %c0_i32_1 = arith.constant 0 : i32
    return %c0_i32, %c0_i32_0 : i32, i32
  }
  func.func @transform_5(%arg0: i32) -> (i32, i32) {
    %c0_i32 = arith.constant 0 : i32
    %c0_i32_0 = arith.constant 0 : i32
    %c0_i32_1 = arith.constant 0 : i32
    return %c0_i32, %c0_i32_0 : i32, i32
  }
  func.func @transform_6(%arg0: i32) -> (i32, i32) {
    %c0_i32 = arith.constant 0 : i32
    %c0_i32_0 = arith.constant 0 : i32
    %c0_i32_1 = arith.constant 0 : i32
    return %c0_i32, %c0_i32_0 : i32, i32
  }
  func.func @transform_7(%arg0: i32) -> (i32, i32) {
    %c0_i32 = arith.constant 0 : i32
    %c0_i32_0 = arith.constant 0 : i32
    return %arg0, %c0_i32 : i32, i32
  }
}

</mosaic_0001>

<llo_original>
// kernel: tpu_custom_call.1
$region0: #{tpu_custom_call.1}
  #allocation0 [shape = 'u32[]', space=smem, size = 0x4, offset = 0x4, fixed_abs, tag = 'smem constant byte address 0x4 - core index']
  #allocation1 [shape = 'u32[72,128]{1,0:T(1,128)}', space=vmem, size = 0x9000, scoped, tag = 'internal scratch']
  #allocation2 [shape = 'bf16[832,64]{1,0:T(8,128)(2,1)}', space=vmem, size = 0x34000, scoped, tag = 'scratch operand']
  %s0 = inlined_call_operand.vmem [shape: f32[128,64], index: 0, kind: input, shape index: {}]
  %s1 = inlined_call_operand.hbm [shape: bf16[64,1792], index: 1, kind: input, shape index: {}]
  %s2 = inlined_call_operand.hbm [shape: f32[1,896], index: 2, kind: input, shape index: {}]
  %s3 = inlined_call_operand.hbm [shape: bf16[64,128], index: 3, kind: input, shape index: {}]
  %s4 = inlined_call_operand.vmem [shape: f32[1,64], index: 4, kind: input, shape index: {}]
  %s5 = inlined_call_operand.vmem [shape: bf16[384,128], index: 5, kind: input, shape index: {}]
  %s6 = inlined_call_operand.vmem [shape: f32[1,128], index: 6, kind: input, shape index: {}]
  %s7 = inlined_call_operand.hbm [shape: f32[128,128], index: 7, kind: output, shape index: {}]
  %s8 = sld [smem:[#allocation0]]
  $region73: #{tpu_custom_call.1} parent=0
    _
  %s10 = ssub.s32 1, %s8
  %s11 = scalar_select 0, %s10, %s8
  $region1: #{tpu_custom_call.1} parent=0
    #allocation3 [shape = 'u8[229376]{0}', space=vmem, size = 0x38000, scoped, tag = 'input window, operand 1, single buffered']
    #allocation4 [shape = 's32[2]{0}', space=sflag, size = 0x8, scoped, tag = 'scoped memory for tpu_custom_call.1']
    #allocation5 [shape = 's32[2]{0}', space=sflag, size = 0x8, scoped, tag = 'scoped memory for tpu_custom_call.1']
    #allocation6 [shape = 'u8[3584]{0}', space=vmem, size = 0x1000, scoped, tag = 'input window, operand 2, single buffered']
    #allocation7 [shape = 's32[1]{0}', space=sflag, size = 0x4, scoped, tag = 'scoped memory for tpu_custom_call.1']
    #allocation8 [shape = 'u8[16384]{0}', space=vmem, size = 0x4000, scoped, tag = 'input window, operand 3, single buffered']
    #allocation9 [shape = 'u8[65536]{0}', space=vmem, size = 0x10000, scoped, tag = 'output window, operand 0']
    %12 = vsyncpa [#allocation4], 0
    %13 = vsyncpa [#allocation7], 0
    %14 = vsyncpa [#allocation5], 0
    %s15 = scalar_lea.sflag [#allocation5], 1
    %16 = vsyncpa %s15, 0
    loop: start=0, step=1, limit=4
    $region2: #{tpu_custom_call.1} parent=1 // loop_pre_header
      _
    $region3: #{tpu_custom_call.1} parent=1 // loop_header
      %s18 = sphi 0, %s22
      %p19 = scmp.ge.s32.totalorder %s18, 4
      %s28 = sphi 0, %s30
      %s31 = sphi 0, %s28
      %s32 = sphi 0, %s31
      %s48 = sphi 0, %s32
      %s52 = sphi 0, %s52
      %s54 = sphi 0, %s52
      %s55 = sphi 0, %s54
      %s69 = sphi 0, %s55
      %s73 = sphi 0, %s73
      %s75 = sphi 0, %s73
      %s76 = sphi 0, %s75
      %s90 = sphi 0, %s76
      %s94 = sphi 0, %s94
      %s96 = sphi 0, %s94
      %s97 = sphi 0, %s96
      %s111 = sphi 0, %s97
      %s115 = sphi 0, %s115
      %s117 = sphi 0, %s115
      %s118 = sphi 0, %s117
      %s132 = sphi 0, %s118
      %s136 = sphi 0, %s136
      %s138 = sphi 0, %s136
      %s139 = sphi 0, %s138
      %s153 = sphi 0, %s139
      %s157 = sphi 0, %s157
      %s159 = sphi 0, %s157
      %s160 = sphi 0, %s159
      %s174 = sphi 0, %s160
      %s180 = sphi 0, %s182
      %s183 = sphi 0, %s180
      %s184 = sphi 0, %s183
      %s200 = sphi 0, %s184
    $region4: #{tpu_custom_call.1} parent=1 // loop_header_branch
      %21 = sbr.rel (%p19) target = $region8
    $region5: #{tpu_custom_call.1} parent=1 // loop_body
      %s23 = ssub.s32 %s18, 1
      %s24 = ssub.s32 %s18, 2
      %s25 = sadd.s32 %s18, 1
      %s26 = ssub.s32 %s18, %s25
      %p27 = scmp.eq.s32.totalorder %s26, 0
      %s29 = sadd.s32 %s28, 1
      %s30 = scalar_select %p27, %s28, %s29
      %p33 = pneg %p27
      %p34 = scmp.eq.s32.totalorder %s18, 1
      %p35 = por %p33, %p34
      %p36 = scmp.ne.s32.totalorder %s28, %s31
      %p37 = scmp.eq.s32.totalorder %s18, 0
      %p38 = por %p36, %p37
      %p39 = scmp.ne.s32.totalorder %s28, %s31
      %p40 = scmp.eq.s32.totalorder %s23, 1
      %p41 = por %p39, %p40
      %p42 = scmp.ne.s32.totalorder %s31, %s32
      %p43 = scmp.eq.s32.totalorder %s23, 0
      %p44 = por %p42, %p43
      %p45 = scmp.ne.s32.totalorder %s31, %s32
      %p46 = scmp.eq.s32.totalorder %s24, 1
      %p47 = por %p45, %p46
      %p49 = scmp.ne.s32.totalorder %s32, %s48
      %p50 = scmp.eq.s32.totalorder %s24, 0
      %p51 = por %p49, %p50
      %s53 = sadd.s32 %s52, 1
      %p56 = scmp.eq.s32.totalorder %s18, 1
      %p57 = scmp.ne.s32.totalorder %s52, %s54
      %p58 = scmp.eq.s32.totalorder %s18, 0
      %p59 = por %p57, %p58
      %p60 = scmp.ne.s32.totalorder %s52, %s54
      %p61 = scmp.eq.s32.totalorder %s23, 1
      %p62 = por %p60, %p61
      %p63 = scmp.ne.s32.totalorder %s54, %s55
      %p64 = scmp.eq.s32.totalorder %s23, 0
      %p65 = por %p63, %p64
      %p66 = scmp.ne.s32.totalorder %s54, %s55
      %p67 = scmp.eq.s32.totalorder %s24, 1
      %p68 = por %p66, %p67
      %p70 = scmp.ne.s32.totalorder %s55, %s69
      %p71 = scmp.eq.s32.totalorder %s24, 0
      %p72 = por %p70, %p71
      %s74 = sadd.s32 %s73, 1
      %p77 = scmp.eq.s32.totalorder %s18, 1
      %p78 = scmp.ne.s32.totalorder %s73, %s75
      %p79 = scmp.eq.s32.totalorder %s18, 0
      %p80 = por %p78, %p79
      %p81 = scmp.ne.s32.totalorder %s73, %s75
      %p82 = scmp.eq.s32.totalorder %s23, 1
      %p83 = por %p81, %p82
      %p84 = scmp.ne.s32.totalorder %s75, %s76
      %p85 = scmp.eq.s32.totalorder %s23, 0
      %p86 = por %p84, %p85
      %p87 = scmp.ne.s32.totalorder %s75, %s76
      %p88 = scmp.eq.s32.totalorder %s24, 1
      %p89 = por %p87, %p88
      %p91 = scmp.ne.s32.totalorder %s76, %s90
      %p92 = scmp.eq.s32.totalorder %s24, 0
      %p93 = por %p91, %p92
      %s95 = sadd.s32 %s94, 1
      %p98 = scmp.eq.s32.totalorder %s18, 1
      %p99 = scmp.ne.s32.totalorder %s94, %s96
      %p100 = scmp.eq.s32.totalorder %s18, 0
      %p101 = por %p99, %p100
      %p102 = scmp.ne.s32.totalorder %s94, %s96
      %p103 = scmp.eq.s32.totalorder %s23, 1
      %p104 = por %p102, %p103
      %p105 = scmp.ne.s32.totalorder %s96, %s97
      %p106 = scmp.eq.s32.totalorder %s23, 0
      %p107 = por %p105, %p106
      %p108 = scmp.ne.s32.totalorder %s96, %s97
      %p109 = scmp.eq.s32.totalorder %s24, 1
      %p110 = por %p108, %p109
      %p112 = scmp.ne.s32.totalorder %s97, %s111
      %p113 = scmp.eq.s32.totalorder %s24, 0
      %p114 = por %p112, %p113
      %s116 = sadd.s32 %s115, 1
      %p119 = scmp.eq.s32.totalorder %s18, 1
      %p120 = scmp.ne.s32.totalorder %s115, %s117
      %p121 = scmp.eq.s32.totalorder %s18, 0
      %p122 = por %p120, %p121
      %p123 = scmp.ne.s32.totalorder %s115, %s117
      %p124 = scmp.eq.s32.totalorder %s23, 1
      %p125 = por %p123, %p124
      %p126 = scmp.ne.s32.totalorder %s117, %s118
      %p127 = scmp.eq.s32.totalorder %s23, 0
      %p128 = por %p126, %p127
      %p129 = scmp.ne.s32.totalorder %s117, %s118
      %p130 = scmp.eq.s32.totalorder %s24, 1
      %p131 = por %p129, %p130
      %p133 = scmp.ne.s32.totalorder %s118, %s132
      %p134 = scmp.eq.s32.totalorder %s24, 0
      %p135 = por %p133, %p134
      %s137 = sadd.s32 %s136, 1
      %p140 = scmp.eq.s32.totalorder %s18, 1
      %p141 = scmp.ne.s32.totalorder %s136, %s138
      %p142 = scmp.eq.s32.totalorder %s18, 0
      %p143 = por %p141, %p142
      %p144 = scmp.ne.s32.totalorder %s136, %s138
      %p145 = scmp.eq.s32.totalorder %s23, 1
      %p146 = por %p144, %p145
      %p147 = scmp.ne.s32.totalorder %s138, %s139
      %p148 = scmp.eq.s32.totalorder %s23, 0
      %p149 = por %p147, %p148
      %p150 = scmp.ne.s32.totalorder %s138, %s139
      %p151 = scmp.eq.s32.totalorder %s24, 1
      %p152 = por %p150, %p151
      %p154 = scmp.ne.s32.totalorder %s139, %s153
      %p155 = scmp.eq.s32.totalorder %s24, 0
      %p156 = por %p154, %p155
      %s158 = sadd.s32 %s157, 1
      %p161 = scmp.eq.s32.totalorder %s18, 1
      %p162 = scmp.ne.s32.totalorder %s157, %s159
      %p163 = scmp.eq.s32.totalorder %s18, 0
      %p164 = por %p162, %p163
      %p165 = scmp.ne.s32.totalorder %s157, %s159
      %p166 = scmp.eq.s32.totalorder %s23, 1
      %p167 = por %p165, %p166
      %p168 = scmp.ne.s32.totalorder %s159, %s160
      %p169 = scmp.eq.s32.totalorder %s23, 0
      %p170 = por %p168, %p169
      %p171 = scmp.ne.s32.totalorder %s159, %s160
      %p172 = scmp.eq.s32.totalorder %s24, 1
      %p173 = por %p171, %p172
      %p175 = scmp.ne.s32.totalorder %s160, %s174
      %p176 = scmp.eq.s32.totalorder %s24, 0
      %p177 = por %p175, %p176
      %s178 = ssub.s32 %s18, %s25
      %p179 = scmp.eq.s32.totalorder %s178, 0
      %s181 = sadd.s32 %s180, 1
      %s182 = scalar_select %p179, %s180, %s181
      %p185 = pneg %p179
      %p186 = scmp.eq.s32.totalorder %s18, 1
      %p187 = por %p185, %p186
      %p188 = scmp.ne.s32.totalorder %s180, %s183
      %p189 = scmp.eq.s32.totalorder %s18, 0
      %p190 = por %p188, %p189
      %p191 = scmp.ne.s32.totalorder %s180, %s183
      %p192 = scmp.eq.s32.totalorder %s23, 1
      %p193 = por %p191, %p192
      %p194 = scmp.ne.s32.totalorder %s183, %s184
      %p195 = scmp.eq.s32.totalorder %s23, 0
      %p196 = por %p194, %p195
      %p197 = scmp.ne.s32.totalorder %s183, %s184
      %p198 = scmp.eq.s32.totalorder %s24, 1
      %p199 = por %p197, %p198
      %p201 = scmp.ne.s32.totalorder %s184, %s200
      %p202 = scmp.eq.s32.totalorder %s24, 0
      %p203 = por %p201, %p202
      %p204 = scmp.le.s32.totalorder 1, %s18
      %p205 = scmp.lt.s32.totalorder %s18, 3
      %p206 = pnand %p204, %p205
      %p207 = pneg %p206
      // Predicated region
      $region9: #{tpu_custom_call.1} parent=5 // pred_check
        _
      $region10: #{tpu_custom_call.1} parent=5 // pred_check_branch
        %209 = sbr.rel (%p206) target = $region12
      $region11: #{tpu_custom_call.1} parent=5 // pred_region
        %s210 = ssub.s32 %s18, 1
        // Predicated region
        $region13: #{tpu_custom_call.1} parent=11 // pred_check
          %p211 = pneg %p65
        $region14: #{tpu_custom_call.1} parent=11 // pred_check_branch
          %213 = sbr.rel (%p211) target = $region16
        $region15: #{tpu_custom_call.1} parent=11 // pred_region
          %215 = vsyncadd [#allocation4], 0
          %s216 = sshll.u32 %s1, 4
          %s217 = int_to_ptr.hbm [resolvable:$true] %s216
          %s218 = sshll.u32 [#allocation3], 4
          %s219 = int_to_ptr.vmem [resolvable:$true] %s218
          %224 = dma.hbm_to_vmem [thread:$0]  %s217, 7168, %s219, [#allocation4], 896, 896, 56
        $region16: #{tpu_custom_call.1} parent=11 // pred_fallthru
          _
        // Predicated region
        $region17: #{tpu_custom_call.1} parent=11 // pred_check
          %p225 = pneg %p86
        $region18: #{tpu_custom_call.1} parent=11 // pred_check_branch
          %227 = sbr.rel (%p225) target = $region20
        $region19: #{tpu_custom_call.1} parent=11 // pred_region
          %229 = vsyncadd [#allocation7], 0
          %s231 = sshll.u32 %s2, 4
          %s232 = int_to_ptr.hbm [resolvable:$true] %s231
          %s233 = sshll.u32 [#allocation6], 4
          %s234 = int_to_ptr.vmem [resolvable:$true] %s233
          %236 = dma.hbm_to_vmem [thread:$0]  %s232, 112, %s234, [#allocation7]
        $region20: #{tpu_custom_call.1} parent=11 // pred_fallthru
          _
        // Predicated region
        $region21: #{tpu_custom_call.1} parent=11 // pred_check
          %p237 = pneg %p107
        $region22: #{tpu_custom_call.1} parent=11 // pred_check_branch
          %239 = sbr.rel (%p237) target = $region24
        $region23: #{tpu_custom_call.1} parent=11 // pred_region
          %241 = vsyncadd [#allocation7], 0
          %s242 = sshll.u32 %s3, 4
          %s243 = int_to_ptr.hbm [resolvable:$true] %s242
          %s244 = sshll.u32 [#allocation8], 4
          %s245 = int_to_ptr.vmem [resolvable:$true] %s244
          %250 = dma.hbm_to_vmem [thread:$0]  %s243, 512, %s245, [#allocation7], 64, 64, 4
        $region24: #{tpu_custom_call.1} parent=11 // pred_fallthru
          _
        // Predicated region
        $region25: #{tpu_custom_call.1} parent=11 // pred_check
          %p251 = pneg %p128
        $region26: #{tpu_custom_call.1} parent=11 // pred_check_branch
          %253 = sbr.rel (%p251) target = $region28
        $region27: #{tpu_custom_call.1} parent=11 // pred_region
          _
        $region28: #{tpu_custom_call.1} parent=11 // pred_fallthru
          _
        // Predicated region
        $region29: #{tpu_custom_call.1} parent=11 // pred_check
          %p254 = pneg %p149
        $region30: #{tpu_custom_call.1} parent=11 // pred_check_branch
          %256 = sbr.rel (%p254) target = $region32
        $region31: #{tpu_custom_call.1} parent=11 // pred_region
          _
        $region32: #{tpu_custom_call.1} parent=11 // pred_fallthru
          _
        // Predicated region
        $region33: #{tpu_custom_call.1} parent=11 // pred_check
          %p257 = pneg %p170
        $region34: #{tpu_custom_call.1} parent=11 // pred_check_branch
          %259 = sbr.rel (%p257) target = $region36
        $region35: #{tpu_custom_call.1} parent=11 // pred_region
          _
        $region36: #{tpu_custom_call.1} parent=11 // pred_fallthru
          _
      $region12: #{tpu_custom_call.1} parent=5 // pred_fallthru
        _
      %p260 = scmp.lt.s32.totalorder %s18, 2
      // Predicated region
      $region37: #{tpu_custom_call.1} parent=5 // pred_check
        %p261 = pneg %p260
      $region38: #{tpu_custom_call.1} parent=5 // pred_check_branch
        %263 = sbr.rel (%p261) target = $region40
      $region39: #{tpu_custom_call.1} parent=5 // pred_region
        // Predicated region
        $region41: #{tpu_custom_call.1} parent=39 // pred_check
          %p264 = pneg %p38
        $region42: #{tpu_custom_call.1} parent=39 // pred_check_branch
          %266 = sbr.rel (%p264) target = $region44
        $region43: #{tpu_custom_call.1} parent=39 // pred_region
          %s267 = smul.u32 8, %s18
          %p268 = scmp.lt.s32.totalorder %s267, 15
          %s269 = scalar_select %p268, %s267, 15
          %s270 = smul.addr %s269, 8
          %s271 = scalar_lea.vmem %s0, %s270
          %s272 = smul.u32 8, %s18
        $region44: #{tpu_custom_call.1} parent=39 // pred_fallthru
          _
      $region40: #{tpu_custom_call.1} parent=5 // pred_fallthru
        _
      %p273 = scmp.le.s32.totalorder 1, %s18
      %p274 = scmp.lt.s32.totalorder %s18, 3
      %p275 = pnand %p273, %p274
      %p276 = pneg %p275
      // Predicated region
      $region45: #{tpu_custom_call.1} parent=5 // pred_check
        _
      $region46: #{tpu_custom_call.1} parent=5 // pred_check_branch
        %278 = sbr.rel (%p275) target = $region48
      $region47: #{tpu_custom_call.1} parent=5 // pred_region
        %s279 = ssub.s32 %s18, 1
        // Predicated region
        $region49: #{tpu_custom_call.1} parent=47 // pred_check
          %p280 = pneg %p65
        $region50: #{tpu_custom_call.1} parent=47 // pred_check_branch
          %282 = sbr.rel (%p280) target = $region52
        $region51: #{tpu_custom_call.1} parent=47 // pred_region
          %284 = dma.done [#allocation4], 7168
        $region52: #{tpu_custom_call.1} parent=47 // pred_fallthru
          _
        // Predicated region
        $region53: #{tpu_custom_call.1} parent=47 // pred_check
          %p285 = pneg %p86
        $region54: #{tpu_custom_call.1} parent=47 // pred_check_branch
          %287 = sbr.rel (%p285) target = $region56
        $region55: #{tpu_custom_call.1} parent=47 // pred_region
          %289 = dma.done [#allocation7], 112
        $region56: #{tpu_custom_call.1} parent=47 // pred_fallthru
          _
        // Predicated region
        $region57: #{tpu_custom_call.1} parent=47 // pred_check
          %p290 = pneg %p107
        $region58: #{tpu_custom_call.1} parent=47 // pred_check_branch
          %292 = sbr.rel (%p290) target = $region60
        $region59: #{tpu_custom_call.1} parent=47 // pred_region
          %294 = dma.done [#allocation7], 512
        $region60: #{tpu_custom_call.1} parent=47 // pred_fallthru
          _
        %s295 = smul.u32 8, %s23
        %p296 = scmp.lt.s32.totalorder %s295, 15
        %s297 = scalar_select %p296, %s295, 15
        %s298 = smul.addr %s297, 8
        %s299 = scalar_lea.vmem %s0, %s298
        %p300 = pneg %p44
        %p301 = pneg %p41
        %p302 = pneg %p65
        %p303 = pneg %p62
        %p304 = pneg %p86
        %p305 = pneg %p83
        %p306 = pneg %p107
        %p307 = pneg %p104
        %p308 = pneg %p128
        %p309 = pneg %p125
        %p310 = pneg %p149
        %p311 = pneg %p146
        %p312 = pneg %p170
        %p313 = pneg %p167
        %p314 = pneg %p196
        %p315 = pneg %p193
        %s316 = sand.u32 %s183, 1
        %s317 = scalar_lea.sflag [#allocation5], %s316
        %s318 = sand.u32 %s183, 1
        %s319 = smul.addr %s318, 64
        %s320 = scalar_lea.vmem [#allocation9], %s319
        %s321 = smul.u32 8, %s23
        %p322 = scmp.lt.s32.totalorder %s321, 15
        %s323 = scalar_select %p322, %s321, 15
        %s324 = smul.addr %s323, 8
        %s325 = scalar_lea.vmem %s0, %s324
        %s326 = smul.u32 8, %s23
        %s327 = smul.u32 8, %s23
        %v329 = vld [vmem:[%s325] sm:$0xff]
        %v330 = vld [vmem:[%s325 + $0x8] sm:$0xff]
        %v331 = vld [vmem:[%s325 + $0x10] sm:$0xff]
        %v332 = vld [vmem:[%s325 + $0x18] sm:$0xff]
        %v333 = vld [vmem:[%s325 + $0x20] sm:$0xff]
        %v334 = vld [vmem:[%s325 + $0x28] sm:$0xff]
        %v335 = vld [vmem:[%s325 + $0x30] sm:$0xff]
        %v336 = vld [vmem:[%s325 + $0x38] sm:$0xff]
        %vm337 = vcmask 138240
        %v338 = vsel %vm337, %v329, inf
        %339 = vmin.xlane.f32.xlu0 %v338
        %v340 = vpop.xlane.xlu0 %339
        %v341 = vsel %vm337, %v330, inf
        %342 = vmin.xlane.f32.xlu0 %v341
        %v343 = vpop.xlane.xlu0 %342
        %v344 = vsel %vm337, %v331, inf
        %345 = vmin.xlane.f32.xlu0 %v344
        %v346 = vpop.xlane.xlu0 %345
        %v347 = vsel %vm337, %v332, inf
        %348 = vmin.xlane.f32.xlu0 %v347
        %v349 = vpop.xlane.xlu0 %348
        %v350 = vsel %vm337, %v333, inf
        %351 = vmin.xlane.f32.xlu0 %v350
        %v352 = vpop.xlane.xlu0 %351
        %v353 = vsel %vm337, %v334, inf
        %354 = vmin.xlane.f32.xlu0 %v353
        %v355 = vpop.xlane.xlu0 %354
        %v356 = vsel %vm337, %v335, inf
        %357 = vmin.xlane.f32.xlu0 %v356
        %v358 = vpop.xlane.xlu0 %357
        %v359 = vsel %vm337, %v336, inf
        %360 = vmin.xlane.f32.xlu0 %v359
        %v361 = vpop.xlane.xlu0 %360
        %v362 = vsel %vm337, %v329, -inf
        %363 = vmax.xlane.f32.xlu0 %v362
        %v364 = vpop.xlane.xlu0 %363
        %v365 = vsel %vm337, %v330, -inf
        %366 = vmax.xlane.f32.xlu0 %v365
        %v367 = vpop.xlane.xlu0 %366
        %v368 = vsel %vm337, %v331, -inf
        %369 = vmax.xlane.f32.xlu0 %v368
        %v370 = vpop.xlane.xlu0 %369
        %v371 = vsel %vm337, %v332, -inf
        %372 = vmax.xlane.f32.xlu0 %v371
        %v373 = vpop.xlane.xlu0 %372
        %v374 = vsel %vm337, %v333, -inf
        %375 = vmax.xlane.f32.xlu0 %v374
        %v376 = vpop.xlane.xlu0 %375
        %v377 = vsel %vm337, %v334, -inf
        %378 = vmax.xlane.f32.xlu0 %v377
        %v379 = vpop.xlane.xlu0 %378
        %v380 = vsel %vm337, %v335, -inf
        %381 = vmax.xlane.f32.xlu0 %v380
        %v382 = vpop.xlane.xlu0 %381
        %v383 = vsel %vm337, %v336, -inf
        %384 = vmax.xlane.f32.xlu0 %v383
        %v385 = vpop.xlane.xlu0 %384
        %vm386 = vcmask 277640
        %v387 = vsel %vm386, %v329, inf
        %388 = vmin.xlane.f32.xlu0 %v387
        %v389 = vpop.xlane.xlu0 %388
        %v390 = vsel %vm386, %v330, inf
        %391 = vmin.xlane.f32.xlu0 %v390
        %v392 = vpop.xlane.xlu0 %391
        %v393 = vsel %vm386, %v331, inf
        %394 = vmin.xlane.f32.xlu0 %v393
        %v395 = vpop.xlane.xlu0 %394
        %v396 = vsel %vm386, %v332, inf
        %397 = vmin.xlane.f32.xlu0 %v396
        %v398 = vpop.xlane.xlu0 %397
        %v399 = vsel %vm386, %v333, inf
        %400 = vmin.xlane.f32.xlu0 %v399
        %v401 = vpop.xlane.xlu0 %400
        %v402 = vsel %vm386, %v334, inf
        %403 = vmin.xlane.f32.xlu0 %v402
        %v404 = vpop.xlane.xlu0 %403
        %v405 = vsel %vm386, %v335, inf
        %406 = vmin.xlane.f32.xlu0 %v405
        %v407 = vpop.xlane.xlu0 %406
        %v408 = vsel %vm386, %v336, inf
        %409 = vmin.xlane.f32.xlu0 %v408
        %v410 = vpop.xlane.xlu0 %409
        %v411 = vsel %vm386, %v329, -inf
        %412 = vmax.xlane.f32.xlu0 %v411
        %v413 = vpop.xlane.xlu0 %412
        %v414 = vsel %vm386, %v330, -inf
        %415 = vmax.xlane.f32.xlu0 %v414
        %v416 = vpop.xlane.xlu0 %415
        %v417 = vsel %vm386, %v331, -inf
        %418 = vmax.xlane.f32.xlu0 %v417
        %v419 = vpop.xlane.xlu0 %418
        %v420 = vsel %vm386, %v332, -inf
        %421 = vmax.xlane.f32.xlu0 %v420
        %v422 = vpop.xlane.xlu0 %421
        %v423 = vsel %vm386, %v333, -inf
        %424 = vmax.xlane.f32.xlu0 %v423
        %v425 = vpop.xlane.xlu0 %424
        %v426 = vsel %vm386, %v334, -inf
        %427 = vmax.xlane.f32.xlu0 %v426
        %v428 = vpop.xlane.xlu0 %427
        %v429 = vsel %vm386, %v335, -inf
        %430 = vmax.xlane.f32.xlu0 %v429
        %v431 = vpop.xlane.xlu0 %430
        %v432 = vsel %vm386, %v336, -inf
        %433 = vmax.xlane.f32.xlu0 %v432
        %v434 = vpop.xlane.xlu0 %433
        %v435 = vsub.f32 %v364, %v340
        %v436 = vsub.f32 %v367, %v343
        %v437 = vsub.f32 %v370, %v346
        %v438 = vsub.f32 %v373, %v349
        %v439 = vsub.f32 %v376, %v352
        %v440 = vsub.f32 %v379, %v355
        %v441 = vsub.f32 %v382, %v358
        %v442 = vsub.f32 %v385, %v361
        %v443 = vadd.f32 %v435, 1e-06
        %v444 = vadd.f32 %v436, 1e-06
        %v445 = vadd.f32 %v437, 1e-06
        %v446 = vadd.f32 %v438, 1e-06
        %v447 = vadd.f32 %v439, 1e-06
        %v448 = vadd.f32 %v440, 1e-06
        %v449 = vadd.f32 %v441, 1e-06
        %v450 = vadd.f32 %v442, 1e-06
        %v451 = vrcp.pop %v443
        %v452 = vrcp.pop %v444
        %v453 = vrcp.pop %v445
        %v454 = vrcp.pop %v446
        %v455 = vrcp.pop %v447
        %v456 = vrcp.pop %v448
        %v457 = vrcp.pop %v449
        %v458 = vrcp.pop %v450
        %v459 = vsub.f32 %v413, %v389
        %v460 = vsub.f32 %v416, %v392
        %v461 = vsub.f32 %v419, %v395
        %v462 = vsub.f32 %v422, %v398
        %v463 = vsub.f32 %v425, %v401
        %v464 = vsub.f32 %v428, %v404
        %v465 = vsub.f32 %v431, %v407
        %v466 = vsub.f32 %v434, %v410
        %v467 = vadd.f32 %v459, 1e-06
        %v468 = vadd.f32 %v460, 1e-06
        %v469 = vadd.f32 %v461, 1e-06
        %v470 = vadd.f32 %v462, 1e-06
        %v471 = vadd.f32 %v463, 1e-06
        %v472 = vadd.f32 %v464, 1e-06
        %v473 = vadd.f32 %v465, 1e-06
        %v474 = vadd.f32 %v466, 1e-06
        %v475 = vrcp.pop %v467
        %v476 = vrcp.pop %v468
        %v477 = vrcp.pop %v469
        %v478 = vrcp.pop %v470
        %v479 = vrcp.pop %v471
        %v480 = vrcp.pop %v472
        %v481 = vrcp.pop %v473
        %v482 = vrcp.pop %v474
        %v483 = vlaneseq
        %v484 = vand.u32 %v483, 127
        %vm485 = vcmp.lt.s32.totalorder %v484, 17
        %vm486 = vcmp.lt.s32.totalorder %v484, 34
        %v487 = vsel %vm486, %v389, 0.0
        %v488 = vsel %vm486, %v392, 0.0
        %v489 = vsel %vm486, %v395, 0.0
        %v490 = vsel %vm486, %v398, 0.0
        %v491 = vsel %vm486, %v401, 0.0
        %v492 = vsel %vm486, %v404, 0.0
        %v493 = vsel %vm486, %v407, 0.0
        %v494 = vsel %vm486, %v410, 0.0
        %v495 = vsel %vm485, %v340, %v487
        %v496 = vsel %vm485, %v343, %v488
        %v497 = vsel %vm485, %v346, %v489
        %v498 = vsel %vm485, %v349, %v490
        %v499 = vsel %vm485, %v352, %v491
        %v500 = vsel %vm485, %v355, %v492
        %v501 = vsel %vm485, %v358, %v493
        %v502 = vsel %vm485, %v361, %v494
        %vm503 = vcmp.lt.s32.totalorder %v484, 51
        %v504 = vsel %vm503, 1.0, 0.0
        %v505 = vsel %vm486, %v475, %v504
        %v506 = vsel %vm486, %v476, %v504
        %v507 = vsel %vm486, %v477, %v504
        %v508 = vsel %vm486, %v478, %v504
        %v509 = vsel %vm486, %v479, %v504
        %v510 = vsel %vm486, %v480, %v504
        %v511 = vsel %vm486, %v481, %v504
        %v512 = vsel %vm486, %v482, %v504
        %v513 = vsel %vm485, %v451, %v505
        %v514 = vsel %vm485, %v452, %v506
        %v515 = vsel %vm485, %v453, %v507
        %v516 = vsel %vm485, %v454, %v508
        %v517 = vsel %vm485, %v455, %v509
        %v518 = vsel %vm485, %v456, %v510
        %v519 = vsel %vm485, %v457, %v511
        %v520 = vsel %vm485, %v458, %v512
        %v521 = vsub.f32 %v329, %v495
        %v522 = vsub.f32 %v330, %v496
        %v523 = vsub.f32 %v331, %v497
        %v524 = vsub.f32 %v332, %v498
        %v525 = vsub.f32 %v333, %v499
        %v526 = vsub.f32 %v334, %v500
        %v527 = vsub.f32 %v335, %v501
        %v528 = vsub.f32 %v336, %v502
        %v529 = vmul.f32 %v521, %v513
        %v530 = vmul.f32 %v522, %v514
        %v531 = vmul.f32 %v523, %v515
        %v532 = vmul.f32 %v524, %v516
        %v533 = vmul.f32 %v525, %v517
        %v534 = vmul.f32 %v526, %v518
        %v535 = vmul.f32 %v527, %v519
        %v536 = vmul.f32 %v528, %v520
        %v537 = vpack.c.bf16 %v530, %v529
        %v538 = vpack.c.bf16 %v532, %v531
        %v539 = vpack.c.bf16 %v534, %v533
        %v540 = vpack.c.bf16 %v536, %v535
        %v541 = vld [vmem:[#allocation3] sm:$0xff]
        %v542 = vld [vmem:[#allocation3 + $0x8] sm:$0xff]
        %v543 = vld [vmem:[#allocation3 + $0x10] sm:$0xff]
        %v544 = vld [vmem:[#allocation3 + $0x18] sm:$0xff]
        %v545 = vld [vmem:[#allocation3 + $0x20] sm:$0xff]
        %v546 = vld [vmem:[#allocation3 + $0x28] sm:$0xff]
        %v547 = vld [vmem:[#allocation3 + $0x30] sm:$0xff]
        %v548 = vld [vmem:[#allocation3 + $0x38] sm:$0xff]
        %v549 = vld [vmem:[#allocation3 + $0x40] sm:$0xff]
        %v550 = vld [vmem:[#allocation3 + $0x48] sm:$0xff]
        %v551 = vld [vmem:[#allocation3 + $0x50] sm:$0xff]
        %v552 = vld [vmem:[#allocation3 + $0x58] sm:$0xff]
        %v553 = vld [vmem:[#allocation3 + $0x60] sm:$0xff]
        %v554 = vld [vmem:[#allocation3 + $0x68] sm:$0xff]
        %v555 = vld [vmem:[#allocation3 + $0x70] sm:$0xff]
        %v556 = vld [vmem:[#allocation3 + $0x78] sm:$0xff]
        %v557 = vld [vmem:[#allocation3 + $0x80] sm:$0xff]
        %v558 = vld [vmem:[#allocation3 + $0x88] sm:$0xff]
        %v559 = vld [vmem:[#allocation3 + $0x90] sm:$0xff]
        %v560 = vld [vmem:[#allocation3 + $0x98] sm:$0xff]
        %v561 = vld [vmem:[#allocation3 + $0xa0] sm:$0xff]
        %v562 = vld [vmem:[#allocation3 + $0xa8] sm:$0xff]
        %v563 = vld [vmem:[#allocation3 + $0xb0] sm:$0xff]
        %v564 = vld [vmem:[#allocation3 + $0xb8] sm:$0xff]
        %v565 = vld [vmem:[#allocation3 + $0xc0] sm:$0xff]
        %v566 = vld [vmem:[#allocation3 + $0xc8] sm:$0xff]
        %v567 = vld [vmem:[#allocation3 + $0xd0] sm:$0xff]
        %v568 = vld [vmem:[#allocation3 + $0xd8] sm:$0xff]
        %v569 = vld [vmem:[#allocation3 + $0xe0] sm:$0xff]
        %v570 = vld [vmem:[#allocation3 + $0xe8] sm:$0xff]
        %v571 = vld [vmem:[#allocation3 + $0xf0] sm:$0xff]
        %v572 = vld [vmem:[#allocation3 + $0xf8] sm:$0xff]
        %v573 = vld [vmem:[#allocation3 + $0x100] sm:$0xff]
        %v574 = vld [vmem:[#allocation3 + $0x108] sm:$0xff]
        %v575 = vld [vmem:[#allocation3 + $0x110] sm:$0xff]
        %v576 = vld [vmem:[#allocation3 + $0x118] sm:$0xff]
        %v577 = vld [vmem:[#allocation3 + $0x120] sm:$0xff]
        %v578 = vld [vmem:[#allocation3 + $0x128] sm:$0xff]
        %v579 = vld [vmem:[#allocation3 + $0x130] sm:$0xff]
        %v580 = vld [vmem:[#allocation3 + $0x138] sm:$0xff]
        %v581 = vld [vmem:[#allocation3 + $0x140] sm:$0xff]
        %v582 = vld [vmem:[#allocation3 + $0x148] sm:$0xff]
        %v583 = vld [vmem:[#allocation3 + $0x150] sm:$0xff]
        %v584 = vld [vmem:[#allocation3 + $0x158] sm:$0xff]
        %v585 = vld [vmem:[#allocation3 + $0x160] sm:$0xff]
        %v586 = vld [vmem:[#allocation3 + $0x168] sm:$0xff]
        %v587 = vld [vmem:[#allocation3 + $0x170] sm:$0xff]
        %v588 = vld [vmem:[#allocation3 + $0x178] sm:$0xff]
        %v589 = vld [vmem:[#allocation3 + $0x180] sm:$0xff]
        %v590 = vld [vmem:[#allocation3 + $0x188] sm:$0xff]
        %v591 = vld [vmem:[#allocation3 + $0x190] sm:$0xff]
        %v592 = vld [vmem:[#allocation3 + $0x198] sm:$0xff]
        %v593 = vld [vmem:[#allocation3 + $0x1a0] sm:$0xff]
        %v594 = vld [vmem:[#allocation3 + $0x1a8] sm:$0xff]
        %v595 = vld [vmem:[#allocation3 + $0x1b0] sm:$0xff]
        %v596 = vld [vmem:[#allocation3 + $0x1b8] sm:$0xff]
        %v653 = vunpack.c.l.b16 %v541
        %v654 = vunpack.c.h.b16 %v541
        %v655 = vunpack.c.l.b16 %v542
        %v656 = vunpack.c.h.b16 %v542
        %v657 = vunpack.c.l.b16 %v543
        %v658 = vunpack.c.h.b16 %v543
        %v659 = vunpack.c.l.b16 %v544
        %v660 = vunpack.c.h.b16 %v544
        %v661 = vunpack.c.l.b16 %v545
        %v662 = vunpack.c.h.b16 %v545
        %v663 = vunpack.c.l.b16 %v546
        %v664 = vunpack.c.h.b16 %v546
        %v665 = vunpack.c.l.b16 %v547
        %v666 = vunpack.c.h.b16 %v547
        %v667 = vunpack.c.l.b16 %v548
        %v668 = vunpack.c.h.b16 %v548
        %v669 = vunpack.c.l.b16 %v549
        %v670 = vunpack.c.h.b16 %v549
        %v671 = vunpack.c.l.b16 %v550
        %v672 = vunpack.c.h.b16 %v550
        %v673 = vunpack.c.l.b16 %v551
        %v674 = vunpack.c.h.b16 %v551
        %v675 = vunpack.c.l.b16 %v552
        %v676 = vunpack.c.h.b16 %v552
        %v677 = vunpack.c.l.b16 %v553
        %v678 = vunpack.c.h.b16 %v553
        %v679 = vunpack.c.l.b16 %v554
        %v680 = vunpack.c.h.b16 %v554
        %v681 = vunpack.c.l.b16 %v555
        %v682 = vunpack.c.h.b16 %v555
        %v683 = vunpack.c.l.b16 %v556
        %v684 = vunpack.c.h.b16 %v556
        %v685 = vunpack.c.l.b16 %v557
        %v686 = vunpack.c.h.b16 %v557
        %v687 = vunpack.c.l.b16 %v558
        %v688 = vunpack.c.h.b16 %v558
        %v689 = vunpack.c.l.b16 %v559
        %v690 = vunpack.c.h.b16 %v559
        %v691 = vunpack.c.l.b16 %v560
        %v692 = vunpack.c.h.b16 %v560
        %v693 = vunpack.c.l.b16 %v561
        %v694 = vunpack.c.h.b16 %v561
        %v695 = vunpack.c.l.b16 %v562
        %v696 = vunpack.c.h.b16 %v562
        %v697 = vunpack.c.l.b16 %v563
        %v698 = vunpack.c.h.b16 %v563
        %v699 = vunpack.c.l.b16 %v564
        %v700 = vunpack.c.h.b16 %v564
        %v701 = vunpack.c.l.b16 %v565
        %v702 = vunpack.c.h.b16 %v565
        %v703 = vunpack.c.l.b16 %v566
        %v704 = vunpack.c.h.b16 %v566
        %v705 = vunpack.c.l.b16 %v567
        %v706 = vunpack.c.h.b16 %v567
        %v707 = vunpack.c.l.b16 %v568
        %v708 = vunpack.c.h.b16 %v568
        %v709 = vunpack.c.l.b16 %v569
        %v710 = vunpack.c.h.b16 %v569
        %v711 = vunpack.c.l.b16 %v570
        %v712 = vunpack.c.h.b16 %v570
        %v713 = vunpack.c.l.b16 %v571
        %v714 = vunpack.c.h.b16 %v571
        %v715 = vunpack.c.l.b16 %v572
        %v716 = vunpack.c.h.b16 %v572
        %v717 = vunpack.c.l.b16 %v573
        %v718 = vunpack.c.h.b16 %v573
        %v719 = vunpack.c.l.b16 %v574
        %v720 = vunpack.c.h.b16 %v574
        %v721 = vunpack.c.l.b16 %v575
        %v722 = vunpack.c.h.b16 %v575
        %v723 = vunpack.c.l.b16 %v576
        %v724 = vunpack.c.h.b16 %v576
        %v725 = vunpack.c.l.b16 %v577
        %v726 = vunpack.c.h.b16 %v577
        %v727 = vunpack.c.l.b16 %v578
        %v728 = vunpack.c.h.b16 %v578
        %v729 = vunpack.c.l.b16 %v579
        %v730 = vunpack.c.h.b16 %v579
        %v731 = vunpack.c.l.b16 %v580
        %v732 = vunpack.c.h.b16 %v580
        %v733 = vunpack.c.l.b16 %v581
        %v734 = vunpack.c.h.b16 %v581
        %v735 = vunpack.c.l.b16 %v582
        %v736 = vunpack.c.h.b16 %v582
        %v737 = vunpack.c.l.b16 %v583
        %v738 = vunpack.c.h.b16 %v583
        %v739 = vunpack.c.l.b16 %v584
        %v740 = vunpack.c.h.b16 %v584
        %v741 = vunpack.c.l.b16 %v585
        %v742 = vunpack.c.h.b16 %v585
        %v743 = vunpack.c.l.b16 %v586
        %v744 = vunpack.c.h.b16 %v586
        %v745 = vunpack.c.l.b16 %v587
        %v746 = vunpack.c.h.b16 %v587
        %v747 = vunpack.c.l.b16 %v588
        %v748 = vunpack.c.h.b16 %v588
        %v749 = vunpack.c.l.b16 %v589
        %v750 = vunpack.c.h.b16 %v589
        %v751 = vunpack.c.l.b16 %v590
        %v752 = vunpack.c.h.b16 %v590
        %v753 = vunpack.c.l.b16 %v591
        %v754 = vunpack.c.h.b16 %v591
        %v755 = vunpack.c.l.b16 %v592
        %v756 = vunpack.c.h.b16 %v592
        %v757 = vunpack.c.l.b16 %v593
        %v758 = vunpack.c.h.b16 %v593
        %v759 = vunpack.c.l.b16 %v594
        %v760 = vunpack.c.h.b16 %v594
        %v761 = vunpack.c.l.b16 %v595
        %v762 = vunpack.c.h.b16 %v595
        %v763 = vunpack.c.l.b16 %v596
        %v764 = vunpack.c.h.b16 %v596
        %v765 = vpack.c.b16 %v667, %v653
        %v766 = vpack.c.b16 %v668, %v654
        %v767 = vpack.c.b16 %v669, %v655
        %v768 = vpack.c.b16 %v670, %v656
        %v769 = vpack.c.b16 %v671, %v657
        %v770 = vpack.c.b16 %v672, %v658
        %v771 = vpack.c.b16 %v673, %v659
        %v772 = vpack.c.b16 %v674, %v660
        %v773 = vpack.c.b16 %v675, %v661
        %v774 = vpack.c.b16 %v676, %v662
        %v775 = vpack.c.b16 %v677, %v663
        %v776 = vpack.c.b16 %v678, %v664
        %v777 = vpack.c.b16 %v679, %v665
        %v778 = vpack.c.b16 %v680, %v666
        %v779 = vpack.c.b16 %v695, %v681
        %v780 = vpack.c.b16 %v696, %v682
        %v781 = vpack.c.b16 %v697, %v683
        %v782 = vpack.c.b16 %v698, %v684
        %v783 = vpack.c.b16 %v699, %v685
        %v784 = vpack.c.b16 %v700, %v686
        %v785 = vpack.c.b16 %v701, %v687
        %v786 = vpack.c.b16 %v702, %v688
        %v787 = vpack.c.b16 %v703, %v689
        %v788 = vpack.c.b16 %v704, %v690
        %v789 = vpack.c.b16 %v705, %v691
        %v790 = vpack.c.b16 %v706, %v692
        %v791 = vpack.c.b16 %v707, %v693
        %v792 = vpack.c.b16 %v708, %v694
        %v793 = vpack.c.b16 %v723, %v709
        %v794 = vpack.c.b16 %v724, %v710
        %v795 = vpack.c.b16 %v725, %v711
        %v796 = vpack.c.b16 %v726, %v712
        %v797 = vpack.c.b16 %v727, %v713
        %v798 = vpack.c.b16 %v728, %v714
        %v799 = vpack.c.b16 %v729, %v715
        %v800 = vpack.c.b16 %v730, %v716
        %v801 = vpack.c.b16 %v731, %v717
        %v802 = vpack.c.b16 %v732, %v718
        %v803 = vpack.c.b16 %v733, %v719
        %v804 = vpack.c.b16 %v734, %v720
        %v805 = vpack.c.b16 %v735, %v721
        %v806 = vpack.c.b16 %v736, %v722
        %v807 = vpack.c.b16 %v751, %v737
        %v808 = vpack.c.b16 %v752, %v738
        %v809 = vpack.c.b16 %v753, %v739
        %v810 = vpack.c.b16 %v754, %v740
        %v811 = vpack.c.b16 %v755, %v741
        %v812 = vpack.c.b16 %v756, %v742
        %v813 = vpack.c.b16 %v757, %v743
        %v814 = vpack.c.b16 %v758, %v744
        %v815 = vpack.c.b16 %v759, %v745
        %v816 = vpack.c.b16 %v760, %v746
        %v817 = vpack.c.b16 %v761, %v747
        %v818 = vpack.c.b16 %v762, %v748
        %v819 = vpack.c.b16 %v763, %v749
        %v820 = vpack.c.b16 %v764, %v750
        %vm877 = vcmask 523264
        %v879 = vsel %vm877, %v537, 0
        %v882 = vsel %vm877, %v538, 0
        %v885 = vsel %vm877, %v539, 0
        %v888 = vsel %vm877, %v540, 0
        %890 = vmatpush.bf16.msra.mxu0 0
        %891 = vmatpush.bf16.msra.mxu0 0
        %892 = vmatpush.bf16.msra.mxu0 0
        %893 = vmatpush.bf16.msra.mxu0 0
        %894 = vmatpush.bf16.msra.mxu0 %v807
        %895 = vmatpush.bf16.msra.mxu0 %v793
        %896 = vmatpush.bf16.msra.mxu0 %v779
        %897 = vmatpush.bf16.msra.mxu0 %v765
        %898 = vmatmul.bf16.gmra.mxu0 %v879
        %v899 = vpop.f32.mrf.mxu0
        %v900 = vadd.f32 0.0, %v899
        %v901 = vpop.f32.mrf.mxu0
        %v902 = vadd.f32 0.0, %v901
        %903 = vmatmul.bf16.gmra.mxu0 %v882
        %v904 = vpop.f32.mrf.mxu0
        %v905 = vadd.f32 0.0, %v904
        %v906 = vpop.f32.mrf.mxu0
        %v907 = vadd.f32 0.0, %v906
        %908 = vmatmul.bf16.gmra.mxu0 %v885
        %v909 = vpop.f32.mrf.mxu0
        %v910 = vadd.f32 0.0, %v909
        %v911 = vpop.f32.mrf.mxu0
        %v912 = vadd.f32 0.0, %v911
        %913 = vmatmul.bf16.gmra.mxu0 %v888
        %v914 = vpop.f32.mrf.mxu0
        %v915 = vadd.f32 0.0, %v914
        %v916 = vpop.f32.mrf.mxu0
        %v917 = vadd.f32 0.0, %v916
        %918 = vdwg.mxu0
        %919 = vmatpush.bf16.msra.mxu0 0
        %920 = vmatpush.bf16.msra.mxu0 0
        %921 = vmatpush.bf16.msra.mxu0 0
        %922 = vmatpush.bf16.msra.mxu0 0
        %923 = vmatpush.bf16.msra.mxu0 %v808
        %924 = vmatpush.bf16.msra.mxu0 %v794
        %925 = vmatpush.bf16.msra.mxu0 %v780
        %926 = vmatpush.bf16.msra.mxu0 %v766
        %927 = vmatmul.bf16.gmra.mxu0 %v879
        %v928 = vpop.f32.mrf.mxu0
        %v929 = vadd.f32 0.0, %v928
        %v930 = vpop.f32.mrf.mxu0
        %v931 = vadd.f32 0.0, %v930
        %932 = vmatmul.bf16.gmra.mxu0 %v882
        %v933 = vpop.f32.mrf.mxu0
        %v934 = vadd.f32 0.0, %v933
        %v935 = vpop.f32.mrf.mxu0
        %v936 = vadd.f32 0.0, %v935
        %937 = vmatmul.bf16.gmra.mxu0 %v885
        %v938 = vpop.f32.mrf.mxu0
        %v939 = vadd.f32 0.0, %v938
        %v940 = vpop.f32.mrf.mxu0
        %v941 = vadd.f32 0.0, %v940
        %942 = vmatmul.bf16.gmra.mxu0 %v888
        %v943 = vpop.f32.mrf.mxu0
        %v944 = vadd.f32 0.0, %v943
        %v945 = vpop.f32.mrf.mxu0
        %v946 = vadd.f32 0.0, %v945
        %947 = vdwg.mxu0
        %948 = vmatpush.bf16.msra.mxu0 0
        %949 = vmatpush.bf16.msra.mxu0 0
        %950 = vmatpush.bf16.msra.mxu0 0
        %951 = vmatpush.bf16.msra.mxu0 0
        %952 = vmatpush.bf16.msra.mxu0 %v809
        %953 = vmatpush.bf16.msra.mxu0 %v795
        %954 = vmatpush.bf16.msra.mxu0 %v781
        %955 = vmatpush.bf16.msra.mxu0 %v767
        %956 = vmatmul.bf16.gmra.mxu0 %v879
        %v957 = vpop.f32.mrf.mxu0
        %v958 = vadd.f32 0.0, %v957
        %v959 = vpop.f32.mrf.mxu0
        %v960 = vadd.f32 0.0, %v959
        %961 = vmatmul.bf16.gmra.mxu0 %v882
        %v962 = vpop.f32.mrf.mxu0
        %v963 = vadd.f32 0.0, %v962
        %v964 = vpop.f32.mrf.mxu0
        %v965 = vadd.f32 0.0, %v964
        %966 = vmatmul.bf16.gmra.mxu0 %v885
        %v967 = vpop.f32.mrf.mxu0
        %v968 = vadd.f32 0.0, %v967
        %v969 = vpop.f32.mrf.mxu0
        %v970 = vadd.f32 0.0, %v969
        %971 = vmatmul.bf16.gmra.mxu0 %v888
        %v972 = vpop.f32.mrf.mxu0
        %v973 = vadd.f32 0.0, %v972
        %v974 = vpop.f32.mrf.mxu0
        %v975 = vadd.f32 0.0, %v974
        %976 = vdwg.mxu0
        %977 = vmatpush.bf16.msra.mxu0 0
        %978 = vmatpush.bf16.msra.mxu0 0
        %979 = vmatpush.bf16.msra.mxu0 0
        %980 = vmatpush.bf16.msra.mxu0 0
        %981 = vmatpush.bf16.msra.mxu0 %v810
        %982 = vmatpush.bf16.msra.mxu0 %v796
        %983 = vmatpush.bf16.msra.mxu0 %v782
        %984 = vmatpush.bf16.msra.mxu0 %v768
        %985 = vmatmul.bf16.gmra.mxu0 %v879
        %v986 = vpop.f32.mrf.mxu0
        %v987 = vadd.f32 0.0, %v986
        %v988 = vpop.f32.mrf.mxu0
        %v989 = vadd.f32 0.0, %v988
        %990 = vmatmul.bf16.gmra.mxu0 %v882
        %v991 = vpop.f32.mrf.mxu0
        %v992 = vadd.f32 0.0, %v991
        %v993 = vpop.f32.mrf.mxu0
        %v994 = vadd.f32 0.0, %v993
        %995 = vmatmul.bf16.gmra.mxu0 %v885
        %v996 = vpop.f32.mrf.mxu0
        %v997 = vadd.f32 0.0, %v996
        %v998 = vpop.f32.mrf.mxu0
        %v999 = vadd.f32 0.0, %v998
        %1000 = vmatmul.bf16.gmra.mxu0 %v888
        %v1001 = vpop.f32.mrf.mxu0
        %v1002 = vadd.f32 0.0, %v1001
        %v1003 = vpop.f32.mrf.mxu0
        %v1004 = vadd.f32 0.0, %v1003
        %1005 = vdwg.mxu0
        %1006 = vmatpush.bf16.msra.mxu0 0
        %1007 = vmatpush.bf16.msra.mxu0 0
        %1008 = vmatpush.bf16.msra.mxu0 0
        %1009 = vmatpush.bf16.msra.mxu0 0
        %1010 = vmatpush.bf16.msra.mxu0 %v811
        %1011 = vmatpush.bf16.msra.mxu0 %v797
        %1012 = vmatpush.bf16.msra.mxu0 %v783
        %1013 = vmatpush.bf16.msra.mxu0 %v769
        %1014 = vmatmul.bf16.gmra.mxu0 %v879
        %v1015 = vpop.f32.mrf.mxu0
        %v1016 = vadd.f32 0.0, %v1015
        %v1017 = vpop.f32.mrf.mxu0
        %v1018 = vadd.f32 0.0, %v1017
        %1019 = vmatmul.bf16.gmra.mxu0 %v882
        %v1020 = vpop.f32.mrf.mxu0
        %v1021 = vadd.f32 0.0, %v1020
        %v1022 = vpop.f32.mrf.mxu0
        %v1023 = vadd.f32 0.0, %v1022
        %1024 = vmatmul.bf16.gmra.mxu0 %v885
        %v1025 = vpop.f32.mrf.mxu0
        %v1026 = vadd.f32 0.0, %v1025
        %v1027 = vpop.f32.mrf.mxu0
        %v1028 = vadd.f32 0.0, %v1027
        %1029 = vmatmul.bf16.gmra.mxu0 %v888
        %v1030 = vpop.f32.mrf.mxu0
        %v1031 = vadd.f32 0.0, %v1030
        %v1032 = vpop.f32.mrf.mxu0
        %v1033 = vadd.f32 0.0, %v1032
        %1034 = vdwg.mxu0
        %1035 = vmatpush.bf16.msra.mxu0 0
        %1036 = vmatpush.bf16.msra.mxu0 0
        %1037 = vmatpush.bf16.msra.mxu0 0
        %1038 = vmatpush.bf16.msra.mxu0 0
        %1039 = vmatpush.bf16.msra.mxu0 %v812
        %1040 = vmatpush.bf16.msra.mxu0 %v798
        %1041 = vmatpush.bf16.msra.mxu0 %v784
        %1042 = vmatpush.bf16.msra.mxu0 %v770
        %1043 = vmatmul.bf16.gmra.mxu0 %v879
        %v1044 = vpop.f32.mrf.mxu0
        %v1045 = vadd.f32 0.0, %v1044
        %v1046 = vpop.f32.mrf.mxu0
        %v1047 = vadd.f32 0.0, %v1046
        %1048 = vmatmul.bf16.gmra.mxu0 %v882
        %v1049 = vpop.f32.mrf.mxu0
        %v1050 = vadd.f32 0.0, %v1049
        %v1051 = vpop.f32.mrf.mxu0
        %v1052 = vadd.f32 0.0, %v1051
        %1053 = vmatmul.bf16.gmra.mxu0 %v885
        %v1054 = vpop.f32.mrf.mxu0
        %v1055 = vadd.f32 0.0, %v1054
        %v1056 = vpop.f32.mrf.mxu0
        %v1057 = vadd.f32 0.0, %v1056
        %1058 = vmatmul.bf16.gmra.mxu0 %v888
        %v1059 = vpop.f32.mrf.mxu0
        %v1060 = vadd.f32 0.0, %v1059
        %v1061 = vpop.f32.mrf.mxu0
        %v1062 = vadd.f32 0.0, %v1061
        %1063 = vdwg.mxu0
        %1064 = vmatpush.bf16.msra.mxu0 0
        %1065 = vmatpush.bf16.msra.mxu0 0
        %1066 = vmatpush.bf16.msra.mxu0 0
        %1067 = vmatpush.bf16.msra.mxu0 0
        %1068 = vmatpush.bf16.msra.mxu0 %v813
        %1069 = vmatpush.bf16.msra.mxu0 %v799
        %1070 = vmatpush.bf16.msra.mxu0 %v785
        %1071 = vmatpush.bf16.msra.mxu0 %v771
        %1072 = vmatmul.bf16.gmra.mxu0 %v879
        %v1073 = vpop.f32.mrf.mxu0
        %v1074 = vadd.f32 0.0, %v1073
        %v1075 = vpop.f32.mrf.mxu0
        %v1076 = vadd.f32 0.0, %v1075
        %1077 = vmatmul.bf16.gmra.mxu0 %v882
        %v1078 = vpop.f32.mrf.mxu0
        %v1079 = vadd.f32 0.0, %v1078
        %v1080 = vpop.f32.mrf.mxu0
        %v1081 = vadd.f32 0.0, %v1080
        %1082 = vmatmul.bf16.gmra.mxu0 %v885
        %v1083 = vpop.f32.mrf.mxu0
        %v1084 = vadd.f32 0.0, %v1083
        %v1085 = vpop.f32.mrf.mxu0
        %v1086 = vadd.f32 0.0, %v1085
        %1087 = vmatmul.bf16.gmra.mxu0 %v888
        %v1088 = vpop.f32.mrf.mxu0
        %v1089 = vadd.f32 0.0, %v1088
        %v1090 = vpop.f32.mrf.mxu0
        %v1091 = vadd.f32 0.0, %v1090
        %1092 = vdwg.mxu0
        %1093 = vmatpush.bf16.msra.mxu0 0
        %1094 = vmatpush.bf16.msra.mxu0 0
        %1095 = vmatpush.bf16.msra.mxu0 0
        %1096 = vmatpush.bf16.msra.mxu0 0
        %1097 = vmatpush.bf16.msra.mxu0 %v814
        %1098 = vmatpush.bf16.msra.mxu0 %v800
        %1099 = vmatpush.bf16.msra.mxu0 %v786
        %1100 = vmatpush.bf16.msra.mxu0 %v772
        %1101 = vmatmul.bf16.gmra.mxu0 %v879
        %v1102 = vpop.f32.mrf.mxu0
        %v1103 = vadd.f32 0.0, %v1102
        %v1104 = vpop.f32.mrf.mxu0
        %v1105 = vadd.f32 0.0, %v1104
        %1106 = vmatmul.bf16.gmra.mxu0 %v882
        %v1107 = vpop.f32.mrf.mxu0
        %v1108 = vadd.f32 0.0, %v1107
        %v1109 = vpop.f32.mrf.mxu0
        %v1110 = vadd.f32 0.0, %v1109
        %1111 = vmatmul.bf16.gmra.mxu0 %v885
        %v1112 = vpop.f32.mrf.mxu0
        %v1113 = vadd.f32 0.0, %v1112
        %v1114 = vpop.f32.mrf.mxu0
        %v1115 = vadd.f32 0.0, %v1114
        %1116 = vmatmul.bf16.gmra.mxu0 %v888
        %v1117 = vpop.f32.mrf.mxu0
        %v1118 = vadd.f32 0.0, %v1117
        %v1119 = vpop.f32.mrf.mxu0
        %v1120 = vadd.f32 0.0, %v1119
        %1121 = vdwg.mxu0
        %1122 = vmatpush.bf16.msra.mxu0 0
        %1123 = vmatpush.bf16.msra.mxu0 0
        %1124 = vmatpush.bf16.msra.mxu0 0
        %1125 = vmatpush.bf16.msra.mxu0 0
        %1126 = vmatpush.bf16.msra.mxu0 %v815
        %1127 = vmatpush.bf16.msra.mxu0 %v801
        %1128 = vmatpush.bf16.msra.mxu0 %v787
        %1129 = vmatpush.bf16.msra.mxu0 %v773
        %1130 = vmatmul.bf16.gmra.mxu0 %v879
        %v1131 = vpop.f32.mrf.mxu0
        %v1132 = vadd.f32 0.0, %v1131
        %v1133 = vpop.f32.mrf.mxu0
        %v1134 = vadd.f32 0.0, %v1133
        %1135 = vmatmul.bf16.gmra.mxu0 %v882
        %v1136 = vpop.f32.mrf.mxu0
        %v1137 = vadd.f32 0.0, %v1136
        %v1138 = vpop.f32.mrf.mxu0
        %v1139 = vadd.f32 0.0, %v1138
        %1140 = vmatmul.bf16.gmra.mxu0 %v885
        %v1141 = vpop.f32.mrf.mxu0
        %v1142 = vadd.f32 0.0, %v1141
        %v1143 = vpop.f32.mrf.mxu0
        %v1144 = vadd.f32 0.0, %v1143
        %1145 = vmatmul.bf16.gmra.mxu0 %v888
        %v1146 = vpop.f32.mrf.mxu0
        %v1147 = vadd.f32 0.0, %v1146
        %v1148 = vpop.f32.mrf.mxu0
        %v1149 = vadd.f32 0.0, %v1148
        %1150 = vdwg.mxu0
        %1151 = vmatpush.bf16.msra.mxu0 0
        %1152 = vmatpush.bf16.msra.mxu0 0
        %1153 = vmatpush.bf16.msra.mxu0 0
        %1154 = vmatpush.bf16.msra.mxu0 0
        %1155 = vmatpush.bf16.msra.mxu0 %v816
        %1156 = vmatpush.bf16.msra.mxu0 %v802
        %1157 = vmatpush.bf16.msra.mxu0 %v788
        %1158 = vmatpush.bf16.msra.mxu0 %v774
        %1159 = vmatmul.bf16.gmra.mxu0 %v879
        %v1160 = vpop.f32.mrf.mxu0
        %v1161 = vadd.f32 0.0, %v1160
        %v1162 = vpop.f32.mrf.mxu0
        %v1163 = vadd.f32 0.0, %v1162
        %1164 = vmatmul.bf16.gmra.mxu0 %v882
        %v1165 = vpop.f32.mrf.mxu0
        %v1166 = vadd.f32 0.0, %v1165
        %v1167 = vpop.f32.mrf.mxu0
        %v1168 = vadd.f32 0.0, %v1167
        %1169 = vmatmul.bf16.gmra.mxu0 %v885
        %v1170 = vpop.f32.mrf.mxu0
        %v1171 = vadd.f32 0.0, %v1170
        %v1172 = vpop.f32.mrf.mxu0
        %v1173 = vadd.f32 0.0, %v1172
        %1174 = vmatmul.bf16.gmra.mxu0 %v888
        %v1175 = vpop.f32.mrf.mxu0
        %v1176 = vadd.f32 0.0, %v1175
        %v1177 = vpop.f32.mrf.mxu0
        %v1178 = vadd.f32 0.0, %v1177
        %1179 = vdwg.mxu0
        %1180 = vmatpush.bf16.msra.mxu0 0
        %1181 = vmatpush.bf16.msra.mxu0 0
        %1182 = vmatpush.bf16.msra.mxu0 0
        %1183 = vmatpush.bf16.msra.mxu0 0
        %1184 = vmatpush.bf16.msra.mxu0 %v817
        %1185 = vmatpush.bf16.msra.mxu0 %v803
        %1186 = vmatpush.bf16.msra.mxu0 %v789
        %1187 = vmatpush.bf16.msra.mxu0 %v775
        %1188 = vmatmul.bf16.gmra.mxu0 %v879
        %v1189 = vpop.f32.mrf.mxu0
        %v1190 = vadd.f32 0.0, %v1189
        %v1191 = vpop.f32.mrf.mxu0
        %v1192 = vadd.f32 0.0, %v1191
        %1193 = vmatmul.bf16.gmra.mxu0 %v882
        %v1194 = vpop.f32.mrf.mxu0
        %v1195 = vadd.f32 0.0, %v1194
        %v1196 = vpop.f32.mrf.mxu0
        %v1197 = vadd.f32 0.0, %v1196
        %1198 = vmatmul.bf16.gmra.mxu0 %v885
        %v1199 = vpop.f32.mrf.mxu0
        %v1200 = vadd.f32 0.0, %v1199
        %v1201 = vpop.f32.mrf.mxu0
        %v1202 = vadd.f32 0.0, %v1201
        %1203 = vmatmul.bf16.gmra.mxu0 %v888
        %v1204 = vpop.f32.mrf.mxu0
        %v1205 = vadd.f32 0.0, %v1204
        %v1206 = vpop.f32.mrf.mxu0
        %v1207 = vadd.f32 0.0, %v1206
        %1208 = vdwg.mxu0
        %1209 = vmatpush.bf16.msra.mxu0 0
        %1210 = vmatpush.bf16.msra.mxu0 0
        %1211 = vmatpush.bf16.msra.mxu0 0
        %1212 = vmatpush.bf16.msra.mxu0 0
        %1213 = vmatpush.bf16.msra.mxu0 %v818
        %1214 = vmatpush.bf16.msra.mxu0 %v804
        %1215 = vmatpush.bf16.msra.mxu0 %v790
        %1216 = vmatpush.bf16.msra.mxu0 %v776
        %1217 = vmatmul.bf16.gmra.mxu0 %v879
        %v1218 = vpop.f32.mrf.mxu0
        %v1219 = vadd.f32 0.0, %v1218
        %v1220 = vpop.f32.mrf.mxu0
        %v1221 = vadd.f32 0.0, %v1220
        %1222 = vmatmul.bf16.gmra.mxu0 %v882
        %v1223 = vpop.f32.mrf.mxu0
        %v1224 = vadd.f32 0.0, %v1223
        %v1225 = vpop.f32.mrf.mxu0
        %v1226 = vadd.f32 0.0, %v1225
        %1227 = vmatmul.bf16.gmra.mxu0 %v885
        %v1228 = vpop.f32.mrf.mxu0
        %v1229 = vadd.f32 0.0, %v1228
        %v1230 = vpop.f32.mrf.mxu0
        %v1231 = vadd.f32 0.0, %v1230
        %1232 = vmatmul.bf16.gmra.mxu0 %v888
        %v1233 = vpop.f32.mrf.mxu0
        %v1234 = vadd.f32 0.0, %v1233
        %v1235 = vpop.f32.mrf.mxu0
        %v1236 = vadd.f32 0.0, %v1235
        %1237 = vdwg.mxu0
        %1238 = vmatpush.bf16.msra.mxu0 0
        %1239 = vmatpush.bf16.msra.mxu0 0
        %1240 = vmatpush.bf16.msra.mxu0 0
        %1241 = vmatpush.bf16.msra.mxu0 0
        %1242 = vmatpush.bf16.msra.mxu0 %v819
        %1243 = vmatpush.bf16.msra.mxu0 %v805
        %1244 = vmatpush.bf16.msra.mxu0 %v791
        %1245 = vmatpush.bf16.msra.mxu0 %v777
        %1246 = vmatmul.bf16.gmra.mxu0 %v879
        %v1247 = vpop.f32.mrf.mxu0
        %v1248 = vadd.f32 0.0, %v1247
        %v1249 = vpop.f32.mrf.mxu0
        %v1250 = vadd.f32 0.0, %v1249
        %1251 = vmatmul.bf16.gmra.mxu0 %v882
        %v1252 = vpop.f32.mrf.mxu0
        %v1253 = vadd.f32 0.0, %v1252
        %v1254 = vpop.f32.mrf.mxu0
        %v1255 = vadd.f32 0.0, %v1254
        %1256 = vmatmul.bf16.gmra.mxu0 %v885
        %v1257 = vpop.f32.mrf.mxu0
        %v1258 = vadd.f32 0.0, %v1257
        %v1259 = vpop.f32.mrf.mxu0
        %v1260 = vadd.f32 0.0, %v1259
        %1261 = vmatmul.bf16.gmra.mxu0 %v888
        %v1262 = vpop.f32.mrf.mxu0
        %v1263 = vadd.f32 0.0, %v1262
        %v1264 = vpop.f32.mrf.mxu0
        %v1265 = vadd.f32 0.0, %v1264
        %1266 = vdwg.mxu0
        %1267 = vmatpush.bf16.msra.mxu0 0
        %1268 = vmatpush.bf16.msra.mxu0 0
        %1269 = vmatpush.bf16.msra.mxu0 0
        %1270 = vmatpush.bf16.msra.mxu0 0
        %1271 = vmatpush.bf16.msra.mxu0 %v820
        %1272 = vmatpush.bf16.msra.mxu0 %v806
        %1273 = vmatpush.bf16.msra.mxu0 %v792
        %1274 = vmatpush.bf16.msra.mxu0 %v778
        %1275 = vmatmul.bf16.gmra.mxu0 %v879
        %v1276 = vpop.f32.mrf.mxu0
        %v1277 = vadd.f32 0.0, %v1276
        %v1278 = vpop.f32.mrf.mxu0
        %v1279 = vadd.f32 0.0, %v1278
        %1280 = vmatmul.bf16.gmra.mxu0 %v882
        %v1281 = vpop.f32.mrf.mxu0
        %v1282 = vadd.f32 0.0, %v1281
        %v1283 = vpop.f32.mrf.mxu0
        %v1284 = vadd.f32 0.0, %v1283
        %1285 = vmatmul.bf16.gmra.mxu0 %v885
        %v1286 = vpop.f32.mrf.mxu0
        %v1287 = vadd.f32 0.0, %v1286
        %v1288 = vpop.f32.mrf.mxu0
        %v1289 = vadd.f32 0.0, %v1288
        %1290 = vmatmul.bf16.gmra.mxu0 %v888
        %v1291 = vpop.f32.mrf.mxu0
        %v1292 = vadd.f32 0.0, %v1291
        %v1293 = vpop.f32.mrf.mxu0
        %v1294 = vadd.f32 0.0, %v1293
        %1295 = vdwg.mxu0
        %v1296 = vld [vmem:[#allocation6] sm:$0xff]
        %v1298 = vperm.slane %v1296, 0
        %v1299 = vperm.slane %v1296, 1
        %v1300 = vperm.slane %v1296, 2
        %v1301 = vperm.slane %v1296, 3
        %v1302 = vperm.slane %v1296, 4
        %v1303 = vperm.slane %v1296, 5
        %v1304 = vperm.slane %v1296, 6
        %v1312 = vadd.f32 %v900, %v1298
        %v1313 = vadd.f32 %v929, %v1299
        %v1314 = vadd.f32 %v958, %v1300
        %v1315 = vadd.f32 %v987, %v1301
        %v1316 = vadd.f32 %v1016, %v1302
        %v1317 = vadd.f32 %v1045, %v1303
        %v1318 = vadd.f32 %v1074, %v1304
        %v1319 = vadd.f32 %v902, %v1298
        %v1320 = vadd.f32 %v931, %v1299
        %v1321 = vadd.f32 %v960, %v1300
        %v1322 = vadd.f32 %v989, %v1301
        %v1323 = vadd.f32 %v1018, %v1302
        %v1324 = vadd.f32 %v1047, %v1303
        %v1325 = vadd.f32 %v1076, %v1304
        %v1326 = vadd.f32 %v905, %v1298
        %v1327 = vadd.f32 %v934, %v1299
        %v1328 = vadd.f32 %v963, %v1300
        %v1329 = vadd.f32 %v992, %v1301
        %v1330 = vadd.f32 %v1021, %v1302
        %v1331 = vadd.f32 %v1050, %v1303
        %v1332 = vadd.f32 %v1079, %v1304
        %v1333 = vadd.f32 %v907, %v1298
        %v1334 = vadd.f32 %v936, %v1299
        %v1335 = vadd.f32 %v965, %v1300
        %v1336 = vadd.f32 %v994, %v1301
        %v1337 = vadd.f32 %v1023, %v1302
        %v1338 = vadd.f32 %v1052, %v1303
        %v1339 = vadd.f32 %v1081, %v1304
        %v1340 = vadd.f32 %v910, %v1298
        %v1341 = vadd.f32 %v939, %v1299
        %v1342 = vadd.f32 %v968, %v1300
        %v1343 = vadd.f32 %v997, %v1301
        %v1344 = vadd.f32 %v1026, %v1302
        %v1345 = vadd.f32 %v1055, %v1303
        %v1346 = vadd.f32 %v1084, %v1304
        %v1347 = vadd.f32 %v912, %v1298
        %v1348 = vadd.f32 %v941, %v1299
        %v1349 = vadd.f32 %v970, %v1300
        %v1350 = vadd.f32 %v999, %v1301
        %v1351 = vadd.f32 %v1028, %v1302
        %v1352 = vadd.f32 %v1057, %v1303
        %v1353 = vadd.f32 %v1086, %v1304
        %v1354 = vadd.f32 %v915, %v1298
        %v1355 = vadd.f32 %v944, %v1299
        %v1356 = vadd.f32 %v973, %v1300
        %v1357 = vadd.f32 %v1002, %v1301
        %v1358 = vadd.f32 %v1031, %v1302
        %v1359 = vadd.f32 %v1060, %v1303
        %v1360 = vadd.f32 %v1089, %v1304
        %v1361 = vadd.f32 %v917, %v1298
        %v1362 = vadd.f32 %v946, %v1299
        %v1363 = vadd.f32 %v975, %v1300
        %v1364 = vadd.f32 %v1004, %v1301
        %v1365 = vadd.f32 %v1033, %v1302
        %v1366 = vadd.f32 %v1062, %v1303
        %v1367 = vadd.f32 %v1091, %v1304
        %v1368 = vmax.f32 %v1312, 0.0
        %v1369 = vmax.f32 %v1313, 0.0
        %v1370 = vmax.f32 %v1314, 0.0
        %v1371 = vmax.f32 %v1315, 0.0
        %v1372 = vmax.f32 %v1316, 0.0
        %v1373 = vmax.f32 %v1317, 0.0
        %v1374 = vmax.f32 %v1318, 0.0
        %v1375 = vmax.f32 %v1319, 0.0
        %v1376 = vmax.f32 %v1320, 0.0
        %v1377 = vmax.f32 %v1321, 0.0
        %v1378 = vmax.f32 %v1322, 0.0
        %v1379 = vmax.f32 %v1323, 0.0
        %v1380 = vmax.f32 %v1324, 0.0
        %v1381 = vmax.f32 %v1325, 0.0
        %v1382 = vmax.f32 %v1326, 0.0
        %v1383 = vmax.f32 %v1327, 0.0
        %v1384 = vmax.f32 %v1328, 0.0
        %v1385 = vmax.f32 %v1329, 0.0
        %v1386 = vmax.f32 %v1330, 0.0
        %v1387 = vmax.f32 %v1331, 0.0
        %v1388 = vmax.f32 %v1332, 0.0
        %v1389 = vmax.f32 %v1333, 0.0
        %v1390 = vmax.f32 %v1334, 0.0
        %v1391 = vmax.f32 %v1335, 0.0
        %v1392 = vmax.f32 %v1336, 0.0
        %v1393 = vmax.f32 %v1337, 0.0
        %v1394 = vmax.f32 %v1338, 0.0
        %v1395 = vmax.f32 %v1339, 0.0
        %v1396 = vmax.f32 %v1340, 0.0
        %v1397 = vmax.f32 %v1341, 0.0
        %v1398 = vmax.f32 %v1342, 0.0
        %v1399 = vmax.f32 %v1343, 0.0
        %v1400 = vmax.f32 %v1344, 0.0
        %v1401 = vmax.f32 %v1345, 0.0
        %v1402 = vmax.f32 %v1346, 0.0
        %v1403 = vmax.f32 %v1347, 0.0
        %v1404 = vmax.f32 %v1348, 0.0
        %v1405 = vmax.f32 %v1349, 0.0
        %v1406 = vmax.f32 %v1350, 0.0
        %v1407 = vmax.f32 %v1351, 0.0
        %v1408 = vmax.f32 %v1352, 0.0
        %v1409 = vmax.f32 %v1353, 0.0
        %v1410 = vmax.f32 %v1354, 0.0
        %v1411 = vmax.f32 %v1355, 0.0
        %v1412 = vmax.f32 %v1356, 0.0
        %v1413 = vmax.f32 %v1357, 0.0
        %v1414 = vmax.f32 %v1358, 0.0
        %v1415 = vmax.f32 %v1359, 0.0
        %v1416 = vmax.f32 %v1360, 0.0
        %v1417 = vmax.f32 %v1361, 0.0
        %v1418 = vmax.f32 %v1362, 0.0
        %v1419 = vmax.f32 %v1363, 0.0
        %v1420 = vmax.f32 %v1364, 0.0
        %v1421 = vmax.f32 %v1365, 0.0
        %v1422 = vmax.f32 %v1366, 0.0
        %v1423 = vmax.f32 %v1367, 0.0
        %v1424 = vmul.f32 %v1368, %v1103
        %v1425 = vmul.f32 %v1369, %v1132
        %v1426 = vmul.f32 %v1370, %v1161
        %v1427 = vmul.f32 %v1371, %v1190
        %v1428 = vmul.f32 %v1372, %v1219
        %v1429 = vmul.f32 %v1373, %v1248
        %v1430 = vmul.f32 %v1374, %v1277
        %v1431 = vmul.f32 %v1375, %v1105
        %v1432 = vmul.f32 %v1376, %v1134
        %v1433 = vmul.f32 %v1377, %v1163
        %v1434 = vmul.f32 %v1378, %v1192
        %v1435 = vmul.f32 %v1379, %v1221
        %v1436 = vmul.f32 %v1380, %v1250
        %v1437 = vmul.f32 %v1381, %v1279
        %v1438 = vmul.f32 %v1382, %v1108
        %v1439 = vmul.f32 %v1383, %v1137
        %v1440 = vmul.f32 %v1384, %v1166
        %v1441 = vmul.f32 %v1385, %v1195
        %v1442 = vmul.f32 %v1386, %v1224
        %v1443 = vmul.f32 %v1387, %v1253
        %v1444 = vmul.f32 %v1388, %v1282
        %v1445 = vmul.f32 %v1389, %v1110
        %v1446 = vmul.f32 %v1390, %v1139
        %v1447 = vmul.f32 %v1391, %v1168
        %v1448 = vmul.f32 %v1392, %v1197
        %v1449 = vmul.f32 %v1393, %v1226
        %v1450 = vmul.f32 %v1394, %v1255
        %v1451 = vmul.f32 %v1395, %v1284
        %v1452 = vmul.f32 %v1396, %v1113
        %v1453 = vmul.f32 %v1397, %v1142
        %v1454 = vmul.f32 %v1398, %v1171
        %v1455 = vmul.f32 %v1399, %v1200
        %v1456 = vmul.f32 %v1400, %v1229
        %v1457 = vmul.f32 %v1401, %v1258
        %v1458 = vmul.f32 %v1402, %v1287
        %v1459 = vmul.f32 %v1403, %v1115
        %v1460 = vmul.f32 %v1404, %v1144
        %v1461 = vmul.f32 %v1405, %v1173
        %v1462 = vmul.f32 %v1406, %v1202
        %v1463 = vmul.f32 %v1407, %v1231
        %v1464 = vmul.f32 %v1408, %v1260
        %v1465 = vmul.f32 %v1409, %v1289
        %v1466 = vmul.f32 %v1410, %v1118
        %v1467 = vmul.f32 %v1411, %v1147
        %v1468 = vmul.f32 %v1412, %v1176
        %v1469 = vmul.f32 %v1413, %v1205
        %v1470 = vmul.f32 %v1414, %v1234
        %v1471 = vmul.f32 %v1415, %v1263
        %v1472 = vmul.f32 %v1416, %v1292
        %v1473 = vmul.f32 %v1417, %v1120
        %v1474 = vmul.f32 %v1418, %v1149
        %v1475 = vmul.f32 %v1419, %v1178
        %v1476 = vmul.f32 %v1420, %v1207
        %v1477 = vmul.f32 %v1421, %v1236
        %v1478 = vmul.f32 %v1422, %v1265
        %v1479 = vmul.f32 %v1423, %v1294
        %1488 = vrot.lane.b32.xlu0 %v1424, 64
        %v1489 = vpop.permute.xlu0 %1488
        %1490 = vrot.lane.b32.xlu0 %v1431, 64
        %v1491 = vpop.permute.xlu0 %1490
        %1492 = vrot.lane.b32.xlu0 %v1438, 64
        %v1493 = vpop.permute.xlu0 %1492
        %1494 = vrot.lane.b32.xlu0 %v1445, 64
        %v1495 = vpop.permute.xlu0 %1494
        %1496 = vrot.lane.b32.xlu0 %v1452, 64
        %v1497 = vpop.permute.xlu0 %1496
        %1498 = vrot.lane.b32.xlu0 %v1459, 64
        %v1499 = vpop.permute.xlu0 %1498
        %1500 = vrot.lane.b32.xlu0 %v1466, 64
        %v1501 = vpop.permute.xlu0 %1500
        %1502 = vrot.lane.b32.xlu0 %v1473, 64
        %v1503 = vpop.permute.xlu0 %1502
        %v1512 = vadd.f32 %v1424, %v1489
        %v1513 = vadd.f32 %v1431, %v1491
        %v1514 = vadd.f32 %v1438, %v1493
        %v1515 = vadd.f32 %v1445, %v1495
        %v1516 = vadd.f32 %v1452, %v1497
        %v1517 = vadd.f32 %v1459, %v1499
        %v1518 = vadd.f32 %v1466, %v1501
        %v1519 = vadd.f32 %v1473, %v1503
        %v1520 = vadd.f32 %v1512, %v1425
        %v1521 = vadd.f32 %v1513, %v1432
        %v1522 = vadd.f32 %v1514, %v1439
        %v1523 = vadd.f32 %v1515, %v1446
        %v1524 = vadd.f32 %v1516, %v1453
        %v1525 = vadd.f32 %v1517, %v1460
        %v1526 = vadd.f32 %v1518, %v1467
        %v1527 = vadd.f32 %v1519, %v1474
        %1536 = vrot.lane.b32.xlu0 %v1425, 64
        %v1537 = vpop.permute.xlu0 %1536
        %1538 = vrot.lane.b32.xlu0 %v1432, 64
        %v1539 = vpop.permute.xlu0 %1538
        %1540 = vrot.lane.b32.xlu0 %v1439, 64
        %v1541 = vpop.permute.xlu0 %1540
        %1542 = vrot.lane.b32.xlu0 %v1446, 64
        %v1543 = vpop.permute.xlu0 %1542
        %1544 = vrot.lane.b32.xlu0 %v1453, 64
        %v1545 = vpop.permute.xlu0 %1544
        %1546 = vrot.lane.b32.xlu0 %v1460, 64
        %v1547 = vpop.permute.xlu0 %1546
        %1548 = vrot.lane.b32.xlu0 %v1467, 64
        %v1549 = vpop.permute.xlu0 %1548
        %1550 = vrot.lane.b32.xlu0 %v1474, 64
        %v1551 = vpop.permute.xlu0 %1550
        %v1560 = vadd.f32 %v1520, %v1537
        %v1561 = vadd.f32 %v1521, %v1539
        %v1562 = vadd.f32 %v1522, %v1541
        %v1563 = vadd.f32 %v1523, %v1543
        %v1564 = vadd.f32 %v1524, %v1545
        %v1565 = vadd.f32 %v1525, %v1547
        %v1566 = vadd.f32 %v1526, %v1549
        %v1567 = vadd.f32 %v1527, %v1551
        %v1568 = vadd.f32 %v1560, %v1426
        %v1569 = vadd.f32 %v1561, %v1433
        %v1570 = vadd.f32 %v1562, %v1440
        %v1571 = vadd.f32 %v1563, %v1447
        %v1572 = vadd.f32 %v1564, %v1454
        %v1573 = vadd.f32 %v1565, %v1461
        %v1574 = vadd.f32 %v1566, %v1468
        %v1575 = vadd.f32 %v1567, %v1475
        %v1576 = vsub.f32 %v1568, %v1424
        %v1577 = vsub.f32 %v1569, %v1431
        %v1578 = vsub.f32 %v1570, %v1438
        %v1579 = vsub.f32 %v1571, %v1445
        %v1580 = vsub.f32 %v1572, %v1452
        %v1581 = vsub.f32 %v1573, %v1459
        %v1582 = vsub.f32 %v1574, %v1466
        %v1583 = vsub.f32 %v1575, %v1473
        %v1584 = vmul.f32 %v1576, %v1103
        %v1585 = vmul.f32 %v1577, %v1105
        %v1586 = vmul.f32 %v1578, %v1108
        %v1587 = vmul.f32 %v1579, %v1110
        %v1588 = vmul.f32 %v1580, %v1113
        %v1589 = vmul.f32 %v1581, %v1115
        %v1590 = vmul.f32 %v1582, %v1118
        %v1591 = vmul.f32 %v1583, %v1120
        %v1592 = vpack.c.bf16 %v1584, %v1584
        %v1593 = vpack.c.bf16 %v1585, %v1585
        %v1594 = vpack.c.bf16 %v1586, %v1586
        %v1595 = vpack.c.bf16 %v1587, %v1587
        %v1596 = vpack.c.bf16 %v1588, %v1588
        %v1597 = vpack.c.bf16 %v1589, %v1589
        %v1598 = vpack.c.bf16 %v1590, %v1590
        %v1599 = vpack.c.bf16 %v1591, %v1591
        %vm1600 = vcmask 519168
        %1601 = vst.msk [vmem:[#allocation2] sm:$0xf] %vm1600, %v1592
        %1602 = vst.msk [vmem:[#allocation2 + $0x4] sm:$0xf] %vm1600, %v1593
        %1603 = vst.msk [vmem:[#allocation2 + $0x8] sm:$0xf] %vm1600, %v1594
        %1604 = vst.msk [vmem:[#allocation2 + $0xc] sm:$0xf] %vm1600, %v1595
        %1605 = vst.msk [vmem:[#allocation2 + $0x10] sm:$0xf] %vm1600, %v1596
        %1606 = vst.msk [vmem:[#allocation2 + $0x14] sm:$0xf] %vm1600, %v1597
        %1607 = vst.msk [vmem:[#allocation2 + $0x18] sm:$0xf] %vm1600, %v1598
        %1608 = vst.msk [vmem:[#allocation2 + $0x1c] sm:$0xf] %vm1600, %v1599
        %v1609 = vsub.f32 %v1568, %v1489
        %v1610 = vsub.f32 %v1569, %v1491
        %v1611 = vsub.f32 %v1570, %v1493
        %v1612 = vsub.f32 %v1571, %v1495
        %v1613 = vsub.f32 %v1572, %v1497
        %v1614 = vsub.f32 %v1573, %v1499
        %v1615 = vsub.f32 %v1574, %v1501
        %v1616 = vsub.f32 %v1575, %v1503
        %1625 = vrot.lane.b32.xlu0 %v1103, 64
        %v1626 = vpop.permute.xlu0 %1625
        %1627 = vrot.lane.b32.xlu0 %v1105, 64
        %v1628 = vpop.permute.xlu0 %1627
        %1629 = vrot.lane.b32.xlu0 %v1108, 64
        %v1630 = vpop.permute.xlu0 %1629
        %1631 = vrot.lane.b32.xlu0 %v1110, 64
        %v1632 = vpop.permute.xlu0 %1631
        %1633 = vrot.lane.b32.xlu0 %v1113, 64
        %v1634 = vpop.permute.xlu0 %1633
        %1635 = vrot.lane.b32.xlu0 %v1115, 64
        %v1636 = vpop.permute.xlu0 %1635
        %1637 = vrot.lane.b32.xlu0 %v1118, 64
        %v1638 = vpop.permute.xlu0 %1637
        %1639 = vrot.lane.b32.xlu0 %v1120, 64
        %v1640 = vpop.permute.xlu0 %1639
        %v1649 = vmul.f32 %v1609, %v1626
        %v1650 = vmul.f32 %v1610, %v1628
        %v1651 = vmul.f32 %v1611, %v1630
        %v1652 = vmul.f32 %v1612, %v1632
        %v1653 = vmul.f32 %v1613, %v1634
        %v1654 = vmul.f32 %v1614, %v1636
        %v1655 = vmul.f32 %v1615, %v1638
        %v1656 = vmul.f32 %v1616, %v1640
        %v1657 = vpack.c.bf16 %v1649, %v1649
        %v1658 = vpack.c.bf16 %v1650, %v1650
        %v1659 = vpack.c.bf16 %v1651, %v1651
        %v1660 = vpack.c.bf16 %v1652, %v1652
        %v1661 = vpack.c.bf16 %v1653, %v1653
        %v1662 = vpack.c.bf16 %v1654, %v1654
        %v1663 = vpack.c.bf16 %v1655, %v1655
        %v1664 = vpack.c.bf16 %v1656, %v1656
        %1665 = vst.msk [vmem:[#allocation2 + $0x20] sm:$0xf] %vm1600, %v1657
        %1666 = vst.msk [vmem:[#allocation2 + $0x24] sm:$0xf] %vm1600, %v1658
        %1667 = vst.msk [vmem:[#allocation2 + $0x28] sm:$0xf] %vm1600, %v1659
        %1668 = vst.msk [vmem:[#allocation2 + $0x2c] sm:$0xf] %vm1600, %v1660
        %1669 = vst.msk [vmem:[#allocation2 + $0x30] sm:$0xf] %vm1600, %v1661
        %1670 = vst.msk [vmem:[#allocation2 + $0x34] sm:$0xf] %vm1600, %v1662
        %1671 = vst.msk [vmem:[#allocation2 + $0x38] sm:$0xf] %vm1600, %v1663
        %1672 = vst.msk [vmem:[#allocation2 + $0x3c] sm:$0xf] %vm1600, %v1664
        %v1673 = vsub.f32 %v1568, %v1425
        %v1674 = vsub.f32 %v1569, %v1432
        %v1675 = vsub.f32 %v1570, %v1439
        %v1676 = vsub.f32 %v1571, %v1446
        %v1677 = vsub.f32 %v1572, %v1453
        %v1678 = vsub.f32 %v1573, %v1460
        %v1679 = vsub.f32 %v1574, %v1467
        %v1680 = vsub.f32 %v1575, %v1474
        %v1681 = vmul.f32 %v1673, %v1132
        %v1682 = vmul.f32 %v1674, %v1134
        %v1683 = vmul.f32 %v1675, %v1137
        %v1684 = vmul.f32 %v1676, %v1139
        %v1685 = vmul.f32 %v1677, %v1142
        %v1686 = vmul.f32 %v1678, %v1144
        %v1687 = vmul.f32 %v1679, %v1147
        %v1688 = vmul.f32 %v1680, %v1149
        %v1689 = vpack.c.bf16 %v1681, %v1681
        %v1690 = vpack.c.bf16 %v1682, %v1682
        %v1691 = vpack.c.bf16 %v1683, %v1683
        %v1692 = vpack.c.bf16 %v1684, %v1684
        %v1693 = vpack.c.bf16 %v1685, %v1685
        %v1694 = vpack.c.bf16 %v1686, %v1686
        %v1695 = vpack.c.bf16 %v1687, %v1687
        %v1696 = vpack.c.bf16 %v1688, %v1688
        %1697 = vst.msk [vmem:[#allocation2 + $0x40] sm:$0xf] %vm1600, %v1689
        %1698 = vst.msk [vmem:[#allocation2 + $0x44] sm:$0xf] %vm1600, %v1690
        %1699 = vst.msk [vmem:[#allocation2 + $0x48] sm:$0xf] %vm1600, %v1691
        %1700 = vst.msk [vmem:[#allocation2 + $0x4c] sm:$0xf] %vm1600, %v1692
        %1701 = vst.msk [vmem:[#allocation2 + $0x50] sm:$0xf] %vm1600, %v1693
        %1702 = vst.msk [vmem:[#allocation2 + $0x54] sm:$0xf] %vm1600, %v1694
        %1703 = vst.msk [vmem:[#allocation2 + $0x58] sm:$0xf] %vm1600, %v1695
        %1704 = vst.msk [vmem:[#allocation2 + $0x5c] sm:$0xf] %vm1600, %v1696
        %v1705 = vsub.f32 %v1568, %v1537
        %v1706 = vsub.f32 %v1569, %v1539
        %v1707 = vsub.f32 %v1570, %v1541
        %v1708 = vsub.f32 %v1571, %v1543
        %v1709 = vsub.f32 %v1572, %v1545
        %v1710 = vsub.f32 %v1573, %v1547
        %v1711 = vsub.f32 %v1574, %v1549
        %v1712 = vsub.f32 %v1575, %v1551
        %1721 = vrot.lane.b32.xlu0 %v1132, 64
        %v1722 = vpop.permute.xlu0 %1721
        %1723 = vrot.lane.b32.xlu0 %v1134, 64
        %v1724 = vpop.permute.xlu0 %1723
        %1725 = vrot.lane.b32.xlu0 %v1137, 64
        %v1726 = vpop.permute.xlu0 %1725
        %1727 = vrot.lane.b32.xlu0 %v1139, 64
        %v1728 = vpop.permute.xlu0 %1727
        %1729 = vrot.lane.b32.xlu0 %v1142, 64
        %v1730 = vpop.permute.xlu0 %1729
        %1731 = vrot.lane.b32.xlu0 %v1144, 64
        %v1732 = vpop.permute.xlu0 %1731
        %1733 = vrot.lane.b32.xlu0 %v1147, 64
        %v1734 = vpop.permute.xlu0 %1733
        %1735 = vrot.lane.b32.xlu0 %v1149, 64
        %v1736 = vpop.permute.xlu0 %1735
        %v1745 = vmul.f32 %v1705, %v1722
        %v1746 = vmul.f32 %v1706, %v1724
        %v1747 = vmul.f32 %v1707, %v1726
        %v1748 = vmul.f32 %v1708, %v1728
        %v1749 = vmul.f32 %v1709, %v1730
        %v1750 = vmul.f32 %v1710, %v1732
        %v1751 = vmul.f32 %v1711, %v1734
        %v1752 = vmul.f32 %v1712, %v1736
        %v1753 = vpack.c.bf16 %v1745, %v1745
        %v1754 = vpack.c.bf16 %v1746, %v1746
        %v1755 = vpack.c.bf16 %v1747, %v1747
        %v1756 = vpack.c.bf16 %v1748, %v1748
        %v1757 = vpack.c.bf16 %v1749, %v1749
        %v1758 = vpack.c.bf16 %v1750, %v1750
        %v1759 = vpack.c.bf16 %v1751, %v1751
        %v1760 = vpack.c.bf16 %v1752, %v1752
        %1761 = vst.msk [vmem:[#allocation2 + $0x60] sm:$0xf] %vm1600, %v1753
        %1762 = vst.msk [vmem:[#allocation2 + $0x64] sm:$0xf] %vm1600, %v1754
        %1763 = vst.msk [vmem:[#allocation2 + $0x68] sm:$0xf] %vm1600, %v1755
        %1764 = vst.msk [vmem:[#allocation2 + $0x6c] sm:$0xf] %vm1600, %v1756
        %1765 = vst.msk [vmem:[#allocation2 + $0x70] sm:$0xf] %vm1600, %v1757
        %1766 = vst.msk [vmem:[#allocation2 + $0x74] sm:$0xf] %vm1600, %v1758
        %1767 = vst.msk [vmem:[#allocation2 + $0x78] sm:$0xf] %vm1600, %v1759
        %1768 = vst.msk [vmem:[#allocation2 + $0x7c] sm:$0xf] %vm1600, %v1760
        %v1769 = vsub.f32 %v1568, %v1426
        %v1770 = vsub.f32 %v1569, %v1433
        %v1771 = vsub.f32 %v1570, %v1440
        %v1772 = vsub.f32 %v1571, %v1447
        %v1773 = vsub.f32 %v1572, %v1454
        %v1774 = vsub.f32 %v1573, %v1461
        %v1775 = vsub.f32 %v1574, %v1468
        %v1776 = vsub.f32 %v1575, %v1475
        %v1777 = vmul.f32 %v1769, %v1161
        %v1778 = vmul.f32 %v1770, %v1163
        %v1779 = vmul.f32 %v1771, %v1166
        %v1780 = vmul.f32 %v1772, %v1168
        %v1781 = vmul.f32 %v1773, %v1171
        %v1782 = vmul.f32 %v1774, %v1173
        %v1783 = vmul.f32 %v1775, %v1176
        %v1784 = vmul.f32 %v1776, %v1178
        %v1785 = vpack.c.bf16 %v1777, %v1777
        %v1786 = vpack.c.bf16 %v1778, %v1778
        %v1787 = vpack.c.bf16 %v1779, %v1779
        %v1788 = vpack.c.bf16 %v1780, %v1780
        %v1789 = vpack.c.bf16 %v1781, %v1781
        %v1790 = vpack.c.bf16 %v1782, %v1782
        %v1791 = vpack.c.bf16 %v1783, %v1783
        %v1792 = vpack.c.bf16 %v1784, %v1784
        %1793 = vst.msk [vmem:[#allocation2 + $0x80] sm:$0xf] %vm1600, %v1785
        %1794 = vst.msk [vmem:[#allocation2 + $0x84] sm:$0xf] %vm1600, %v1786
        %1795 = vst.msk [vmem:[#allocation2 + $0x88] sm:$0xf] %vm1600, %v1787
        %1796 = vst.msk [vmem:[#allocation2 + $0x8c] sm:$0xf] %vm1600, %v1788
        %1797 = vst.msk [vmem:[#allocation2 + $0x90] sm:$0xf] %vm1600, %v1789
        %1798 = vst.msk [vmem:[#allocation2 + $0x94] sm:$0xf] %vm1600, %v1790
        %1799 = vst.msk [vmem:[#allocation2 + $0x98] sm:$0xf] %vm1600, %v1791
        %1800 = vst.msk [vmem:[#allocation2 + $0x9c] sm:$0xf] %vm1600, %v1792
        %v1801 = vmul.f32 %v1568, 0.23529412
        %v1802 = vmul.f32 %v1569, 0.23529412
        %v1803 = vmul.f32 %v1570, 0.23529412
        %v1804 = vmul.f32 %v1571, 0.23529412
        %v1805 = vmul.f32 %v1572, 0.23529412
        %v1806 = vmul.f32 %v1573, 0.23529412
        %v1807 = vmul.f32 %v1574, 0.23529412
        %v1808 = vmul.f32 %v1575, 0.23529412
        %1817 = vrot.lane.b32.xlu0 %v1427, 64
        %v1818 = vpop.permute.xlu0 %1817
        %1819 = vrot.lane.b32.xlu0 %v1434, 64
        %v1820 = vpop.permute.xlu0 %1819
        %1821 = vrot.lane.b32.xlu0 %v1441, 64
        %v1822 = vpop.permute.xlu0 %1821
        %1823 = vrot.lane.b32.xlu0 %v1448, 64
        %v1824 = vpop.permute.xlu0 %1823
        %1825 = vrot.lane.b32.xlu0 %v1455, 64
        %v1826 = vpop.permute.xlu0 %1825
        %1827 = vrot.lane.b32.xlu0 %v1462, 64
        %v1828 = vpop.permute.xlu0 %1827
        %1829 = vrot.lane.b32.xlu0 %v1469, 64
        %v1830 = vpop.permute.xlu0 %1829
        %1831 = vrot.lane.b32.xlu0 %v1476, 64
        %v1832 = vpop.permute.xlu0 %1831
        %v1841 = vadd.f32 %v1426, %v1818
        %v1842 = vadd.f32 %v1433, %v1820
        %v1843 = vadd.f32 %v1440, %v1822
        %v1844 = vadd.f32 %v1447, %v1824
        %v1845 = vadd.f32 %v1454, %v1826
        %v1846 = vadd.f32 %v1461, %v1828
        %v1847 = vadd.f32 %v1468, %v1830
        %v1848 = vadd.f32 %v1475, %v1832
        %v1849 = vadd.f32 %v1841, %v1427
        %v1850 = vadd.f32 %v1842, %v1434
        %v1851 = vadd.f32 %v1843, %v1441
        %v1852 = vadd.f32 %v1844, %v1448
        %v1853 = vadd.f32 %v1845, %v1455
        %v1854 = vadd.f32 %v1846, %v1462
        %v1855 = vadd.f32 %v1847, %v1469
        %v1856 = vadd.f32 %v1848, %v1476
        %1865 = vrot.lane.b32.xlu0 %v1428, 64
        %v1866 = vpop.permute.xlu0 %1865
        %1867 = vrot.lane.b32.xlu0 %v1435, 64
        %v1868 = vpop.permute.xlu0 %1867
        %1869 = vrot.lane.b32.xlu0 %v1442, 64
        %v1870 = vpop.permute.xlu0 %1869
        %1871 = vrot.lane.b32.xlu0 %v1449, 64
        %v1872 = vpop.permute.xlu0 %1871
        %1873 = vrot.lane.b32.xlu0 %v1456, 64
        %v1874 = vpop.permute.xlu0 %1873
        %1875 = vrot.lane.b32.xlu0 %v1463, 64
        %v1876 = vpop.permute.xlu0 %1875
        %1877 = vrot.lane.b32.xlu0 %v1470, 64
        %v1878 = vpop.permute.xlu0 %1877
        %1879 = vrot.lane.b32.xlu0 %v1477, 64
        %v1880 = vpop.permute.xlu0 %1879
        %v1889 = vadd.f32 %v1849, %v1866
        %v1890 = vadd.f32 %v1850, %v1868
        %v1891 = vadd.f32 %v1851, %v1870
        %v1892 = vadd.f32 %v1852, %v1872
        %v1893 = vadd.f32 %v1853, %v1874
        %v1894 = vadd.f32 %v1854, %v1876
        %v1895 = vadd.f32 %v1855, %v1878
        %v1896 = vadd.f32 %v1856, %v1880
        %v1897 = vsub.f32 %v1889, %v1426
        %v1898 = vsub.f32 %v1890, %v1433
        %v1899 = vsub.f32 %v1891, %v1440
        %v1900 = vsub.f32 %v1892, %v1447
        %v1901 = vsub.f32 %v1893, %v1454
        %v1902 = vsub.f32 %v1894, %v1461
        %v1903 = vsub.f32 %v1895, %v1468
        %v1904 = vsub.f32 %v1896, %v1475
        %v1905 = vmul.f32 %v1897, %v1161
        %v1906 = vmul.f32 %v1898, %v1163
        %v1907 = vmul.f32 %v1899, %v1166
        %v1908 = vmul.f32 %v1900, %v1168
        %v1909 = vmul.f32 %v1901, %v1171
        %v1910 = vmul.f32 %v1902, %v1173
        %v1911 = vmul.f32 %v1903, %v1176
        %v1912 = vmul.f32 %v1904, %v1178
        %v1913 = vpack.c.bf16 %v1905, %v1905
        %v1914 = vpack.c.bf16 %v1906, %v1906
        %v1915 = vpack.c.bf16 %v1907, %v1907
        %v1916 = vpack.c.bf16 %v1908, %v1908
        %v1917 = vpack.c.bf16 %v1909, %v1909
        %v1918 = vpack.c.bf16 %v1910, %v1910
        %v1919 = vpack.c.bf16 %v1911, %v1911
        %v1920 = vpack.c.bf16 %v1912, %v1912
        %1929 = vrot.lane.b32.xlu0 %v1913, 64
        %v1930 = vpop.permute.xlu0 %1929
        %1931 = vrot.lane.b32.xlu0 %v1914, 64
        %v1932 = vpop.permute.xlu0 %1931
        %1933 = vrot.lane.b32.xlu0 %v1915, 64
        %v1934 = vpop.permute.xlu0 %1933
        %1935 = vrot.lane.b32.xlu0 %v1916, 64
        %v1936 = vpop.permute.xlu0 %1935
        %1937 = vrot.lane.b32.xlu0 %v1917, 64
        %v1938 = vpop.permute.xlu0 %1937
        %1939 = vrot.lane.b32.xlu0 %v1918, 64
        %v1940 = vpop.permute.xlu0 %1939
        %1941 = vrot.lane.b32.xlu0 %v1919, 64
        %v1942 = vpop.permute.xlu0 %1941
        %1943 = vrot.lane.b32.xlu0 %v1920, 64
        %v1944 = vpop.permute.xlu0 %1943
        %1953 = vst.msk [vmem:[#allocation2 + $0xa0] sm:$0xf] %vm1600, %v1930
        %1954 = vst.msk [vmem:[#allocation2 + $0xa4] sm:$0xf] %vm1600, %v1932
        %1955 = vst.msk [vmem:[#allocation2 + $0xa8] sm:$0xf] %vm1600, %v1934
        %1956 = vst.msk [vmem:[#allocation2 + $0xac] sm:$0xf] %vm1600, %v1936
        %1957 = vst.msk [vmem:[#allocation2 + $0xb0] sm:$0xf] %vm1600, %v1938
        %1958 = vst.msk [vmem:[#allocation2 + $0xb4] sm:$0xf] %vm1600, %v1940
        %1959 = vst.msk [vmem:[#allocation2 + $0xb8] sm:$0xf] %vm1600, %v1942
        %1960 = vst.msk [vmem:[#allocation2 + $0xbc] sm:$0xf] %vm1600, %v1944
        %v1961 = vsub.f32 %v1889, %v1818
        %v1962 = vsub.f32 %v1890, %v1820
        %v1963 = vsub.f32 %v1891, %v1822
        %v1964 = vsub.f32 %v1892, %v1824
        %v1965 = vsub.f32 %v1893, %v1826
        %v1966 = vsub.f32 %v1894, %v1828
        %v1967 = vsub.f32 %v1895, %v1830
        %v1968 = vsub.f32 %v1896, %v1832
        %1977 = vrot.lane.b32.xlu0 %v1190, 64
        %v1978 = vpop.permute.xlu0 %1977
        %1979 = vrot.lane.b32.xlu0 %v1192, 64
        %v1980 = vpop.permute.xlu0 %1979
        %1981 = vrot.lane.b32.xlu0 %v1195, 64
        %v1982 = vpop.permute.xlu0 %1981
        %1983 = vrot.lane.b32.xlu0 %v1197, 64
        %v1984 = vpop.permute.xlu0 %1983
        %1985 = vrot.lane.b32.xlu0 %v1200, 64
        %v1986 = vpop.permute.xlu0 %1985
        %1987 = vrot.lane.b32.xlu0 %v1202, 64
        %v1988 = vpop.permute.xlu0 %1987
        %1989 = vrot.lane.b32.xlu0 %v1205, 64
        %v1990 = vpop.permute.xlu0 %1989
        %1991 = vrot.lane.b32.xlu0 %v1207, 64
        %v1992 = vpop.permute.xlu0 %1991
        %v2001 = vmul.f32 %v1961, %v1978
        %v2002 = vmul.f32 %v1962, %v1980
        %v2003 = vmul.f32 %v1963, %v1982
        %v2004 = vmul.f32 %v1964, %v1984
        %v2005 = vmul.f32 %v1965, %v1986
        %v2006 = vmul.f32 %v1966, %v1988
        %v2007 = vmul.f32 %v1967, %v1990
        %v2008 = vmul.f32 %v1968, %v1992
        %v2009 = vpack.c.bf16 %v2001, %v2001
        %v2010 = vpack.c.bf16 %v2002, %v2002
        %v2011 = vpack.c.bf16 %v2003, %v2003
        %v2012 = vpack.c.bf16 %v2004, %v2004
        %v2013 = vpack.c.bf16 %v2005, %v2005
        %v2014 = vpack.c.bf16 %v2006, %v2006
        %v2015 = vpack.c.bf16 %v2007, %v2007
        %v2016 = vpack.c.bf16 %v2008, %v2008
        %2025 = vrot.lane.b32.xlu0 %v2009, 64
        %v2026 = vpop.permute.xlu0 %2025
        %2027 = vrot.lane.b32.xlu0 %v2010, 64
        %v2028 = vpop.permute.xlu0 %2027
        %2029 = vrot.lane.b32.xlu0 %v2011, 64
        %v2030 = vpop.permute.xlu0 %2029
        %2031 = vrot.lane.b32.xlu0 %v2012, 64
        %v2032 = vpop.permute.xlu0 %2031
        %2033 = vrot.lane.b32.xlu0 %v2013, 64
        %v2034 = vpop.permute.xlu0 %2033
        %2035 = vrot.lane.b32.xlu0 %v2014, 64
        %v2036 = vpop.permute.xlu0 %2035
        %2037 = vrot.lane.b32.xlu0 %v2015, 64
        %v2038 = vpop.permute.xlu0 %2037
        %2039 = vrot.lane.b32.xlu0 %v2016, 64
        %v2040 = vpop.permute.xlu0 %2039
        %2049 = vst.msk [vmem:[#allocation2 + $0xc0] sm:$0xf] %vm1600, %v2026
        %2050 = vst.msk [vmem:[#allocation2 + $0xc4] sm:$0xf] %vm1600, %v2028
        %2051 = vst.msk [vmem:[#allocation2 + $0xc8] sm:$0xf] %vm1600, %v2030
        %2052 = vst.msk [vmem:[#allocation2 + $0xcc] sm:$0xf] %vm1600, %v2032
        %2053 = vst.msk [vmem:[#allocation2 + $0xd0] sm:$0xf] %vm1600, %v2034
        %2054 = vst.msk [vmem:[#allocation2 + $0xd4] sm:$0xf] %vm1600, %v2036
        %2055 = vst.msk [vmem:[#allocation2 + $0xd8] sm:$0xf] %vm1600, %v2038
        %2056 = vst.msk [vmem:[#allocation2 + $0xdc] sm:$0xf] %vm1600, %v2040
        %v2057 = vsub.f32 %v1889, %v1427
        %v2058 = vsub.f32 %v1890, %v1434
        %v2059 = vsub.f32 %v1891, %v1441
        %v2060 = vsub.f32 %v1892, %v1448
        %v2061 = vsub.f32 %v1893, %v1455
        %v2062 = vsub.f32 %v1894, %v1462
        %v2063 = vsub.f32 %v1895, %v1469
        %v2064 = vsub.f32 %v1896, %v1476
        %v2065 = vmul.f32 %v2057, %v1190
        %v2066 = vmul.f32 %v2058, %v1192
        %v2067 = vmul.f32 %v2059, %v1195
        %v2068 = vmul.f32 %v2060, %v1197
        %v2069 = vmul.f32 %v2061, %v1200
        %v2070 = vmul.f32 %v2062, %v1202
        %v2071 = vmul.f32 %v2063, %v1205
        %v2072 = vmul.f32 %v2064, %v1207
        %v2073 = vpack.c.bf16 %v2065, %v2065
        %v2074 = vpack.c.bf16 %v2066, %v2066
        %v2075 = vpack.c.bf16 %v2067, %v2067
        %v2076 = vpack.c.bf16 %v2068, %v2068
        %v2077 = vpack.c.bf16 %v2069, %v2069
        %v2078 = vpack.c.bf16 %v2070, %v2070
        %v2079 = vpack.c.bf16 %v2071, %v2071
        %v2080 = vpack.c.bf16 %v2072, %v2072
        %2089 = vrot.lane.b32.xlu0 %v2073, 64
        %v2090 = vpop.permute.xlu0 %2089
        %2091 = vrot.lane.b32.xlu0 %v2074, 64
        %v2092 = vpop.permute.xlu0 %2091
        %2093 = vrot.lane.b32.xlu0 %v2075, 64
        %v2094 = vpop.permute.xlu0 %2093
        %2095 = vrot.lane.b32.xlu0 %v2076, 64
        %v2096 = vpop.permute.xlu0 %2095
        %2097 = vrot.lane.b32.xlu0 %v2077, 64
        %v2098 = vpop.permute.xlu0 %2097
        %2099 = vrot.lane.b32.xlu0 %v2078, 64
        %v2100 = vpop.permute.xlu0 %2099
        %2101 = vrot.lane.b32.xlu0 %v2079, 64
        %v2102 = vpop.permute.xlu0 %2101
        %2103 = vrot.lane.b32.xlu0 %v2080, 64
        %v2104 = vpop.permute.xlu0 %2103
        %2113 = vst.msk [vmem:[#allocation2 + $0xe0] sm:$0xf] %vm1600, %v2090
        %2114 = vst.msk [vmem:[#allocation2 + $0xe4] sm:$0xf] %vm1600, %v2092
        %2115 = vst.msk [vmem:[#allocation2 + $0xe8] sm:$0xf] %vm1600, %v2094
        %2116 = vst.msk [vmem:[#allocation2 + $0xec] sm:$0xf] %vm1600, %v2096
        %2117 = vst.msk [vmem:[#allocation2 + $0xf0] sm:$0xf] %vm1600, %v2098
        %2118 = vst.msk [vmem:[#allocation2 + $0xf4] sm:$0xf] %vm1600, %v2100
        %2119 = vst.msk [vmem:[#allocation2 + $0xf8] sm:$0xf] %vm1600, %v2102
        %2120 = vst.msk [vmem:[#allocation2 + $0xfc] sm:$0xf] %vm1600, %v2104
        %v2121 = vsub.f32 %v1889, %v1866
        %v2122 = vsub.f32 %v1890, %v1868
        %v2123 = vsub.f32 %v1891, %v1870
        %v2124 = vsub.f32 %v1892, %v1872
        %v2125 = vsub.f32 %v1893, %v1874
        %v2126 = vsub.f32 %v1894, %v1876
        %v2127 = vsub.f32 %v1895, %v1878
        %v2128 = vsub.f32 %v1896, %v1880
        %2137 = vrot.lane.b32.xlu0 %v1219, 64
        %v2138 = vpop.permute.xlu0 %2137
        %2139 = vrot.lane.b32.xlu0 %v1221, 64
        %v2140 = vpop.permute.xlu0 %2139
        %2141 = vrot.lane.b32.xlu0 %v1224, 64
        %v2142 = vpop.permute.xlu0 %2141
        %2143 = vrot.lane.b32.xlu0 %v1226, 64
        %v2144 = vpop.permute.xlu0 %2143
        %2145 = vrot.lane.b32.xlu0 %v1229, 64
        %v2146 = vpop.permute.xlu0 %2145
        %2147 = vrot.lane.b32.xlu0 %v1231, 64
        %v2148 = vpop.permute.xlu0 %2147
        %2149 = vrot.lane.b32.xlu0 %v1234, 64
        %v2150 = vpop.permute.xlu0 %2149
        %2151 = vrot.lane.b32.xlu0 %v1236, 64
        %v2152 = vpop.permute.xlu0 %2151
        %v2161 = vmul.f32 %v2121, %v2138
        %v2162 = vmul.f32 %v2122, %v2140
        %v2163 = vmul.f32 %v2123, %v2142
        %v2164 = vmul.f32 %v2124, %v2144
        %v2165 = vmul.f32 %v2125, %v2146
        %v2166 = vmul.f32 %v2126, %v2148
        %v2167 = vmul.f32 %v2127, %v2150
        %v2168 = vmul.f32 %v2128, %v2152
        %v2169 = vpack.c.bf16 %v2161, %v2161
        %v2170 = vpack.c.bf16 %v2162, %v2162
        %v2171 = vpack.c.bf16 %v2163, %v2163
        %v2172 = vpack.c.bf16 %v2164, %v2164
        %v2173 = vpack.c.bf16 %v2165, %v2165
        %v2174 = vpack.c.bf16 %v2166, %v2166
        %v2175 = vpack.c.bf16 %v2167, %v2167
        %v2176 = vpack.c.bf16 %v2168, %v2168
        %2185 = vrot.lane.b32.xlu0 %v2169, 64
        %v2186 = vpop.permute.xlu0 %2185
        %2187 = vrot.lane.b32.xlu0 %v2170, 64
        %v2188 = vpop.permute.xlu0 %2187
        %2189 = vrot.lane.b32.xlu0 %v2171, 64
        %v2190 = vpop.permute.xlu0 %2189
        %2191 = vrot.lane.b32.xlu0 %v2172, 64
        %v2192 = vpop.permute.xlu0 %2191
        %2193 = vrot.lane.b32.xlu0 %v2173, 64
        %v2194 = vpop.permute.xlu0 %2193
        %2195 = vrot.lane.b32.xlu0 %v2174, 64
        %v2196 = vpop.permute.xlu0 %2195
        %2197 = vrot.lane.b32.xlu0 %v2175, 64
        %v2198 = vpop.permute.xlu0 %2197
        %2199 = vrot.lane.b32.xlu0 %v2176, 64
        %v2200 = vpop.permute.xlu0 %2199
        %2209 = vst.msk [vmem:[#allocation2 + $0x100] sm:$0xf] %vm1600, %v2186
        %2210 = vst.msk [vmem:[#allocation2 + $0x104] sm:$0xf] %vm1600, %v2188
        %2211 = vst.msk [vmem:[#allocation2 + $0x108] sm:$0xf] %vm1600, %v2190
        %2212 = vst.msk [vmem:[#allocation2 + $0x10c] sm:$0xf] %vm1600, %v2192
        %2213 = vst.msk [vmem:[#allocation2 + $0x110] sm:$0xf] %vm1600, %v2194
        %2214 = vst.msk [vmem:[#allocation2 + $0x114] sm:$0xf] %vm1600, %v2196
        %2215 = vst.msk [vmem:[#allocation2 + $0x118] sm:$0xf] %vm1600, %v2198
        %2216 = vst.msk [vmem:[#allocation2 + $0x11c] sm:$0xf] %vm1600, %v2200
        %v2217 = vmul.f32 %v1889, 0.1764706
        %v2218 = vmul.f32 %v1890, 0.1764706
        %v2219 = vmul.f32 %v1891, 0.1764706
        %v2220 = vmul.f32 %v1892, 0.1764706
        %v2221 = vmul.f32 %v1893, 0.1764706
        %v2222 = vmul.f32 %v1894, 0.1764706
        %v2223 = vmul.f32 %v1895, 0.1764706
        %v2224 = vmul.f32 %v1896, 0.1764706
        %2233 = vrot.lane.b32.xlu0 %v1429, 64
        %v2234 = vpop.permute.xlu0 %2233
        %2235 = vrot.lane.b32.xlu0 %v1436, 64
        %v2236 = vpop.permute.xlu0 %2235
        %2237 = vrot.lane.b32.xlu0 %v1443, 64
        %v2238 = vpop.permute.xlu0 %2237
        %2239 = vrot.lane.b32.xlu0 %v1450, 64
        %v2240 = vpop.permute.xlu0 %2239
        %2241 = vrot.lane.b32.xlu0 %v1457, 64
        %v2242 = vpop.permute.xlu0 %2241
        %2243 = vrot.lane.b32.xlu0 %v1464, 64
        %v2244 = vpop.permute.xlu0 %2243
        %2245 = vrot.lane.b32.xlu0 %v1471, 64
        %v2246 = vpop.permute.xlu0 %2245
        %2247 = vrot.lane.b32.xlu0 %v1478, 64
        %v2248 = vpop.permute.xlu0 %2247
        %v2257 = vadd.f32 %v1428, %v2234
        %v2258 = vadd.f32 %v1435, %v2236
        %v2259 = vadd.f32 %v1442, %v2238
        %v2260 = vadd.f32 %v1449, %v2240
        %v2261 = vadd.f32 %v1456, %v2242
        %v2262 = vadd.f32 %v1463, %v2244
        %v2263 = vadd.f32 %v1470, %v2246
        %v2264 = vadd.f32 %v1477, %v2248
        %v2265 = vadd.f32 %v2257, %v1429
        %v2266 = vadd.f32 %v2258, %v1436
        %v2267 = vadd.f32 %v2259, %v1443
        %v2268 = vadd.f32 %v2260, %v1450
        %v2269 = vadd.f32 %v2261, %v1457
        %v2270 = vadd.f32 %v2262, %v1464
        %v2271 = vadd.f32 %v2263, %v1471
        %v2272 = vadd.f32 %v2264, %v1478
        %2281 = vrot.lane.b32.xlu0 %v1430, 64
        %v2282 = vpop.permute.xlu0 %2281
        %2283 = vrot.lane.b32.xlu0 %v1437, 64
        %v2284 = vpop.permute.xlu0 %2283
        %2285 = vrot.lane.b32.xlu0 %v1444, 64
        %v2286 = vpop.permute.xlu0 %2285
        %2287 = vrot.lane.b32.xlu0 %v1451, 64
        %v2288 = vpop.permute.xlu0 %2287
        %2289 = vrot.lane.b32.xlu0 %v1458, 64
        %v2290 = vpop.permute.xlu0 %2289
        %2291 = vrot.lane.b32.xlu0 %v1465, 64
        %v2292 = vpop.permute.xlu0 %2291
        %2293 = vrot.lane.b32.xlu0 %v1472, 64
        %v2294 = vpop.permute.xlu0 %2293
        %2295 = vrot.lane.b32.xlu0 %v1479, 64
        %v2296 = vpop.permute.xlu0 %2295
        %v2305 = vadd.f32 %v2265, %v2282
        %v2306 = vadd.f32 %v2266, %v2284
        %v2307 = vadd.f32 %v2267, %v2286
        %v2308 = vadd.f32 %v2268, %v2288
        %v2309 = vadd.f32 %v2269, %v2290
        %v2310 = vadd.f32 %v2270, %v2292
        %v2311 = vadd.f32 %v2271, %v2294
        %v2312 = vadd.f32 %v2272, %v2296
        %v2313 = vsub.f32 %v2305, %v1428
        %v2314 = vsub.f32 %v2306, %v1435
        %v2315 = vsub.f32 %v2307, %v1442
        %v2316 = vsub.f32 %v2308, %v1449
        %v2317 = vsub.f32 %v2309, %v1456
        %v2318 = vsub.f32 %v2310, %v1463
        %v2319 = vsub.f32 %v2311, %v1470
        %v2320 = vsub.f32 %v2312, %v1477
        %v2321 = vmul.f32 %v2313, %v1219
        %v2322 = vmul.f32 %v2314, %v1221
        %v2323 = vmul.f32 %v2315, %v1224
        %v2324 = vmul.f32 %v2316, %v1226
        %v2325 = vmul.f32 %v2317, %v1229
        %v2326 = vmul.f32 %v2318, %v1231
        %v2327 = vmul.f32 %v2319, %v1234
        %v2328 = vmul.f32 %v2320, %v1236
        %v2329 = vpack.c.bf16 %v2321, %v2321
        %v2330 = vpack.c.bf16 %v2322, %v2322
        %v2331 = vpack.c.bf16 %v2323, %v2323
        %v2332 = vpack.c.bf16 %v2324, %v2324
        %v2333 = vpack.c.bf16 %v2325, %v2325
        %v2334 = vpack.c.bf16 %v2326, %v2326
        %v2335 = vpack.c.bf16 %v2327, %v2327
        %v2336 = vpack.c.bf16 %v2328, %v2328
        %2345 = vrot.lane.b32.xlu0 %v2329, 64
        %v2346 = vpop.permute.xlu0 %2345
        %2347 = vrot.lane.b32.xlu0 %v2330, 64
        %v2348 = vpop.permute.xlu0 %2347
        %2349 = vrot.lane.b32.xlu0 %v2331, 64
        %v2350 = vpop.permute.xlu0 %2349
        %2351 = vrot.lane.b32.xlu0 %v2332, 64
        %v2352 = vpop.permute.xlu0 %2351
        %2353 = vrot.lane.b32.xlu0 %v2333, 64
        %v2354 = vpop.permute.xlu0 %2353
        %2355 = vrot.lane.b32.xlu0 %v2334, 64
        %v2356 = vpop.permute.xlu0 %2355
        %2357 = vrot.lane.b32.xlu0 %v2335, 64
        %v2358 = vpop.permute.xlu0 %2357
        %2359 = vrot.lane.b32.xlu0 %v2336, 64
        %v2360 = vpop.permute.xlu0 %2359
        %2369 = vst.msk [vmem:[#allocation2 + $0x120] sm:$0xf] %vm1600, %v2346
        %2370 = vst.msk [vmem:[#allocation2 + $0x124] sm:$0xf] %vm1600, %v2348
        %2371 = vst.msk [vmem:[#allocation2 + $0x128] sm:$0xf] %vm1600, %v2350
        %2372 = vst.msk [vmem:[#allocation2 + $0x12c] sm:$0xf] %vm1600, %v2352
        %2373 = vst.msk [vmem:[#allocation2 + $0x130] sm:$0xf] %vm1600, %v2354
        %2374 = vst.msk [vmem:[#allocation2 + $0x134] sm:$0xf] %vm1600, %v2356
        %2375 = vst.msk [vmem:[#allocation2 + $0x138] sm:$0xf] %vm1600, %v2358
        %2376 = vst.msk [vmem:[#allocation2 + $0x13c] sm:$0xf] %vm1600, %v2360
        %v2377 = vsub.f32 %v2305, %v2234
        %v2378 = vsub.f32 %v2306, %v2236
        %v2379 = vsub.f32 %v2307, %v2238
        %v2380 = vsub.f32 %v2308, %v2240
        %v2381 = vsub.f32 %v2309, %v2242
        %v2382 = vsub.f32 %v2310, %v2244
        %v2383 = vsub.f32 %v2311, %v2246
        %v2384 = vsub.f32 %v2312, %v2248
        %2393 = vrot.lane.b32.xlu0 %v1248, 64
        %v2394 = vpop.permute.xlu0 %2393
        %2395 = vrot.lane.b32.xlu0 %v1250, 64
        %v2396 = vpop.permute.xlu0 %2395
        %2397 = vrot.lane.b32.xlu0 %v1253, 64
        %v2398 = vpop.permute.xlu0 %2397
        %2399 = vrot.lane.b32.xlu0 %v1255, 64
        %v2400 = vpop.permute.xlu0 %2399
        %2401 = vrot.lane.b32.xlu0 %v1258, 64
        %v2402 = vpop.permute.xlu0 %2401
        %2403 = vrot.lane.b32.xlu0 %v1260, 64
        %v2404 = vpop.permute.xlu0 %2403
        %2405 = vrot.lane.b32.xlu0 %v1263, 64
        %v2406 = vpop.permute.xlu0 %2405
        %2407 = vrot.lane.b32.xlu0 %v1265, 64
        %v2408 = vpop.permute.xlu0 %2407
        %v2417 = vmul.f32 %v2377, %v2394
        %v2418 = vmul.f32 %v2378, %v2396
        %v2419 = vmul.f32 %v2379, %v2398
        %v2420 = vmul.f32 %v2380, %v2400
        %v2421 = vmul.f32 %v2381, %v2402
        %v2422 = vmul.f32 %v2382, %v2404
        %v2423 = vmul.f32 %v2383, %v2406
        %v2424 = vmul.f32 %v2384, %v2408
        %v2425 = vpack.c.bf16 %v2417, %v2417
        %v2426 = vpack.c.bf16 %v2418, %v2418
        %v2427 = vpack.c.bf16 %v2419, %v2419
        %v2428 = vpack.c.bf16 %v2420, %v2420
        %v2429 = vpack.c.bf16 %v2421, %v2421
        %v2430 = vpack.c.bf16 %v2422, %v2422
        %v2431 = vpack.c.bf16 %v2423, %v2423
        %v2432 = vpack.c.bf16 %v2424, %v2424
        %2441 = vrot.lane.b32.xlu0 %v2425, 64
        %v2442 = vpop.permute.xlu0 %2441
        %2443 = vrot.lane.b32.xlu0 %v2426, 64
        %v2444 = vpop.permute.xlu0 %2443
        %2445 = vrot.lane.b32.xlu0 %v2427, 64
        %v2446 = vpop.permute.xlu0 %2445
        %2447 = vrot.lane.b32.xlu0 %v2428, 64
        %v2448 = vpop.permute.xlu0 %2447
        %2449 = vrot.lane.b32.xlu0 %v2429, 64
        %v2450 = vpop.permute.xlu0 %2449
        %2451 = vrot.lane.b32.xlu0 %v2430, 64
        %v2452 = vpop.permute.xlu0 %2451
        %2453 = vrot.lane.b32.xlu0 %v2431, 64
        %v2454 = vpop.permute.xlu0 %2453
        %2455 = vrot.lane.b32.xlu0 %v2432, 64
        %v2456 = vpop.permute.xlu0 %2455
        %2465 = vst.msk [vmem:[#allocation2 + $0x140] sm:$0xf] %vm1600, %v2442
        %2466 = vst.msk [vmem:[#allocation2 + $0x144] sm:$0xf] %vm1600, %v2444
        %2467 = vst.msk [vmem:[#allocation2 + $0x148] sm:$0xf] %vm1600, %v2446
        %2468 = vst.msk [vmem:[#allocation2 + $0x14c] sm:$0xf] %vm1600, %v2448
        %2469 = vst.msk [vmem:[#allocation2 + $0x150] sm:$0xf] %vm1600, %v2450
        %2470 = vst.msk [vmem:[#allocation2 + $0x154] sm:$0xf] %vm1600, %v2452
        %2471 = vst.msk [vmem:[#allocation2 + $0x158] sm:$0xf] %vm1600, %v2454
        %2472 = vst.msk [vmem:[#allocation2 + $0x15c] sm:$0xf] %vm1600, %v2456
        %v2473 = vsub.f32 %v2305, %v1429
        %v2474 = vsub.f32 %v2306, %v1436
        %v2475 = vsub.f32 %v2307, %v1443
        %v2476 = vsub.f32 %v2308, %v1450
        %v2477 = vsub.f32 %v2309, %v1457
        %v2478 = vsub.f32 %v2310, %v1464
        %v2479 = vsub.f32 %v2311, %v1471
        %v2480 = vsub.f32 %v2312, %v1478
        %v2481 = vmul.f32 %v2473, %v1248
        %v2482 = vmul.f32 %v2474, %v1250
        %v2483 = vmul.f32 %v2475, %v1253
        %v2484 = vmul.f32 %v2476, %v1255
        %v2485 = vmul.f32 %v2477, %v1258
        %v2486 = vmul.f32 %v2478, %v1260
        %v2487 = vmul.f32 %v2479, %v1263
        %v2488 = vmul.f32 %v2480, %v1265
        %v2489 = vpack.c.bf16 %v2481, %v2481
        %v2490 = vpack.c.bf16 %v2482, %v2482
        %v2491 = vpack.c.bf16 %v2483, %v2483
        %v2492 = vpack.c.bf16 %v2484, %v2484
        %v2493 = vpack.c.bf16 %v2485, %v2485
        %v2494 = vpack.c.bf16 %v2486, %v2486
        %v2495 = vpack.c.bf16 %v2487, %v2487
        %v2496 = vpack.c.bf16 %v2488, %v2488
        %2505 = vrot.lane.b32.xlu0 %v2489, 64
        %v2506 = vpop.permute.xlu0 %2505
        %2507 = vrot.lane.b32.xlu0 %v2490, 64
        %v2508 = vpop.permute.xlu0 %2507
        %2509 = vrot.lane.b32.xlu0 %v2491, 64
        %v2510 = vpop.permute.xlu0 %2509
        %2511 = vrot.lane.b32.xlu0 %v2492, 64
        %v2512 = vpop.permute.xlu0 %2511
        %2513 = vrot.lane.b32.xlu0 %v2493, 64
        %v2514 = vpop.permute.xlu0 %2513
        %2515 = vrot.lane.b32.xlu0 %v2494, 64
        %v2516 = vpop.permute.xlu0 %2515
        %2517 = vrot.lane.b32.xlu0 %v2495, 64
        %v2518 = vpop.permute.xlu0 %2517
        %2519 = vrot.lane.b32.xlu0 %v2496, 64
        %v2520 = vpop.permute.xlu0 %2519
        %2529 = vst.msk [vmem:[#allocation2 + $0x160] sm:$0xf] %vm1600, %v2506
        %2530 = vst.msk [vmem:[#allocation2 + $0x164] sm:$0xf] %vm1600, %v2508
        %2531 = vst.msk [vmem:[#allocation2 + $0x168] sm:$0xf] %vm1600, %v2510
        %2532 = vst.msk [vmem:[#allocation2 + $0x16c] sm:$0xf] %vm1600, %v2512
        %2533 = vst.msk [vmem:[#allocation2 + $0x170] sm:$0xf] %vm1600, %v2514
        %2534 = vst.msk [vmem:[#allocation2 + $0x174] sm:$0xf] %vm1600, %v2516
        %2535 = vst.msk [vmem:[#allocation2 + $0x178] sm:$0xf] %vm1600, %v2518
        %2536 = vst.msk [vmem:[#allocation2 + $0x17c] sm:$0xf] %vm1600, %v2520
        %v2537 = vsub.f32 %v2305, %v2282
        %v2538 = vsub.f32 %v2306, %v2284
        %v2539 = vsub.f32 %v2307, %v2286
        %v2540 = vsub.f32 %v2308, %v2288
        %v2541 = vsub.f32 %v2309, %v2290
        %v2542 = vsub.f32 %v2310, %v2292
        %v2543 = vsub.f32 %v2311, %v2294
        %v2544 = vsub.f32 %v2312, %v2296
        %2553 = vrot.lane.b32.xlu0 %v1277, 64
        %v2554 = vpop.permute.xlu0 %2553
        %2555 = vrot.lane.b32.xlu0 %v1279, 64
        %v2556 = vpop.permute.xlu0 %2555
        %2557 = vrot.lane.b32.xlu0 %v1282, 64
        %v2558 = vpop.permute.xlu0 %2557
        %2559 = vrot.lane.b32.xlu0 %v1284, 64
        %v2560 = vpop.permute.xlu0 %2559
        %2561 = vrot.lane.b32.xlu0 %v1287, 64
        %v2562 = vpop.permute.xlu0 %2561
        %2563 = vrot.lane.b32.xlu0 %v1289, 64
        %v2564 = vpop.permute.xlu0 %2563
        %2565 = vrot.lane.b32.xlu0 %v1292, 64
        %v2566 = vpop.permute.xlu0 %2565
        %2567 = vrot.lane.b32.xlu0 %v1294, 64
        %v2568 = vpop.permute.xlu0 %2567
        %v2577 = vmul.f32 %v2537, %v2554
        %v2578 = vmul.f32 %v2538, %v2556
        %v2579 = vmul.f32 %v2539, %v2558
        %v2580 = vmul.f32 %v2540, %v2560
        %v2581 = vmul.f32 %v2541, %v2562
        %v2582 = vmul.f32 %v2542, %v2564
        %v2583 = vmul.f32 %v2543, %v2566
        %v2584 = vmul.f32 %v2544, %v2568
        %v2585 = vpack.c.bf16 %v2577, %v2577
        %v2586 = vpack.c.bf16 %v2578, %v2578
        %v2587 = vpack.c.bf16 %v2579, %v2579
        %v2588 = vpack.c.bf16 %v2580, %v2580
        %v2589 = vpack.c.bf16 %v2581, %v2581
        %v2590 = vpack.c.bf16 %v2582, %v2582
        %v2591 = vpack.c.bf16 %v2583, %v2583
        %v2592 = vpack.c.bf16 %v2584, %v2584
        %2601 = vrot.lane.b32.xlu0 %v2585, 64
        %v2602 = vpop.permute.xlu0 %2601
        %2603 = vrot.lane.b32.xlu0 %v2586, 64
        %v2604 = vpop.permute.xlu0 %2603
        %2605 = vrot.lane.b32.xlu0 %v2587, 64
        %v2606 = vpop.permute.xlu0 %2605
        %2607 = vrot.lane.b32.xlu0 %v2588, 64
        %v2608 = vpop.permute.xlu0 %2607
        %2609 = vrot.lane.b32.xlu0 %v2589, 64
        %v2610 = vpop.permute.xlu0 %2609
        %2611 = vrot.lane.b32.xlu0 %v2590, 64
        %v2612 = vpop.permute.xlu0 %2611
        %2613 = vrot.lane.b32.xlu0 %v2591, 64
        %v2614 = vpop.permute.xlu0 %2613
        %2615 = vrot.lane.b32.xlu0 %v2592, 64
        %v2616 = vpop.permute.xlu0 %2615
        %2625 = vst.msk [vmem:[#allocation2 + $0x180] sm:$0xf] %vm1600, %v2602
        %2626 = vst.msk [vmem:[#allocation2 + $0x184] sm:$0xf] %vm1600, %v2604
        %2627 = vst.msk [vmem:[#allocation2 + $0x188] sm:$0xf] %vm1600, %v2606
        %2628 = vst.msk [vmem:[#allocation2 + $0x18c] sm:$0xf] %vm1600, %v2608
        %2629 = vst.msk [vmem:[#allocation2 + $0x190] sm:$0xf] %vm1600, %v2610
        %2630 = vst.msk [vmem:[#allocation2 + $0x194] sm:$0xf] %vm1600, %v2612
        %2631 = vst.msk [vmem:[#allocation2 + $0x198] sm:$0xf] %vm1600, %v2614
        %2632 = vst.msk [vmem:[#allocation2 + $0x19c] sm:$0xf] %vm1600, %v2616
        %v2633 = vmul.f32 %v2305, 0.1764706
        %v2634 = vmul.f32 %v2306, 0.1764706
        %v2635 = vmul.f32 %v2307, 0.1764706
        %v2636 = vmul.f32 %v2308, 0.1764706
        %v2637 = vmul.f32 %v2309, 0.1764706
        %v2638 = vmul.f32 %v2310, 0.1764706
        %v2639 = vmul.f32 %v2311, 0.1764706
        %v2640 = vmul.f32 %v2312, 0.1764706
        %v2641 = vld [vmem:[#allocation2] sm:$0xf]
        %v2642 = vld [vmem:[#allocation2 + $0x4] sm:$0xf]
        %v2643 = vld [vmem:[#allocation2 + $0x8] sm:$0xf]
        %v2644 = vld [vmem:[#allocation2 + $0xc] sm:$0xf]
        %v2645 = vld [vmem:[#allocation2 + $0x10] sm:$0xf]
        %v2646 = vld [vmem:[#allocation2 + $0x14] sm:$0xf]
        %v2647 = vld [vmem:[#allocation2 + $0x18] sm:$0xf]
        %v2648 = vld [vmem:[#allocation2 + $0x1c] sm:$0xf]
        %v2649 = vld [vmem:[#allocation2 + $0x20] sm:$0xf]
        %v2650 = vld [vmem:[#allocation2 + $0x24] sm:$0xf]
        %v2651 = vld [vmem:[#allocation2 + $0x28] sm:$0xf]
        %v2652 = vld [vmem:[#allocation2 + $0x2c] sm:$0xf]
        %v2653 = vld [vmem:[#allocation2 + $0x30] sm:$0xf]
        %v2654 = vld [vmem:[#allocation2 + $0x34] sm:$0xf]
        %v2655 = vld [vmem:[#allocation2 + $0x38] sm:$0xf]
        %v2656 = vld [vmem:[#allocation2 + $0x3c] sm:$0xf]
        %v2657 = vld [vmem:[#allocation2 + $0x40] sm:$0xf]
        %v2658 = vld [vmem:[#allocation2 + $0x44] sm:$0xf]
        %v2659 = vld [vmem:[#allocation2 + $0x48] sm:$0xf]
        %v2660 = vld [vmem:[#allocation2 + $0x4c] sm:$0xf]
        %v2661 = vld [vmem:[#allocation2 + $0x50] sm:$0xf]
        %v2662 = vld [vmem:[#allocation2 + $0x54] sm:$0xf]
        %v2663 = vld [vmem:[#allocation2 + $0x58] sm:$0xf]
        %v2664 = vld [vmem:[#allocation2 + $0x5c] sm:$0xf]
        %v2665 = vld [vmem:[#allocation2 + $0x60] sm:$0xf]
        %v2666 = vld [vmem:[#allocation2 + $0x64] sm:$0xf]
        %v2667 = vld [vmem:[#allocation2 + $0x68] sm:$0xf]
        %v2668 = vld [vmem:[#allocation2 + $0x6c] sm:$0xf]
        %v2669 = vld [vmem:[#allocation2 + $0x70] sm:$0xf]
        %v2670 = vld [vmem:[#allocation2 + $0x74] sm:$0xf]
        %v2671 = vld [vmem:[#allocation2 + $0x78] sm:$0xf]
        %v2672 = vld [vmem:[#allocation2 + $0x7c] sm:$0xf]
        %v2673 = vld [vmem:[#allocation2 + $0x80] sm:$0xf]
        %v2674 = vld [vmem:[#allocation2 + $0x84] sm:$0xf]
        %v2675 = vld [vmem:[#allocation2 + $0x88] sm:$0xf]
        %v2676 = vld [vmem:[#allocation2 + $0x8c] sm:$0xf]
        %v2677 = vld [vmem:[#allocation2 + $0x90] sm:$0xf]
        %v2678 = vld [vmem:[#allocation2 + $0x94] sm:$0xf]
        %v2679 = vld [vmem:[#allocation2 + $0x98] sm:$0xf]
        %v2680 = vld [vmem:[#allocation2 + $0x9c] sm:$0xf]
        %v2681 = vld [vmem:[#allocation2 + $0xa0] sm:$0xf]
        %v2682 = vld [vmem:[#allocation2 + $0xa4] sm:$0xf]
        %v2683 = vld [vmem:[#allocation2 + $0xa8] sm:$0xf]
        %v2684 = vld [vmem:[#allocation2 + $0xac] sm:$0xf]
        %v2685 = vld [vmem:[#allocation2 + $0xb0] sm:$0xf]
        %v2686 = vld [vmem:[#allocation2 + $0xb4] sm:$0xf]
        %v2687 = vld [vmem:[#allocation2 + $0xb8] sm:$0xf]
        %v2688 = vld [vmem:[#allocation2 + $0xbc] sm:$0xf]
        %v2689 = vld [vmem:[#allocation2 + $0xc0] sm:$0xf]
        %v2690 = vld [vmem:[#allocation2 + $0xc4] sm:$0xf]
        %v2691 = vld [vmem:[#allocation2 + $0xc8] sm:$0xf]
        %v2692 = vld [vmem:[#allocation2 + $0xcc] sm:$0xf]
        %v2693 = vld [vmem:[#allocation2 + $0xd0] sm:$0xf]
        %v2694 = vld [vmem:[#allocation2 + $0xd4] sm:$0xf]
        %v2695 = vld [vmem:[#allocation2 + $0xd8] sm:$0xf]
        %v2696 = vld [vmem:[#allocation2 + $0xdc] sm:$0xf]
        %v2697 = vld [vmem:[#allocation2 + $0xe0] sm:$0xf]
        %v2698 = vld [vmem:[#allocation2 + $0xe4] sm:$0xf]
        %v2699 = vld [vmem:[#allocation2 + $0xe8] sm:$0xf]
        %v2700 = vld [vmem:[#allocation2 + $0xec] sm:$0xf]
        %v2701 = vld [vmem:[#allocation2 + $0xf0] sm:$0xf]
        %v2702 = vld [vmem:[#allocation2 + $0xf4] sm:$0xf]
        %v2703 = vld [vmem:[#allocation2 + $0xf8] sm:$0xf]
        %v2704 = vld [vmem:[#allocation2 + $0xfc] sm:$0xf]
        %v2705 = vld [vmem:[#allocation2 + $0x100] sm:$0xf]
        %v2706 = vld [vmem:[#allocation2 + $0x104] sm:$0xf]
        %v2707 = vld [vmem:[#allocation2 + $0x108] sm:$0xf]
        %v2708 = vld [vmem:[#allocation2 + $0x10c] sm:$0xf]
        %v2709 = vld [vmem:[#allocation2 + $0x110] sm:$0xf]
        %v2710 = vld [vmem:[#allocation2 + $0x114] sm:$0xf]
        %v2711 = vld [vmem:[#allocation2 + $0x118] sm:$0xf]
        %v2712 = vld [vmem:[#allocation2 + $0x11c] sm:$0xf]
        %v2713 = vld [vmem:[#allocation2 + $0x120] sm:$0xf]
        %v2714 = vld [vmem:[#allocation2 + $0x124] sm:$0xf]
        %v2715 = vld [vmem:[#allocation2 + $0x128] sm:$0xf]
        %v2716 = vld [vmem:[#allocation2 + $0x12c] sm:$0xf]
        %v2717 = vld [vmem:[#allocation2 + $0x130] sm:$0xf]
        %v2718 = vld [vmem:[#allocation2 + $0x134] sm:$0xf]
        %v2719 = vld [vmem:[#allocation2 + $0x138] sm:$0xf]
        %v2720 = vld [vmem:[#allocation2 + $0x13c] sm:$0xf]
        %v2721 = vld [vmem:[#allocation2 + $0x140] sm:$0xf]
        %v2722 = vld [vmem:[#allocation2 + $0x144] sm:$0xf]
        %v2723 = vld [vmem:[#allocation2 + $0x148] sm:$0xf]
        %v2724 = vld [vmem:[#allocation2 + $0x14c] sm:$0xf]
        %v2725 = vld [vmem:[#allocation2 + $0x150] sm:$0xf]
        %v2726 = vld [vmem:[#allocation2 + $0x154] sm:$0xf]
        %v2727 = vld [vmem:[#allocation2 + $0x158] sm:$0xf]
        %v2728 = vld [vmem:[#allocation2 + $0x15c] sm:$0xf]
        %v2729 = vld [vmem:[#allocation2 + $0x160] sm:$0xf]
        %v2730 = vld [vmem:[#allocation2 + $0x164] sm:$0xf]
        %v2731 = vld [vmem:[#allocation2 + $0x168] sm:$0xf]
        %v2732 = vld [vmem:[#allocation2 + $0x16c] sm:$0xf]
        %v2733 = vld [vmem:[#allocation2 + $0x170] sm:$0xf]
        %v2734 = vld [vmem:[#allocation2 + $0x174] sm:$0xf]
        %v2735 = vld [vmem:[#allocation2 + $0x178] sm:$0xf]
        %v2736 = vld [vmem:[#allocation2 + $0x17c] sm:$0xf]
        %v2737 = vld [vmem:[#allocation2 + $0x180] sm:$0xf]
        %v2738 = vld [vmem:[#allocation2 + $0x184] sm:$0xf]
        %v2739 = vld [vmem:[#allocation2 + $0x188] sm:$0xf]
        %v2740 = vld [vmem:[#allocation2 + $0x18c] sm:$0xf]
        %v2741 = vld [vmem:[#allocation2 + $0x190] sm:$0xf]
        %v2742 = vld [vmem:[#allocation2 + $0x194] sm:$0xf]
        %v2743 = vld [vmem:[#allocation2 + $0x198] sm:$0xf]
        %v2744 = vld [vmem:[#allocation2 + $0x19c] sm:$0xf]
        %v2745 = vld [vmem:[#allocation8] sm:$0xf]
        %v2746 = vld [vmem:[#allocation8 + $0x4] sm:$0xf]
        %v2747 = vld [vmem:[#allocation8 + $0x8] sm:$0xf]
        %v2748 = vld [vmem:[#allocation8 + $0xc] sm:$0xf]
        %v2749 = vld [vmem:[#allocation8 + $0x10] sm:$0xf]
        %v2750 = vld [vmem:[#allocation8 + $0x14] sm:$0xf]
        %v2751 = vld [vmem:[#allocation8 + $0x18] sm:$0xf]
        %v2752 = vld [vmem:[#allocation8 + $0x1c] sm:$0xf]
        %v2857 = vunpack.c.l.b16 %v2641
        %v2858 = vunpack.c.l.b16 %v2642
        %v2859 = vunpack.c.l.b16 %v2643
        %v2860 = vunpack.c.l.b16 %v2644
        %v2861 = vunpack.c.l.b16 %v2645
        %v2862 = vunpack.c.l.b16 %v2646
        %v2863 = vunpack.c.l.b16 %v2647
        %v2864 = vunpack.c.l.b16 %v2648
        %v2865 = vunpack.c.l.b16 %v2649
        %v2866 = vunpack.c.l.b16 %v2650
        %v2867 = vunpack.c.l.b16 %v2651
        %v2868 = vunpack.c.l.b16 %v2652
        %v2869 = vunpack.c.l.b16 %v2653
        %v2870 = vunpack.c.l.b16 %v2654
        %v2871 = vunpack.c.l.b16 %v2655
        %v2872 = vunpack.c.l.b16 %v2656
        %v2873 = vunpack.c.l.b16 %v2657
        %v2874 = vunpack.c.l.b16 %v2658
        %v2875 = vunpack.c.l.b16 %v2659
        %v2876 = vunpack.c.l.b16 %v2660
        %v2877 = vunpack.c.l.b16 %v2661
        %v2878 = vunpack.c.l.b16 %v2662
        %v2879 = vunpack.c.l.b16 %v2663
        %v2880 = vunpack.c.l.b16 %v2664
        %v2881 = vunpack.c.l.b16 %v2665
        %v2882 = vunpack.c.l.b16 %v2666
        %v2883 = vunpack.c.l.b16 %v2667
        %v2884 = vunpack.c.l.b16 %v2668
        %v2885 = vunpack.c.l.b16 %v2669
        %v2886 = vunpack.c.l.b16 %v2670
        %v2887 = vunpack.c.l.b16 %v2671
        %v2888 = vunpack.c.l.b16 %v2672
        %v2889 = vunpack.c.l.b16 %v2673
        %v2890 = vunpack.c.l.b16 %v2674
        %v2891 = vunpack.c.l.b16 %v2675
        %v2892 = vunpack.c.l.b16 %v2676
        %v2893 = vunpack.c.l.b16 %v2677
        %v2894 = vunpack.c.l.b16 %v2678
        %v2895 = vunpack.c.l.b16 %v2679
        %v2896 = vunpack.c.l.b16 %v2680
        %v2897 = vunpack.c.l.b16 %v2681
        %v2898 = vunpack.c.l.b16 %v2682
        %v2899 = vunpack.c.l.b16 %v2683
        %v2900 = vunpack.c.l.b16 %v2684
        %v2901 = vunpack.c.l.b16 %v2685
        %v2902 = vunpack.c.l.b16 %v2686
        %v2903 = vunpack.c.l.b16 %v2687
        %v2904 = vunpack.c.l.b16 %v2688
        %v2905 = vunpack.c.l.b16 %v2689
        %v2906 = vunpack.c.l.b16 %v2690
        %v2907 = vunpack.c.l.b16 %v2691
        %v2908 = vunpack.c.l.b16 %v2692
        %v2909 = vunpack.c.l.b16 %v2693
        %v2910 = vunpack.c.l.b16 %v2694
        %v2911 = vunpack.c.l.b16 %v2695
        %v2912 = vunpack.c.l.b16 %v2696
        %v2913 = vunpack.c.l.b16 %v2697
        %v2914 = vunpack.c.l.b16 %v2698
        %v2915 = vunpack.c.l.b16 %v2699
        %v2916 = vunpack.c.l.b16 %v2700
        %v2917 = vunpack.c.l.b16 %v2701
        %v2918 = vunpack.c.l.b16 %v2702
        %v2919 = vunpack.c.l.b16 %v2703
        %v2920 = vunpack.c.l.b16 %v2704
        %v2921 = vunpack.c.l.b16 %v2705
        %v2922 = vunpack.c.l.b16 %v2706
        %v2923 = vunpack.c.l.b16 %v2707
        %v2924 = vunpack.c.l.b16 %v2708
        %v2925 = vunpack.c.l.b16 %v2709
        %v2926 = vunpack.c.l.b16 %v2710
        %v2927 = vunpack.c.l.b16 %v2711
        %v2928 = vunpack.c.l.b16 %v2712
        %v2929 = vunpack.c.l.b16 %v2713
        %v2930 = vunpack.c.l.b16 %v2714
        %v2931 = vunpack.c.l.b16 %v2715
        %v2932 = vunpack.c.l.b16 %v2716
        %v2933 = vunpack.c.l.b16 %v2717
        %v2934 = vunpack.c.l.b16 %v2718
        %v2935 = vunpack.c.l.b16 %v2719
        %v2936 = vunpack.c.l.b16 %v2720
        %v2937 = vunpack.c.l.b16 %v2721
        %v2938 = vunpack.c.l.b16 %v2722
        %v2939 = vunpack.c.l.b16 %v2723
        %v2940 = vunpack.c.l.b16 %v2724
        %v2941 = vunpack.c.l.b16 %v2725
        %v2942 = vunpack.c.l.b16 %v2726
        %v2943 = vunpack.c.l.b16 %v2727
        %v2944 = vunpack.c.l.b16 %v2728
        %v2945 = vunpack.c.l.b16 %v2729
        %v2946 = vunpack.c.l.b16 %v2730
        %v2947 = vunpack.c.l.b16 %v2731
        %v2948 = vunpack.c.l.b16 %v2732
        %v2949 = vunpack.c.l.b16 %v2733
        %v2950 = vunpack.c.l.b16 %v2734
        %v2951 = vunpack.c.l.b16 %v2735
        %v2952 = vunpack.c.l.b16 %v2736
        %v2953 = vunpack.c.l.b16 %v2737
        %v2954 = vunpack.c.l.b16 %v2738
        %v2955 = vunpack.c.l.b16 %v2739
        %v2956 = vunpack.c.l.b16 %v2740
        %v2957 = vunpack.c.l.b16 %v2741
        %v2958 = vunpack.c.l.b16 %v2742
        %v2959 = vunpack.c.l.b16 %v2743
        %v2960 = vunpack.c.l.b16 %v2744
        %v2961 = vpack.c.b16 %v2858, %v2857
        %v2962 = vpack.c.b16 %v2860, %v2859
        %v2963 = vpack.c.b16 %v2862, %v2861
        %v2964 = vpack.c.b16 %v2864, %v2863
        %v2965 = vpack.c.b16 %v2866, %v2865
        %v2966 = vpack.c.b16 %v2868, %v2867
        %v2967 = vpack.c.b16 %v2870, %v2869
        %v2968 = vpack.c.b16 %v2872, %v2871
        %v2969 = vpack.c.b16 %v2874, %v2873
        %v2970 = vpack.c.b16 %v2876, %v2875
        %v2971 = vpack.c.b16 %v2878, %v2877
        %v2972 = vpack.c.b16 %v2880, %v2879
        %v2973 = vpack.c.b16 %v2882, %v2881
        %v2974 = vpack.c.b16 %v2884, %v2883
        %v2975 = vpack.c.b16 %v2886, %v2885
        %v2976 = vpack.c.b16 %v2888, %v2887
        %v2977 = vpack.c.b16 %v2890, %v2889
        %v2978 = vpack.c.b16 %v2892, %v2891
        %v2979 = vpack.c.b16 %v2894, %v2893
        %v2980 = vpack.c.b16 %v2896, %v2895
        %v2981 = vpack.c.b16 %v2898, %v2897
        %v2982 = vpack.c.b16 %v2900, %v2899
        %v2983 = vpack.c.b16 %v2902, %v2901
        %v2984 = vpack.c.b16 %v2904, %v2903
        %v2985 = vpack.c.b16 %v2906, %v2905
        %v2986 = vpack.c.b16 %v2908, %v2907
        %v2987 = vpack.c.b16 %v2910, %v2909
        %v2988 = vpack.c.b16 %v2912, %v2911
        %v2989 = vpack.c.b16 %v2914, %v2913
        %v2990 = vpack.c.b16 %v2916, %v2915
        %v2991 = vpack.c.b16 %v2918, %v2917
        %v2992 = vpack.c.b16 %v2920, %v2919
        %v2993 = vpack.c.b16 %v2922, %v2921
        %v2994 = vpack.c.b16 %v2924, %v2923
        %v2995 = vpack.c.b16 %v2926, %v2925
        %v2996 = vpack.c.b16 %v2928, %v2927
        %v2997 = vpack.c.b16 %v2930, %v2929
        %v2998 = vpack.c.b16 %v2932, %v2931
        %v2999 = vpack.c.b16 %v2934, %v2933
        %v3000 = vpack.c.b16 %v2936, %v2935
        %v3001 = vpack.c.b16 %v2938, %v2937
        %v3002 = vpack.c.b16 %v2940, %v2939
        %v3003 = vpack.c.b16 %v2942, %v2941
        %v3004 = vpack.c.b16 %v2944, %v2943
        %v3005 = vpack.c.b16 %v2946, %v2945
        %v3006 = vpack.c.b16 %v2948, %v2947
        %v3007 = vpack.c.b16 %v2950, %v2949
        %v3008 = vpack.c.b16 %v2952, %v2951
        %v3009 = vpack.c.b16 %v2954, %v2953
        %v3010 = vpack.c.b16 %v2956, %v2955
        %v3011 = vpack.c.b16 %v2958, %v2957
        %v3012 = vpack.c.b16 %v2960, %v2959
        %v3021 = vunpack.c.l.b16 %v2745
        %v3022 = vunpack.c.l.b16 %v2746
        %v3023 = vunpack.c.l.b16 %v2747
        %v3024 = vunpack.c.l.b16 %v2748
        %v3025 = vunpack.c.l.b16 %v2749
        %v3026 = vunpack.c.l.b16 %v2750
        %v3027 = vunpack.c.l.b16 %v2751
        %v3028 = vunpack.c.l.b16 %v2752
        %v3029 = vpack.c.b16 %v3022, %v3021
        %v3030 = vpack.c.b16 %v3024, %v3023
        %v3031 = vpack.c.b16 %v3026, %v3025
        %v3032 = vpack.c.b16 %v3028, %v3027
        %v3038 = vsel %vm877, %v2961, 0
        %v3041 = vsel %vm877, %v2962, 0
        %v3044 = vsel %vm877, %v2963, 0
        %v3047 = vsel %vm877, %v2964, 0
        %v3050 = vsel %vm877, %v2965, 0
        %v3053 = vsel %vm877, %v2966, 0
        %v3056 = vsel %vm877, %v2967, 0
        %v3059 = vsel %vm877, %v2968, 0
        %v3062 = vsel %vm877, %v2969, 0
        %v3065 = vsel %vm877, %v2970, 0
        %v3068 = vsel %vm877, %v2971, 0
        %v3071 = vsel %vm877, %v2972, 0
        %v3074 = vsel %vm877, %v2973, 0
        %v3077 = vsel %vm877, %v2974, 0
        %v3080 = vsel %vm877, %v2975, 0
        %v3083 = vsel %vm877, %v2976, 0
        %v3086 = vsel %vm877, %v2977, 0
        %v3089 = vsel %vm877, %v2978, 0
        %v3092 = vsel %vm877, %v2979, 0
        %v3095 = vsel %vm877, %v2980, 0
        %v3098 = vsel %vm877, %v2981, 0
        %v3101 = vsel %vm877, %v2982, 0
        %v3104 = vsel %vm877, %v2983, 0
        %v3107 = vsel %vm877, %v2984, 0
        %v3110 = vsel %vm877, %v2985, 0
        %v3113 = vsel %vm877, %v2986, 0
        %v3116 = vsel %vm877, %v2987, 0
        %v3119 = vsel %vm877, %v2988, 0
        %v3122 = vsel %vm877, %v2989, 0
        %v3125 = vsel %vm877, %v2990, 0
        %v3128 = vsel %vm877, %v2991, 0
        %v3131 = vsel %vm877, %v2992, 0
        %v3134 = vsel %vm877, %v2993, 0
        %v3137 = vsel %vm877, %v2994, 0
        %v3140 = vsel %vm877, %v2995, 0
        %v3143 = vsel %vm877, %v2996, 0
        %v3146 = vsel %vm877, %v2997, 0
        %v3149 = vsel %vm877, %v2998, 0
        %v3152 = vsel %vm877, %v2999, 0
        %v3155 = vsel %vm877, %v3000, 0
        %v3158 = vsel %vm877, %v3001, 0
        %v3161 = vsel %vm877, %v3002, 0
        %v3164 = vsel %vm877, %v3003, 0
        %v3167 = vsel %vm877, %v3004, 0
        %v3170 = vsel %vm877, %v3005, 0
        %v3173 = vsel %vm877, %v3006, 0
        %v3176 = vsel %vm877, %v3007, 0
        %v3179 = vsel %vm877, %v3008, 0
        %v3182 = vsel %vm877, %v3009, 0
        %v3185 = vsel %vm877, %v3010, 0
        %v3188 = vsel %vm877, %v3011, 0
        %v3191 = vsel %vm877, %v3012, 0
        %3193 = vmatpush.bf16.msra.mxu0 0
        %3194 = vmatpush.bf16.msra.mxu0 0
        %3195 = vmatpush.bf16.msra.mxu0 0
        %3196 = vmatpush.bf16.msra.mxu0 0
        %3197 = vmatpush.bf16.msra.mxu0 %v3032
        %3198 = vmatpush.bf16.msra.mxu0 %v3031
        %3199 = vmatpush.bf16.msra.mxu0 %v3030
        %3200 = vmatpush.bf16.msra.mxu0 %v3029
        %3201 = vmatmul.bf16.gmra.mxu0 %v3038
        %v3202 = vpop.f32.mrf.mxu0
        %v3203 = vadd.f32 0.0, %v3202
        %v3204 = vpop.f32.mrf.mxu0
        %v3205 = vadd.f32 0.0, %v3204
        %3206 = vmatmul.bf16.gmra.mxu0 %v3041
        %v3207 = vpop.f32.mrf.mxu0
        %v3208 = vadd.f32 0.0, %v3207
        %v3209 = vpop.f32.mrf.mxu0
        %v3210 = vadd.f32 0.0, %v3209
        %3211 = vmatmul.bf16.gmra.mxu0 %v3044
        %v3212 = vpop.f32.mrf.mxu0
        %v3213 = vadd.f32 0.0, %v3212
        %v3214 = vpop.f32.mrf.mxu0
        %v3215 = vadd.f32 0.0, %v3214
        %3216 = vmatmul.bf16.gmra.mxu0 %v3047
        %v3217 = vpop.f32.mrf.mxu0
        %v3218 = vadd.f32 0.0, %v3217
        %v3219 = vpop.f32.mrf.mxu0
        %v3220 = vadd.f32 0.0, %v3219
        %3221 = vmatmul.bf16.gmra.mxu0 %v3050
        %v3222 = vpop.f32.mrf.mxu0
        %v3223 = vadd.f32 0.0, %v3222
        %v3224 = vpop.f32.mrf.mxu0
        %v3225 = vadd.f32 0.0, %v3224
        %3226 = vmatmul.bf16.gmra.mxu0 %v3053
        %v3227 = vpop.f32.mrf.mxu0
        %v3228 = vadd.f32 0.0, %v3227
        %v3229 = vpop.f32.mrf.mxu0
        %v3230 = vadd.f32 0.0, %v3229
        %3231 = vmatmul.bf16.gmra.mxu0 %v3056
        %v3232 = vpop.f32.mrf.mxu0
        %v3233 = vadd.f32 0.0, %v3232
        %v3234 = vpop.f32.mrf.mxu0
        %v3235 = vadd.f32 0.0, %v3234
        %3236 = vmatmul.bf16.gmra.mxu0 %v3059
        %v3237 = vpop.f32.mrf.mxu0
        %v3238 = vadd.f32 0.0, %v3237
        %v3239 = vpop.f32.mrf.mxu0
        %v3240 = vadd.f32 0.0, %v3239
        %3241 = vmatmul.bf16.gmra.mxu0 %v3062
        %v3242 = vpop.f32.mrf.mxu0
        %v3243 = vadd.f32 0.0, %v3242
        %v3244 = vpop.f32.mrf.mxu0
        %v3245 = vadd.f32 0.0, %v3244
        %3246 = vmatmul.bf16.gmra.mxu0 %v3065
        %v3247 = vpop.f32.mrf.mxu0
        %v3248 = vadd.f32 0.0, %v3247
        %v3249 = vpop.f32.mrf.mxu0
        %v3250 = vadd.f32 0.0, %v3249
        %3251 = vmatmul.bf16.gmra.mxu0 %v3068
        %v3252 = vpop.f32.mrf.mxu0
        %v3253 = vadd.f32 0.0, %v3252
        %v3254 = vpop.f32.mrf.mxu0
        %v3255 = vadd.f32 0.0, %v3254
        %3256 = vmatmul.bf16.gmra.mxu0 %v3071
        %v3257 = vpop.f32.mrf.mxu0
        %v3258 = vadd.f32 0.0, %v3257
        %v3259 = vpop.f32.mrf.mxu0
        %v3260 = vadd.f32 0.0, %v3259
        %3261 = vmatmul.bf16.gmra.mxu0 %v3074
        %v3262 = vpop.f32.mrf.mxu0
        %v3263 = vadd.f32 0.0, %v3262
        %v3264 = vpop.f32.mrf.mxu0
        %v3265 = vadd.f32 0.0, %v3264
        %3266 = vmatmul.bf16.gmra.mxu0 %v3077
        %v3267 = vpop.f32.mrf.mxu0
        %v3268 = vadd.f32 0.0, %v3267
        %v3269 = vpop.f32.mrf.mxu0
        %v3270 = vadd.f32 0.0, %v3269
        %3271 = vmatmul.bf16.gmra.mxu0 %v3080
        %v3272 = vpop.f32.mrf.mxu0
        %v3273 = vadd.f32 0.0, %v3272
        %v3274 = vpop.f32.mrf.mxu0
        %v3275 = vadd.f32 0.0, %v3274
        %3276 = vmatmul.bf16.gmra.mxu0 %v3083
        %v3277 = vpop.f32.mrf.mxu0
        %v3278 = vadd.f32 0.0, %v3277
        %v3279 = vpop.f32.mrf.mxu0
        %v3280 = vadd.f32 0.0, %v3279
        %3281 = vmatmul.bf16.gmra.mxu0 %v3086
        %v3282 = vpop.f32.mrf.mxu0
        %v3283 = vadd.f32 0.0, %v3282
        %v3284 = vpop.f32.mrf.mxu0
        %v3285 = vadd.f32 0.0, %v3284
        %3286 = vmatmul.bf16.gmra.mxu0 %v3089
        %v3287 = vpop.f32.mrf.mxu0
        %v3288 = vadd.f32 0.0, %v3287
        %v3289 = vpop.f32.mrf.mxu0
        %v3290 = vadd.f32 0.0, %v3289
        %3291 = vmatmul.bf16.gmra.mxu0 %v3092
        %v3292 = vpop.f32.mrf.mxu0
        %v3293 = vadd.f32 0.0, %v3292
        %v3294 = vpop.f32.mrf.mxu0
        %v3295 = vadd.f32 0.0, %v3294
        %3296 = vmatmul.bf16.gmra.mxu0 %v3095
        %v3297 = vpop.f32.mrf.mxu0
        %v3298 = vadd.f32 0.0, %v3297
        %v3299 = vpop.f32.mrf.mxu0
        %v3300 = vadd.f32 0.0, %v3299
        %3301 = vmatmul.bf16.gmra.mxu0 %v3098
        %v3302 = vpop.f32.mrf.mxu0
        %v3303 = vadd.f32 0.0, %v3302
        %v3304 = vpop.f32.mrf.mxu0
        %v3305 = vadd.f32 0.0, %v3304
        %3306 = vmatmul.bf16.gmra.mxu0 %v3101
        %v3307 = vpop.f32.mrf.mxu0
        %v3308 = vadd.f32 0.0, %v3307
        %v3309 = vpop.f32.mrf.mxu0
        %v3310 = vadd.f32 0.0, %v3309
        %3311 = vmatmul.bf16.gmra.mxu0 %v3104
        %v3312 = vpop.f32.mrf.mxu0
        %v3313 = vadd.f32 0.0, %v3312
        %v3314 = vpop.f32.mrf.mxu0
        %v3315 = vadd.f32 0.0, %v3314
        %3316 = vmatmul.bf16.gmra.mxu0 %v3107
        %v3317 = vpop.f32.mrf.mxu0
        %v3318 = vadd.f32 0.0, %v3317
        %v3319 = vpop.f32.mrf.mxu0
        %v3320 = vadd.f32 0.0, %v3319
        %3321 = vmatmul.bf16.gmra.mxu0 %v3110
        %v3322 = vpop.f32.mrf.mxu0
        %v3323 = vadd.f32 0.0, %v3322
        %v3324 = vpop.f32.mrf.mxu0
        %v3325 = vadd.f32 0.0, %v3324
        %3326 = vmatmul.bf16.gmra.mxu0 %v3113
        %v3327 = vpop.f32.mrf.mxu0
        %v3328 = vadd.f32 0.0, %v3327
        %v3329 = vpop.f32.mrf.mxu0
        %v3330 = vadd.f32 0.0, %v3329
        %3331 = vmatmul.bf16.gmra.mxu0 %v3116
        %v3332 = vpop.f32.mrf.mxu0
        %v3333 = vadd.f32 0.0, %v3332
        %v3334 = vpop.f32.mrf.mxu0
        %v3335 = vadd.f32 0.0, %v3334
        %3336 = vmatmul.bf16.gmra.mxu0 %v3119
        %v3337 = vpop.f32.mrf.mxu0
        %v3338 = vadd.f32 0.0, %v3337
        %v3339 = vpop.f32.mrf.mxu0
        %v3340 = vadd.f32 0.0, %v3339
        %3341 = vmatmul.bf16.gmra.mxu0 %v3122
        %v3342 = vpop.f32.mrf.mxu0
        %v3343 = vadd.f32 0.0, %v3342
        %v3344 = vpop.f32.mrf.mxu0
        %v3345 = vadd.f32 0.0, %v3344
        %3346 = vmatmul.bf16.gmra.mxu0 %v3125
        %v3347 = vpop.f32.mrf.mxu0
        %v3348 = vadd.f32 0.0, %v3347
        %v3349 = vpop.f32.mrf.mxu0
        %v3350 = vadd.f32 0.0, %v3349
        %3351 = vmatmul.bf16.gmra.mxu0 %v3128
        %v3352 = vpop.f32.mrf.mxu0
        %v3353 = vadd.f32 0.0, %v3352
        %v3354 = vpop.f32.mrf.mxu0
        %v3355 = vadd.f32 0.0, %v3354
        %3356 = vmatmul.bf16.gmra.mxu0 %v3131
        %v3357 = vpop.f32.mrf.mxu0
        %v3358 = vadd.f32 0.0, %v3357
        %v3359 = vpop.f32.mrf.mxu0
        %v3360 = vadd.f32 0.0, %v3359
        %3361 = vmatmul.bf16.gmra.mxu0 %v3134
        %v3362 = vpop.f32.mrf.mxu0
        %v3363 = vadd.f32 0.0, %v3362
        %v3364 = vpop.f32.mrf.mxu0
        %v3365 = vadd.f32 0.0, %v3364
        %3366 = vmatmul.bf16.gmra.mxu0 %v3137
        %v3367 = vpop.f32.mrf.mxu0
        %v3368 = vadd.f32 0.0, %v3367
        %v3369 = vpop.f32.mrf.mxu0
        %v3370 = vadd.f32 0.0, %v3369
        %3371 = vmatmul.bf16.gmra.mxu0 %v3140
        %v3372 = vpop.f32.mrf.mxu0
        %v3373 = vadd.f32 0.0, %v3372
        %v3374 = vpop.f32.mrf.mxu0
        %v3375 = vadd.f32 0.0, %v3374
        %3376 = vmatmul.bf16.gmra.mxu0 %v3143
        %v3377 = vpop.f32.mrf.mxu0
        %v3378 = vadd.f32 0.0, %v3377
        %v3379 = vpop.f32.mrf.mxu0
        %v3380 = vadd.f32 0.0, %v3379
        %3381 = vmatmul.bf16.gmra.mxu0 %v3146
        %v3382 = vpop.f32.mrf.mxu0
        %v3383 = vadd.f32 0.0, %v3382
        %v3384 = vpop.f32.mrf.mxu0
        %v3385 = vadd.f32 0.0, %v3384
        %3386 = vmatmul.bf16.gmra.mxu0 %v3149
        %v3387 = vpop.f32.mrf.mxu0
        %v3388 = vadd.f32 0.0, %v3387
        %v3389 = vpop.f32.mrf.mxu0
        %v3390 = vadd.f32 0.0, %v3389
        %3391 = vmatmul.bf16.gmra.mxu0 %v3152
        %v3392 = vpop.f32.mrf.mxu0
        %v3393 = vadd.f32 0.0, %v3392
        %v3394 = vpop.f32.mrf.mxu0
        %v3395 = vadd.f32 0.0, %v3394
        %3396 = vmatmul.bf16.gmra.mxu0 %v3155
        %v3397 = vpop.f32.mrf.mxu0
        %v3398 = vadd.f32 0.0, %v3397
        %v3399 = vpop.f32.mrf.mxu0
        %v3400 = vadd.f32 0.0, %v3399
        %3401 = vmatmul.bf16.gmra.mxu0 %v3158
        %v3402 = vpop.f32.mrf.mxu0
        %v3403 = vadd.f32 0.0, %v3402
        %v3404 = vpop.f32.mrf.mxu0
        %v3405 = vadd.f32 0.0, %v3404
        %3406 = vmatmul.bf16.gmra.mxu0 %v3161
        %v3407 = vpop.f32.mrf.mxu0
        %v3408 = vadd.f32 0.0, %v3407
        %v3409 = vpop.f32.mrf.mxu0
        %v3410 = vadd.f32 0.0, %v3409
        %3411 = vmatmul.bf16.gmra.mxu0 %v3164
        %v3412 = vpop.f32.mrf.mxu0
        %v3413 = vadd.f32 0.0, %v3412
        %v3414 = vpop.f32.mrf.mxu0
        %v3415 = vadd.f32 0.0, %v3414
        %3416 = vmatmul.bf16.gmra.mxu0 %v3167
        %v3417 = vpop.f32.mrf.mxu0
        %v3418 = vadd.f32 0.0, %v3417
        %v3419 = vpop.f32.mrf.mxu0
        %v3420 = vadd.f32 0.0, %v3419
        %3421 = vmatmul.bf16.gmra.mxu0 %v3170
        %v3422 = vpop.f32.mrf.mxu0
        %v3423 = vadd.f32 0.0, %v3422
        %v3424 = vpop.f32.mrf.mxu0
        %v3425 = vadd.f32 0.0, %v3424
        %3426 = vmatmul.bf16.gmra.mxu0 %v3173
        %v3427 = vpop.f32.mrf.mxu0
        %v3428 = vadd.f32 0.0, %v3427
        %v3429 = vpop.f32.mrf.mxu0
        %v3430 = vadd.f32 0.0, %v3429
        %3431 = vmatmul.bf16.gmra.mxu0 %v3176
        %v3432 = vpop.f32.mrf.mxu0
        %v3433 = vadd.f32 0.0, %v3432
        %v3434 = vpop.f32.mrf.mxu0
        %v3435 = vadd.f32 0.0, %v3434
        %3436 = vmatmul.bf16.gmra.mxu0 %v3179
        %v3437 = vpop.f32.mrf.mxu0
        %v3438 = vadd.f32 0.0, %v3437
        %v3439 = vpop.f32.mrf.mxu0
        %v3440 = vadd.f32 0.0, %v3439
        %3441 = vmatmul.bf16.gmra.mxu0 %v3182
        %v3442 = vpop.f32.mrf.mxu0
        %v3443 = vadd.f32 0.0, %v3442
        %v3444 = vpop.f32.mrf.mxu0
        %v3445 = vadd.f32 0.0, %v3444
        %3446 = vmatmul.bf16.gmra.mxu0 %v3185
        %v3447 = vpop.f32.mrf.mxu0
        %v3448 = vadd.f32 0.0, %v3447
        %v3449 = vpop.f32.mrf.mxu0
        %v3450 = vadd.f32 0.0, %v3449
        %3451 = vmatmul.bf16.gmra.mxu0 %v3188
        %v3452 = vpop.f32.mrf.mxu0
        %v3453 = vadd.f32 0.0, %v3452
        %v3454 = vpop.f32.mrf.mxu0
        %v3455 = vadd.f32 0.0, %v3454
        %3456 = vmatmul.bf16.gmra.mxu0 %v3191
        %v3457 = vpop.f32.mrf.mxu0
        %v3458 = vadd.f32 0.0, %v3457
        %v3459 = vpop.f32.mrf.mxu0
        %v3460 = vadd.f32 0.0, %v3459
        %3461 = vdwg.mxu0
        %v3462 = vld [vmem:[%s4] sm:$0x1]
        %v3463 = vmax.f32 %v3203, 0.0
        %v3464 = vmax.f32 %v3205, 0.0
        %v3465 = vmax.f32 %v3208, 0.0
        %v3466 = vmax.f32 %v3210, 0.0
        %v3467 = vmax.f32 %v3213, 0.0
        %v3468 = vmax.f32 %v3215, 0.0
        %v3469 = vmax.f32 %v3218, 0.0
        %v3470 = vmax.f32 %v3220, 0.0
        %v3471 = vmax.f32 %v3463, %v3223
        %v3472 = vmax.f32 %v3464, %v3225
        %v3473 = vmax.f32 %v3465, %v3228
        %v3474 = vmax.f32 %v3466, %v3230
        %v3475 = vmax.f32 %v3467, %v3233
        %v3476 = vmax.f32 %v3468, %v3235
        %v3477 = vmax.f32 %v3469, %v3238
        %v3478 = vmax.f32 %v3470, %v3240
        %v3479 = vmax.f32 %v3471, %v3243
        %v3480 = vmax.f32 %v3472, %v3245
        %v3481 = vmax.f32 %v3473, %v3248
        %v3482 = vmax.f32 %v3474, %v3250
        %v3483 = vmax.f32 %v3475, %v3253
        %v3484 = vmax.f32 %v3476, %v3255
        %v3485 = vmax.f32 %v3477, %v3258
        %v3486 = vmax.f32 %v3478, %v3260
        %v3487 = vmax.f32 %v3479, %v3263
        %v3488 = vmax.f32 %v3480, %v3265
        %v3489 = vmax.f32 %v3481, %v3268
        %v3490 = vmax.f32 %v3482, %v3270
        %v3491 = vmax.f32 %v3483, %v3273
        %v3492 = vmax.f32 %v3484, %v3275
        %v3493 = vmax.f32 %v3485, %v3278
        %v3494 = vmax.f32 %v3486, %v3280
        %v3495 = vmax.f32 %v3283, 0.0
        %v3496 = vmax.f32 %v3285, 0.0
        %v3497 = vmax.f32 %v3288, 0.0
        %v3498 = vmax.f32 %v3290, 0.0
        %v3499 = vmax.f32 %v3293, 0.0
        %v3500 = vmax.f32 %v3295, 0.0
        %v3501 = vmax.f32 %v3298, 0.0
        %v3502 = vmax.f32 %v3300, 0.0
        %v3503 = vmax.f32 %v3495, %v3263
        %v3504 = vmax.f32 %v3496, %v3265
        %v3505 = vmax.f32 %v3497, %v3268
        %v3506 = vmax.f32 %v3498, %v3270
        %v3507 = vmax.f32 %v3499, %v3273
        %v3508 = vmax.f32 %v3500, %v3275
        %v3509 = vmax.f32 %v3501, %v3278
        %v3510 = vmax.f32 %v3502, %v3280
        %v3511 = vmax.f32 %v3503, %v3243
        %v3512 = vmax.f32 %v3504, %v3245
        %v3513 = vmax.f32 %v3505, %v3248
        %v3514 = vmax.f32 %v3506, %v3250
        %v3515 = vmax.f32 %v3507, %v3253
        %v3516 = vmax.f32 %v3508, %v3255
        %v3517 = vmax.f32 %v3509, %v3258
        %v3518 = vmax.f32 %v3510, %v3260
        %v3519 = vmax.f32 %v3511, %v3223
        %v3520 = vmax.f32 %v3512, %v3225
        %v3521 = vmax.f32 %v3513, %v3228
        %v3522 = vmax.f32 %v3514, %v3230
        %v3523 = vmax.f32 %v3515, %v3233
        %v3524 = vmax.f32 %v3516, %v3235
        %v3525 = vmax.f32 %v3517, %v3238
        %v3526 = vmax.f32 %v3518, %v3240
        %3535 = vrot.lane.b32.xlu0 %v3519, 64
        %v3536 = vpop.permute.xlu0 %3535
        %3537 = vrot.lane.b32.xlu0 %v3520, 64
        %v3538 = vpop.permute.xlu0 %3537
        %3539 = vrot.lane.b32.xlu0 %v3521, 64
        %v3540 = vpop.permute.xlu0 %3539
        %3541 = vrot.lane.b32.xlu0 %v3522, 64
        %v3542 = vpop.permute.xlu0 %3541
        %3543 = vrot.lane.b32.xlu0 %v3523, 64
        %v3544 = vpop.permute.xlu0 %3543
        %3545 = vrot.lane.b32.xlu0 %v3524, 64
        %v3546 = vpop.permute.xlu0 %3545
        %3547 = vrot.lane.b32.xlu0 %v3525, 64
        %v3548 = vpop.permute.xlu0 %3547
        %3549 = vrot.lane.b32.xlu0 %v3526, 64
        %v3550 = vpop.permute.xlu0 %3549
        %v3559 = vadd.f32 %v3203, %v3536
        %v3560 = vadd.f32 %v3205, %v3538
        %v3561 = vadd.f32 %v3208, %v3540
        %v3562 = vadd.f32 %v3210, %v3542
        %v3563 = vadd.f32 %v3213, %v3544
        %v3564 = vadd.f32 %v3215, %v3546
        %v3565 = vadd.f32 %v3218, %v3548
        %v3566 = vadd.f32 %v3220, %v3550
        %v3568 = vperm.slane %v3462, 0
        %v3570 = vadd.f32 %v3559, %v3568
        %v3571 = vadd.f32 %v3560, %v3568
        %v3572 = vadd.f32 %v3561, %v3568
        %v3573 = vadd.f32 %v3562, %v3568
        %v3574 = vadd.f32 %v3563, %v3568
        %v3575 = vadd.f32 %v3564, %v3568
        %v3576 = vadd.f32 %v3565, %v3568
        %v3577 = vadd.f32 %v3566, %v3568
        %v3578 = vmax.f32 %v3570, 0.0
        %v3579 = vmax.f32 %v3571, 0.0
        %v3580 = vmax.f32 %v3572, 0.0
        %v3581 = vmax.f32 %v3573, 0.0
        %v3582 = vmax.f32 %v3574, 0.0
        %v3583 = vmax.f32 %v3575, 0.0
        %v3584 = vmax.f32 %v3576, 0.0
        %v3585 = vmax.f32 %v3577, 0.0
        %v3586 = vmax.f32 %v3463, %v3511
        %v3587 = vmax.f32 %v3464, %v3512
        %v3588 = vmax.f32 %v3465, %v3513
        %v3589 = vmax.f32 %v3466, %v3514
        %v3590 = vmax.f32 %v3467, %v3515
        %v3591 = vmax.f32 %v3468, %v3516
        %v3592 = vmax.f32 %v3469, %v3517
        %v3593 = vmax.f32 %v3470, %v3518
        %3602 = vrot.lane.b32.xlu0 %v3586, 64
        %v3603 = vpop.permute.xlu0 %3602
        %3604 = vrot.lane.b32.xlu0 %v3587, 64
        %v3605 = vpop.permute.xlu0 %3604
        %3606 = vrot.lane.b32.xlu0 %v3588, 64
        %v3607 = vpop.permute.xlu0 %3606
        %3608 = vrot.lane.b32.xlu0 %v3589, 64
        %v3609 = vpop.permute.xlu0 %3608
        %3610 = vrot.lane.b32.xlu0 %v3590, 64
        %v3611 = vpop.permute.xlu0 %3610
        %3612 = vrot.lane.b32.xlu0 %v3591, 64
        %v3613 = vpop.permute.xlu0 %3612
        %3614 = vrot.lane.b32.xlu0 %v3592, 64
        %v3615 = vpop.permute.xlu0 %3614
        %3616 = vrot.lane.b32.xlu0 %v3593, 64
        %v3617 = vpop.permute.xlu0 %3616
        %v3626 = vadd.f32 %v3223, %v3603
        %v3627 = vadd.f32 %v3225, %v3605
        %v3628 = vadd.f32 %v3228, %v3607
        %v3629 = vadd.f32 %v3230, %v3609
        %v3630 = vadd.f32 %v3233, %v3611
        %v3631 = vadd.f32 %v3235, %v3613
        %v3632 = vadd.f32 %v3238, %v3615
        %v3633 = vadd.f32 %v3240, %v3617
        %v3634 = vadd.f32 %v3626, %v3568
        %v3635 = vadd.f32 %v3627, %v3568
        %v3636 = vadd.f32 %v3628, %v3568
        %v3637 = vadd.f32 %v3629, %v3568
        %v3638 = vadd.f32 %v3630, %v3568
        %v3639 = vadd.f32 %v3631, %v3568
        %v3640 = vadd.f32 %v3632, %v3568
        %v3641 = vadd.f32 %v3633, %v3568
        %v3642 = vmax.f32 %v3634, 0.0
        %v3643 = vmax.f32 %v3635, 0.0
        %v3644 = vmax.f32 %v3636, 0.0
        %v3645 = vmax.f32 %v3637, 0.0
        %v3646 = vmax.f32 %v3638, 0.0
        %v3647 = vmax.f32 %v3639, 0.0
        %v3648 = vmax.f32 %v3640, 0.0
        %v3649 = vmax.f32 %v3641, 0.0
        %v3650 = vadd.f32 %v3578, %v3642
        %v3651 = vadd.f32 %v3579, %v3643
        %v3652 = vadd.f32 %v3580, %v3644
        %v3653 = vadd.f32 %v3581, %v3645
        %v3654 = vadd.f32 %v3582, %v3646
        %v3655 = vadd.f32 %v3583, %v3647
        %v3656 = vadd.f32 %v3584, %v3648
        %v3657 = vadd.f32 %v3585, %v3649
        %v3658 = vmax.f32 %v3471, %v3503
        %v3659 = vmax.f32 %v3472, %v3504
        %v3660 = vmax.f32 %v3473, %v3505
        %v3661 = vmax.f32 %v3474, %v3506
        %v3662 = vmax.f32 %v3475, %v3507
        %v3663 = vmax.f32 %v3476, %v3508
        %v3664 = vmax.f32 %v3477, %v3509
        %v3665 = vmax.f32 %v3478, %v3510
        %3674 = vrot.lane.b32.xlu0 %v3658, 64
        %v3675 = vpop.permute.xlu0 %3674
        %3676 = vrot.lane.b32.xlu0 %v3659, 64
        %v3677 = vpop.permute.xlu0 %3676
        %3678 = vrot.lane.b32.xlu0 %v3660, 64
        %v3679 = vpop.permute.xlu0 %3678
        %3680 = vrot.lane.b32.xlu0 %v3661, 64
        %v3681 = vpop.permute.xlu0 %3680
        %3682 = vrot.lane.b32.xlu0 %v3662, 64
        %v3683 = vpop.permute.xlu0 %3682
        %3684 = vrot.lane.b32.xlu0 %v3663, 64
        %v3685 = vpop.permute.xlu0 %3684
        %3686 = vrot.lane.b32.xlu0 %v3664, 64
        %v3687 = vpop.permute.xlu0 %3686
        %3688 = vrot.lane.b32.xlu0 %v3665, 64
        %v3689 = vpop.permute.xlu0 %3688
        %v3698 = vadd.f32 %v3243, %v3675
        %v3699 = vadd.f32 %v3245, %v3677
        %v3700 = vadd.f32 %v3248, %v3679
        %v3701 = vadd.f32 %v3250, %v3681
        %v3702 = vadd.f32 %v3253, %v3683
        %v3703 = vadd.f32 %v3255, %v3685
        %v3704 = vadd.f32 %v3258, %v3687
        %v3705 = vadd.f32 %v3260, %v3689
        %v3706 = vadd.f32 %v3698, %v3568
        %v3707 = vadd.f32 %v3699, %v3568
        %v3708 = vadd.f32 %v3700, %v3568
        %v3709 = vadd.f32 %v3701, %v3568
        %v3710 = vadd.f32 %v3702, %v3568
        %v3711 = vadd.f32 %v3703, %v3568
        %v3712 = vadd.f32 %v3704, %v3568
        %v3713 = vadd.f32 %v3705, %v3568
        %v3714 = vmax.f32 %v3706, 0.0
        %v3715 = vmax.f32 %v3707, 0.0
        %v3716 = vmax.f32 %v3708, 0.0
        %v3717 = vmax.f32 %v3709, 0.0
        %v3718 = vmax.f32 %v3710, 0.0
        %v3719 = vmax.f32 %v3711, 0.0
        %v3720 = vmax.f32 %v3712, 0.0
        %v3721 = vmax.f32 %v3713, 0.0
        %v3722 = vadd.f32 %v3650, %v3714
        %v3723 = vadd.f32 %v3651, %v3715
        %v3724 = vadd.f32 %v3652, %v3716
        %v3725 = vadd.f32 %v3653, %v3717
        %v3726 = vadd.f32 %v3654, %v3718
        %v3727 = vadd.f32 %v3655, %v3719
        %v3728 = vadd.f32 %v3656, %v3720
        %v3729 = vadd.f32 %v3657, %v3721
        %v3730 = vmax.f32 %v3479, %v3495
        %v3731 = vmax.f32 %v3480, %v3496
        %v3732 = vmax.f32 %v3481, %v3497
        %v3733 = vmax.f32 %v3482, %v3498
        %v3734 = vmax.f32 %v3483, %v3499
        %v3735 = vmax.f32 %v3484, %v3500
        %v3736 = vmax.f32 %v3485, %v3501
        %v3737 = vmax.f32 %v3486, %v3502
        %3746 = vrot.lane.b32.xlu0 %v3730, 64
        %v3747 = vpop.permute.xlu0 %3746
        %3748 = vrot.lane.b32.xlu0 %v3731, 64
        %v3749 = vpop.permute.xlu0 %3748
        %3750 = vrot.lane.b32.xlu0 %v3732, 64
        %v3751 = vpop.permute.xlu0 %3750
        %3752 = vrot.lane.b32.xlu0 %v3733, 64
        %v3753 = vpop.permute.xlu0 %3752
        %3754 = vrot.lane.b32.xlu0 %v3734, 64
        %v3755 = vpop.permute.xlu0 %3754
        %3756 = vrot.lane.b32.xlu0 %v3735, 64
        %v3757 = vpop.permute.xlu0 %3756
        %3758 = vrot.lane.b32.xlu0 %v3736, 64
        %v3759 = vpop.permute.xlu0 %3758
        %3760 = vrot.lane.b32.xlu0 %v3737, 64
        %v3761 = vpop.permute.xlu0 %3760
        %v3770 = vadd.f32 %v3263, %v3747
        %v3771 = vadd.f32 %v3265, %v3749
        %v3772 = vadd.f32 %v3268, %v3751
        %v3773 = vadd.f32 %v3270, %v3753
        %v3774 = vadd.f32 %v3273, %v3755
        %v3775 = vadd.f32 %v3275, %v3757
        %v3776 = vadd.f32 %v3278, %v3759
        %v3777 = vadd.f32 %v3280, %v3761
        %v3778 = vadd.f32 %v3770, %v3568
        %v3779 = vadd.f32 %v3771, %v3568
        %v3780 = vadd.f32 %v3772, %v3568
        %v3781 = vadd.f32 %v3773, %v3568
        %v3782 = vadd.f32 %v3774, %v3568
        %v3783 = vadd.f32 %v3775, %v3568
        %v3784 = vadd.f32 %v3776, %v3568
        %v3785 = vadd.f32 %v3777, %v3568
        %v3786 = vmax.f32 %v3778, 0.0
        %v3787 = vmax.f32 %v3779, 0.0
        %v3788 = vmax.f32 %v3780, 0.0
        %v3789 = vmax.f32 %v3781, 0.0
        %v3790 = vmax.f32 %v3782, 0.0
        %v3791 = vmax.f32 %v3783, 0.0
        %v3792 = vmax.f32 %v3784, 0.0
        %v3793 = vmax.f32 %v3785, 0.0
        %v3794 = vadd.f32 %v3722, %v3786
        %v3795 = vadd.f32 %v3723, %v3787
        %v3796 = vadd.f32 %v3724, %v3788
        %v3797 = vadd.f32 %v3725, %v3789
        %v3798 = vadd.f32 %v3726, %v3790
        %v3799 = vadd.f32 %v3727, %v3791
        %v3800 = vadd.f32 %v3728, %v3792
        %v3801 = vadd.f32 %v3729, %v3793
        %3810 = vrot.lane.b32.xlu0 %v3487, 64
        %v3811 = vpop.permute.xlu0 %3810
        %3812 = vrot.lane.b32.xlu0 %v3488, 64
        %v3813 = vpop.permute.xlu0 %3812
        %3814 = vrot.lane.b32.xlu0 %v3489, 64
        %v3815 = vpop.permute.xlu0 %3814
        %3816 = vrot.lane.b32.xlu0 %v3490, 64
        %v3817 = vpop.permute.xlu0 %3816
        %3818 = vrot.lane.b32.xlu0 %v3491, 64
        %v3819 = vpop.permute.xlu0 %3818
        %3820 = vrot.lane.b32.xlu0 %v3492, 64
        %v3821 = vpop.permute.xlu0 %3820
        %3822 = vrot.lane.b32.xlu0 %v3493, 64
        %v3823 = vpop.permute.xlu0 %3822
        %3824 = vrot.lane.b32.xlu0 %v3494, 64
        %v3825 = vpop.permute.xlu0 %3824
        %v3834 = vadd.f32 %v3283, %v3811
        %v3835 = vadd.f32 %v3285, %v3813
        %v3836 = vadd.f32 %v3288, %v3815
        %v3837 = vadd.f32 %v3290, %v3817
        %v3838 = vadd.f32 %v3293, %v3819
        %v3839 = vadd.f32 %v3295, %v3821
        %v3840 = vadd.f32 %v3298, %v3823
        %v3841 = vadd.f32 %v3300, %v3825
        %v3842 = vadd.f32 %v3834, %v3568
        %v3843 = vadd.f32 %v3835, %v3568
        %v3844 = vadd.f32 %v3836, %v3568
        %v3845 = vadd.f32 %v3837, %v3568
        %v3846 = vadd.f32 %v3838, %v3568
        %v3847 = vadd.f32 %v3839, %v3568
        %v3848 = vadd.f32 %v3840, %v3568
        %v3849 = vadd.f32 %v3841, %v3568
        %v3850 = vmax.f32 %v3842, 0.0
        %v3851 = vmax.f32 %v3843, 0.0
        %v3852 = vmax.f32 %v3844, 0.0
        %v3853 = vmax.f32 %v3845, 0.0
        %v3854 = vmax.f32 %v3846, 0.0
        %v3855 = vmax.f32 %v3847, 0.0
        %v3856 = vmax.f32 %v3848, 0.0
        %v3857 = vmax.f32 %v3849, 0.0
        %v3858 = vadd.f32 %v3794, %v3850
        %v3859 = vadd.f32 %v3795, %v3851
        %v3860 = vadd.f32 %v3796, %v3852
        %v3861 = vadd.f32 %v3797, %v3853
        %v3862 = vadd.f32 %v3798, %v3854
        %v3863 = vadd.f32 %v3799, %v3855
        %v3864 = vadd.f32 %v3800, %v3856
        %v3865 = vadd.f32 %v3801, %v3857
        %v3866 = vmax.f32 %v3203, %v3223
        %v3867 = vmax.f32 %v3205, %v3225
        %v3868 = vmax.f32 %v3208, %v3228
        %v3869 = vmax.f32 %v3210, %v3230
        %v3870 = vmax.f32 %v3213, %v3233
        %v3871 = vmax.f32 %v3215, %v3235
        %v3872 = vmax.f32 %v3218, %v3238
        %v3873 = vmax.f32 %v3220, %v3240
        %v3874 = vmax.f32 %v3866, %v3243
        %v3875 = vmax.f32 %v3867, %v3245
        %v3876 = vmax.f32 %v3868, %v3248
        %v3877 = vmax.f32 %v3869, %v3250
        %v3878 = vmax.f32 %v3870, %v3253
        %v3879 = vmax.f32 %v3871, %v3255
        %v3880 = vmax.f32 %v3872, %v3258
        %v3881 = vmax.f32 %v3873, %v3260
        %v3882 = vmax.f32 %v3874, %v3263
        %v3883 = vmax.f32 %v3875, %v3265
        %v3884 = vmax.f32 %v3876, %v3268
        %v3885 = vmax.f32 %v3877, %v3270
        %v3886 = vmax.f32 %v3878, %v3273
        %v3887 = vmax.f32 %v3879, %v3275
        %v3888 = vmax.f32 %v3880, %v3278
        %v3889 = vmax.f32 %v3881, %v3280
        %v3890 = vmax.f32 %v3882, %v3283
        %v3891 = vmax.f32 %v3883, %v3285
        %v3892 = vmax.f32 %v3884, %v3288
        %v3893 = vmax.f32 %v3885, %v3290
        %v3894 = vmax.f32 %v3886, %v3293
        %v3895 = vmax.f32 %v3887, %v3295
        %v3896 = vmax.f32 %v3888, %v3298
        %v3897 = vmax.f32 %v3889, %v3300
        %3898 = vrot.lane.b32.xlu0 %v3568, 64
        %v3899 = vpop.permute.xlu0 %3898
        %v3901 = vadd.f32 %v3890, %v3899
        %v3902 = vadd.f32 %v3891, %v3899
        %v3903 = vadd.f32 %v3892, %v3899
        %v3904 = vadd.f32 %v3893, %v3899
        %v3905 = vadd.f32 %v3894, %v3899
        %v3906 = vadd.f32 %v3895, %v3899
        %v3907 = vadd.f32 %v3896, %v3899
        %v3908 = vadd.f32 %v3897, %v3899
        %v3909 = vmax.f32 %v3901, 0.0
        %v3910 = vmax.f32 %v3902, 0.0
        %v3911 = vmax.f32 %v3903, 0.0
        %v3912 = vmax.f32 %v3904, 0.0
        %v3913 = vmax.f32 %v3905, 0.0
        %v3914 = vmax.f32 %v3906, 0.0
        %v3915 = vmax.f32 %v3907, 0.0
        %v3916 = vmax.f32 %v3908, 0.0
        %v3917 = vmul.f32 %v3909, 4.0
        %v3918 = vmul.f32 %v3910, 4.0
        %v3919 = vmul.f32 %v3911, 4.0
        %v3920 = vmul.f32 %v3912, 4.0
        %v3921 = vmul.f32 %v3913, 4.0
        %v3922 = vmul.f32 %v3914, 4.0
        %v3923 = vmul.f32 %v3915, 4.0
        %v3924 = vmul.f32 %v3916, 4.0
        %3933 = vrot.lane.b32.xlu0 %v3917, 64
        %v3934 = vpop.permute.xlu0 %3933
        %3935 = vrot.lane.b32.xlu0 %v3918, 64
        %v3936 = vpop.permute.xlu0 %3935
        %3937 = vrot.lane.b32.xlu0 %v3919, 64
        %v3938 = vpop.permute.xlu0 %3937
        %3939 = vrot.lane.b32.xlu0 %v3920, 64
        %v3940 = vpop.permute.xlu0 %3939
        %3941 = vrot.lane.b32.xlu0 %v3921, 64
        %v3942 = vpop.permute.xlu0 %3941
        %3943 = vrot.lane.b32.xlu0 %v3922, 64
        %v3944 = vpop.permute.xlu0 %3943
        %3945 = vrot.lane.b32.xlu0 %v3923, 64
        %v3946 = vpop.permute.xlu0 %3945
        %3947 = vrot.lane.b32.xlu0 %v3924, 64
        %v3948 = vpop.permute.xlu0 %3947
        %v3957 = vadd.f32 %v3858, %v3934
        %v3958 = vadd.f32 %v3859, %v3936
        %v3959 = vadd.f32 %v3860, %v3938
        %v3960 = vadd.f32 %v3861, %v3940
        %v3961 = vadd.f32 %v3862, %v3942
        %v3962 = vadd.f32 %v3863, %v3944
        %v3963 = vadd.f32 %v3864, %v3946
        %v3964 = vadd.f32 %v3865, %v3948
        %v3965 = vmul.f32 %v3957, 0.05882353
        %v3966 = vmul.f32 %v3958, 0.05882353
        %v3967 = vmul.f32 %v3959, 0.05882353
        %v3968 = vmul.f32 %v3960, 0.05882353
        %v3969 = vmul.f32 %v3961, 0.05882353
        %v3970 = vmul.f32 %v3962, 0.05882353
        %v3971 = vmul.f32 %v3963, 0.05882353
        %v3972 = vmul.f32 %v3964, 0.05882353
        %v3973 = vmax.f32 %v3303, 0.0
        %v3974 = vmax.f32 %v3305, 0.0
        %v3975 = vmax.f32 %v3308, 0.0
        %v3976 = vmax.f32 %v3310, 0.0
        %v3977 = vmax.f32 %v3313, 0.0
        %v3978 = vmax.f32 %v3315, 0.0
        %v3979 = vmax.f32 %v3318, 0.0
        %v3980 = vmax.f32 %v3320, 0.0
        %v3981 = vmax.f32 %v3973, %v3323
        %v3982 = vmax.f32 %v3974, %v3325
        %v3983 = vmax.f32 %v3975, %v3328
        %v3984 = vmax.f32 %v3976, %v3330
        %v3985 = vmax.f32 %v3977, %v3333
        %v3986 = vmax.f32 %v3978, %v3335
        %v3987 = vmax.f32 %v3979, %v3338
        %v3988 = vmax.f32 %v3980, %v3340
        %v3989 = vmax.f32 %v3981, %v3343
        %v3990 = vmax.f32 %v3982, %v3345
        %v3991 = vmax.f32 %v3983, %v3348
        %v3992 = vmax.f32 %v3984, %v3350
        %v3993 = vmax.f32 %v3985, %v3353
        %v3994 = vmax.f32 %v3986, %v3355
        %v3995 = vmax.f32 %v3987, %v3358
        %v3996 = vmax.f32 %v3988, %v3360
        %v3997 = vmax.f32 %v3363, 0.0
        %v3998 = vmax.f32 %v3365, 0.0
        %v3999 = vmax.f32 %v3368, 0.0
        %v4000 = vmax.f32 %v3370, 0.0
        %v4001 = vmax.f32 %v3373, 0.0
        %v4002 = vmax.f32 %v3375, 0.0
        %v4003 = vmax.f32 %v3378, 0.0
        %v4004 = vmax.f32 %v3380, 0.0
        %v4005 = vmax.f32 %v3997, %v3343
        %v4006 = vmax.f32 %v3998, %v3345
        %v4007 = vmax.f32 %v3999, %v3348
        %v4008 = vmax.f32 %v4000, %v3350
        %v4009 = vmax.f32 %v4001, %v3353
        %v4010 = vmax.f32 %v4002, %v3355
        %v4011 = vmax.f32 %v4003, %v3358
        %v4012 = vmax.f32 %v4004, %v3360
        %v4013 = vmax.f32 %v4005, %v3323
        %v4014 = vmax.f32 %v4006, %v3325
        %v4015 = vmax.f32 %v4007, %v3328
        %v4016 = vmax.f32 %v4008, %v3330
        %v4017 = vmax.f32 %v4009, %v3333
        %v4018 = vmax.f32 %v4010, %v3335
        %v4019 = vmax.f32 %v4011, %v3338
        %v4020 = vmax.f32 %v4012, %v3340
        %4029 = vrot.lane.b32.xlu0 %v4013, 64
        %v4030 = vpop.permute.xlu0 %4029
        %4031 = vrot.lane.b32.xlu0 %v4014, 64
        %v4032 = vpop.permute.xlu0 %4031
        %4033 = vrot.lane.b32.xlu0 %v4015, 64
        %v4034 = vpop.permute.xlu0 %4033
        %4035 = vrot.lane.b32.xlu0 %v4016, 64
        %v4036 = vpop.permute.xlu0 %4035
        %4037 = vrot.lane.b32.xlu0 %v4017, 64
        %v4038 = vpop.permute.xlu0 %4037
        %4039 = vrot.lane.b32.xlu0 %v4018, 64
        %v4040 = vpop.permute.xlu0 %4039
        %4041 = vrot.lane.b32.xlu0 %v4019, 64
        %v4042 = vpop.permute.xlu0 %4041
        %4043 = vrot.lane.b32.xlu0 %v4020, 64
        %v4044 = vpop.permute.xlu0 %4043
        %v4053 = vadd.f32 %v3303, %v4030
        %v4054 = vadd.f32 %v3305, %v4032
        %v4055 = vadd.f32 %v3308, %v4034
        %v4056 = vadd.f32 %v3310, %v4036
        %v4057 = vadd.f32 %v3313, %v4038
        %v4058 = vadd.f32 %v3315, %v4040
        %v4059 = vadd.f32 %v3318, %v4042
        %v4060 = vadd.f32 %v3320, %v4044
        %v4061 = vadd.f32 %v4053, %v3568
        %v4062 = vadd.f32 %v4054, %v3568
        %v4063 = vadd.f32 %v4055, %v3568
        %v4064 = vadd.f32 %v4056, %v3568
        %v4065 = vadd.f32 %v4057, %v3568
        %v4066 = vadd.f32 %v4058, %v3568
        %v4067 = vadd.f32 %v4059, %v3568
        %v4068 = vadd.f32 %v4060, %v3568
        %v4069 = vmax.f32 %v4061, 0.0
        %v4070 = vmax.f32 %v4062, 0.0
        %v4071 = vmax.f32 %v4063, 0.0
        %v4072 = vmax.f32 %v4064, 0.0
        %v4073 = vmax.f32 %v4065, 0.0
        %v4074 = vmax.f32 %v4066, 0.0
        %v4075 = vmax.f32 %v4067, 0.0
        %v4076 = vmax.f32 %v4068, 0.0
        %v4077 = vmax.f32 %v3973, %v4005
        %v4078 = vmax.f32 %v3974, %v4006
        %v4079 = vmax.f32 %v3975, %v4007
        %v4080 = vmax.f32 %v3976, %v4008
        %v4081 = vmax.f32 %v3977, %v4009
        %v4082 = vmax.f32 %v3978, %v4010
        %v4083 = vmax.f32 %v3979, %v4011
        %v4084 = vmax.f32 %v3980, %v4012
        %4093 = vrot.lane.b32.xlu0 %v4077, 64
        %v4094 = vpop.permute.xlu0 %4093
        %4095 = vrot.lane.b32.xlu0 %v4078, 64
        %v4096 = vpop.permute.xlu0 %4095
        %4097 = vrot.lane.b32.xlu0 %v4079, 64
        %v4098 = vpop.permute.xlu0 %4097
        %4099 = vrot.lane.b32.xlu0 %v4080, 64
        %v4100 = vpop.permute.xlu0 %4099
        %4101 = vrot.lane.b32.xlu0 %v4081, 64
        %v4102 = vpop.permute.xlu0 %4101
        %4103 = vrot.lane.b32.xlu0 %v4082, 64
        %v4104 = vpop.permute.xlu0 %4103
        %4105 = vrot.lane.b32.xlu0 %v4083, 64
        %v4106 = vpop.permute.xlu0 %4105
        %4107 = vrot.lane.b32.xlu0 %v4084, 64
        %v4108 = vpop.permute.xlu0 %4107
        %v4117 = vadd.f32 %v3323, %v4094
        %v4118 = vadd.f32 %v3325, %v4096
        %v4119 = vadd.f32 %v3328, %v4098
        %v4120 = vadd.f32 %v3330, %v4100
        %v4121 = vadd.f32 %v3333, %v4102
        %v4122 = vadd.f32 %v3335, %v4104
        %v4123 = vadd.f32 %v3338, %v4106
        %v4124 = vadd.f32 %v3340, %v4108
        %v4125 = vadd.f32 %v4117, %v3568
        %v4126 = vadd.f32 %v4118, %v3568
        %v4127 = vadd.f32 %v4119, %v3568
        %v4128 = vadd.f32 %v4120, %v3568
        %v4129 = vadd.f32 %v4121, %v3568
        %v4130 = vadd.f32 %v4122, %v3568
        %v4131 = vadd.f32 %v4123, %v3568
        %v4132 = vadd.f32 %v4124, %v3568
        %v4133 = vmax.f32 %v4125, 0.0
        %v4134 = vmax.f32 %v4126, 0.0
        %v4135 = vmax.f32 %v4127, 0.0
        %v4136 = vmax.f32 %v4128, 0.0
        %v4137 = vmax.f32 %v4129, 0.0
        %v4138 = vmax.f32 %v4130, 0.0
        %v4139 = vmax.f32 %v4131, 0.0
        %v4140 = vmax.f32 %v4132, 0.0
        %v4141 = vadd.f32 %v4069, %v4133
        %v4142 = vadd.f32 %v4070, %v4134
        %v4143 = vadd.f32 %v4071, %v4135
        %v4144 = vadd.f32 %v4072, %v4136
        %v4145 = vadd.f32 %v4073, %v4137
        %v4146 = vadd.f32 %v4074, %v4138
        %v4147 = vadd.f32 %v4075, %v4139
        %v4148 = vadd.f32 %v4076, %v4140
        %v4149 = vmax.f32 %v3981, %v3997
        %v4150 = vmax.f32 %v3982, %v3998
        %v4151 = vmax.f32 %v3983, %v3999
        %v4152 = vmax.f32 %v3984, %v4000
        %v4153 = vmax.f32 %v3985, %v4001
        %v4154 = vmax.f32 %v3986, %v4002
        %v4155 = vmax.f32 %v3987, %v4003
        %v4156 = vmax.f32 %v3988, %v4004
        %4165 = vrot.lane.b32.xlu0 %v4149, 64
        %v4166 = vpop.permute.xlu0 %4165
        %4167 = vrot.lane.b32.xlu0 %v4150, 64
        %v4168 = vpop.permute.xlu0 %4167
        %4169 = vrot.lane.b32.xlu0 %v4151, 64
        %v4170 = vpop.permute.xlu0 %4169
        %4171 = vrot.lane.b32.xlu0 %v4152, 64
        %v4172 = vpop.permute.xlu0 %4171
        %4173 = vrot.lane.b32.xlu0 %v4153, 64
        %v4174 = vpop.permute.xlu0 %4173
        %4175 = vrot.lane.b32.xlu0 %v4154, 64
        %v4176 = vpop.permute.xlu0 %4175
        %4177 = vrot.lane.b32.xlu0 %v4155, 64
        %v4178 = vpop.permute.xlu0 %4177
        %4179 = vrot.lane.b32.xlu0 %v4156, 64
        %v4180 = vpop.permute.xlu0 %4179
        %v4189 = vadd.f32 %v3343, %v4166
        %v4190 = vadd.f32 %v3345, %v4168
        %v4191 = vadd.f32 %v3348, %v4170
        %v4192 = vadd.f32 %v3350, %v4172
        %v4193 = vadd.f32 %v3353, %v4174
        %v4194 = vadd.f32 %v3355, %v4176
        %v4195 = vadd.f32 %v3358, %v4178
        %v4196 = vadd.f32 %v3360, %v4180
        %v4197 = vadd.f32 %v4189, %v3568
        %v4198 = vadd.f32 %v4190, %v3568
        %v4199 = vadd.f32 %v4191, %v3568
        %v4200 = vadd.f32 %v4192, %v3568
        %v4201 = vadd.f32 %v4193, %v3568
        %v4202 = vadd.f32 %v4194, %v3568
        %v4203 = vadd.f32 %v4195, %v3568
        %v4204 = vadd.f32 %v4196, %v3568
        %v4205 = vmax.f32 %v4197, 0.0
        %v4206 = vmax.f32 %v4198, 0.0
        %v4207 = vmax.f32 %v4199, 0.0
        %v4208 = vmax.f32 %v4200, 0.0
        %v4209 = vmax.f32 %v4201, 0.0
        %v4210 = vmax.f32 %v4202, 0.0
        %v4211 = vmax.f32 %v4203, 0.0
        %v4212 = vmax.f32 %v4204, 0.0
        %v4213 = vadd.f32 %v4141, %v4205
        %v4214 = vadd.f32 %v4142, %v4206
        %v4215 = vadd.f32 %v4143, %v4207
        %v4216 = vadd.f32 %v4144, %v4208
        %v4217 = vadd.f32 %v4145, %v4209
        %v4218 = vadd.f32 %v4146, %v4210
        %v4219 = vadd.f32 %v4147, %v4211
        %v4220 = vadd.f32 %v4148, %v4212
        %4229 = vrot.lane.b32.xlu0 %v3989, 64
        %v4230 = vpop.permute.xlu0 %4229
        %4231 = vrot.lane.b32.xlu0 %v3990, 64
        %v4232 = vpop.permute.xlu0 %4231
        %4233 = vrot.lane.b32.xlu0 %v3991, 64
        %v4234 = vpop.permute.xlu0 %4233
        %4235 = vrot.lane.b32.xlu0 %v3992, 64
        %v4236 = vpop.permute.xlu0 %4235
        %4237 = vrot.lane.b32.xlu0 %v3993, 64
        %v4238 = vpop.permute.xlu0 %4237
        %4239 = vrot.lane.b32.xlu0 %v3994, 64
        %v4240 = vpop.permute.xlu0 %4239
        %4241 = vrot.lane.b32.xlu0 %v3995, 64
        %v4242 = vpop.permute.xlu0 %4241
        %4243 = vrot.lane.b32.xlu0 %v3996, 64
        %v4244 = vpop.permute.xlu0 %4243
        %v4253 = vadd.f32 %v3363, %v4230
        %v4254 = vadd.f32 %v3365, %v4232
        %v4255 = vadd.f32 %v3368, %v4234
        %v4256 = vadd.f32 %v3370, %v4236
        %v4257 = vadd.f32 %v3373, %v4238
        %v4258 = vadd.f32 %v3375, %v4240
        %v4259 = vadd.f32 %v3378, %v4242
        %v4260 = vadd.f32 %v3380, %v4244
        %v4261 = vadd.f32 %v4253, %v3568
        %v4262 = vadd.f32 %v4254, %v3568
        %v4263 = vadd.f32 %v4255, %v3568
        %v4264 = vadd.f32 %v4256, %v3568
        %v4265 = vadd.f32 %v4257, %v3568
        %v4266 = vadd.f32 %v4258, %v3568
        %v4267 = vadd.f32 %v4259, %v3568
        %v4268 = vadd.f32 %v4260, %v3568
        %v4269 = vmax.f32 %v4261, 0.0
        %v4270 = vmax.f32 %v4262, 0.0
        %v4271 = vmax.f32 %v4263, 0.0
        %v4272 = vmax.f32 %v4264, 0.0
        %v4273 = vmax.f32 %v4265, 0.0
        %v4274 = vmax.f32 %v4266, 0.0
        %v4275 = vmax.f32 %v4267, 0.0
        %v4276 = vmax.f32 %v4268, 0.0
        %v4277 = vadd.f32 %v4213, %v4269
        %v4278 = vadd.f32 %v4214, %v4270
        %v4279 = vadd.f32 %v4215, %v4271
        %v4280 = vadd.f32 %v4216, %v4272
        %v4281 = vadd.f32 %v4217, %v4273
        %v4282 = vadd.f32 %v4218, %v4274
        %v4283 = vadd.f32 %v4219, %v4275
        %v4284 = vadd.f32 %v4220, %v4276
        %v4285 = vmax.f32 %v3303, %v3323
        %v4286 = vmax.f32 %v3305, %v3325
        %v4287 = vmax.f32 %v3308, %v3328
        %v4288 = vmax.f32 %v3310, %v3330
        %v4289 = vmax.f32 %v3313, %v3333
        %v4290 = vmax.f32 %v3315, %v3335
        %v4291 = vmax.f32 %v3318, %v3338
        %v4292 = vmax.f32 %v3320, %v3340
        %v4293 = vmax.f32 %v4285, %v3343
        %v4294 = vmax.f32 %v4286, %v3345
        %v4295 = vmax.f32 %v4287, %v3348
        %v4296 = vmax.f32 %v4288, %v3350
        %v4297 = vmax.f32 %v4289, %v3353
        %v4298 = vmax.f32 %v4290, %v3355
        %v4299 = vmax.f32 %v4291, %v3358
        %v4300 = vmax.f32 %v4292, %v3360
        %v4301 = vmax.f32 %v4293, %v3363
        %v4302 = vmax.f32 %v4294, %v3365
        %v4303 = vmax.f32 %v4295, %v3368
        %v4304 = vmax.f32 %v4296, %v3370
        %v4305 = vmax.f32 %v4297, %v3373
        %v4306 = vmax.f32 %v4298, %v3375
        %v4307 = vmax.f32 %v4299, %v3378
        %v4308 = vmax.f32 %v4300, %v3380
        %v4309 = vadd.f32 %v4301, %v3899
        %v4310 = vadd.f32 %v4302, %v3899
        %v4311 = vadd.f32 %v4303, %v3899
        %v4312 = vadd.f32 %v4304, %v3899
        %v4313 = vadd.f32 %v4305, %v3899
        %v4314 = vadd.f32 %v4306, %v3899
        %v4315 = vadd.f32 %v4307, %v3899
        %v4316 = vadd.f32 %v4308, %v3899
        %v4317 = vmax.f32 %v4309, 0.0
        %v4318 = vmax.f32 %v4310, 0.0
        %v4319 = vmax.f32 %v4311, 0.0
        %v4320 = vmax.f32 %v4312, 0.0
        %v4321 = vmax.f32 %v4313, 0.0
        %v4322 = vmax.f32 %v4314, 0.0
        %v4323 = vmax.f32 %v4315, 0.0
        %v4324 = vmax.f32 %v4316, 0.0
        %v4325 = vmul.f32 %v4317, 9.0
        %v4326 = vmul.f32 %v4318, 9.0
        %v4327 = vmul.f32 %v4319, 9.0
        %v4328 = vmul.f32 %v4320, 9.0
        %v4329 = vmul.f32 %v4321, 9.0
        %v4330 = vmul.f32 %v4322, 9.0
        %v4331 = vmul.f32 %v4323, 9.0
        %v4332 = vmul.f32 %v4324, 9.0
        %4341 = vrot.lane.b32.xlu0 %v4325, 64
        %v4342 = vpop.permute.xlu0 %4341
        %4343 = vrot.lane.b32.xlu0 %v4326, 64
        %v4344 = vpop.permute.xlu0 %4343
        %4345 = vrot.lane.b32.xlu0 %v4327, 64
        %v4346 = vpop.permute.xlu0 %4345
        %4347 = vrot.lane.b32.xlu0 %v4328, 64
        %v4348 = vpop.permute.xlu0 %4347
        %4349 = vrot.lane.b32.xlu0 %v4329, 64
        %v4350 = vpop.permute.xlu0 %4349
        %4351 = vrot.lane.b32.xlu0 %v4330, 64
        %v4352 = vpop.permute.xlu0 %4351
        %4353 = vrot.lane.b32.xlu0 %v4331, 64
        %v4354 = vpop.permute.xlu0 %4353
        %4355 = vrot.lane.b32.xlu0 %v4332, 64
        %v4356 = vpop.permute.xlu0 %4355
        %v4365 = vadd.f32 %v4277, %v4342
        %v4366 = vadd.f32 %v4278, %v4344
        %v4367 = vadd.f32 %v4279, %v4346
        %v4368 = vadd.f32 %v4280, %v4348
        %v4369 = vadd.f32 %v4281, %v4350
        %v4370 = vadd.f32 %v4282, %v4352
        %v4371 = vadd.f32 %v4283, %v4354
        %v4372 = vadd.f32 %v4284, %v4356
        %v4373 = vmul.f32 %v4365, 0.05882353
        %v4374 = vmul.f32 %v4366, 0.05882353
        %v4375 = vmul.f32 %v4367, 0.05882353
        %v4376 = vmul.f32 %v4368, 0.05882353
        %v4377 = vmul.f32 %v4369, 0.05882353
        %v4378 = vmul.f32 %v4370, 0.05882353
        %v4379 = vmul.f32 %v4371, 0.05882353
        %v4380 = vmul.f32 %v4372, 0.05882353
        %v4381 = vmax.f32 %v3383, 0.0
        %v4382 = vmax.f32 %v3385, 0.0
        %v4383 = vmax.f32 %v3388, 0.0
        %v4384 = vmax.f32 %v3390, 0.0
        %v4385 = vmax.f32 %v3393, 0.0
        %v4386 = vmax.f32 %v3395, 0.0
        %v4387 = vmax.f32 %v3398, 0.0
        %v4388 = vmax.f32 %v3400, 0.0
        %v4389 = vmax.f32 %v4381, %v3403
        %v4390 = vmax.f32 %v4382, %v3405
        %v4391 = vmax.f32 %v4383, %v3408
        %v4392 = vmax.f32 %v4384, %v3410
        %v4393 = vmax.f32 %v4385, %v3413
        %v4394 = vmax.f32 %v4386, %v3415
        %v4395 = vmax.f32 %v4387, %v3418
        %v4396 = vmax.f32 %v4388, %v3420
        %v4397 = vmax.f32 %v4389, %v3423
        %v4398 = vmax.f32 %v4390, %v3425
        %v4399 = vmax.f32 %v4391, %v3428
        %v4400 = vmax.f32 %v4392, %v3430
        %v4401 = vmax.f32 %v4393, %v3433
        %v4402 = vmax.f32 %v4394, %v3435
        %v4403 = vmax.f32 %v4395, %v3438
        %v4404 = vmax.f32 %v4396, %v3440
        %v4405 = vmax.f32 %v3443, 0.0
        %v4406 = vmax.f32 %v3445, 0.0
        %v4407 = vmax.f32 %v3448, 0.0
        %v4408 = vmax.f32 %v3450, 0.0
        %v4409 = vmax.f32 %v3453, 0.0
        %v4410 = vmax.f32 %v3455, 0.0
        %v4411 = vmax.f32 %v3458, 0.0
        %v4412 = vmax.f32 %v3460, 0.0
        %v4413 = vmax.f32 %v4405, %v3423
        %v4414 = vmax.f32 %v4406, %v3425
        %v4415 = vmax.f32 %v4407, %v3428
        %v4416 = vmax.f32 %v4408, %v3430
        %v4417 = vmax.f32 %v4409, %v3433
        %v4418 = vmax.f32 %v4410, %v3435
        %v4419 = vmax.f32 %v4411, %v3438
        %v4420 = vmax.f32 %v4412, %v3440
        %v4421 = vmax.f32 %v4413, %v3403
        %v4422 = vmax.f32 %v4414, %v3405
        %v4423 = vmax.f32 %v4415, %v3408
        %v4424 = vmax.f32 %v4416, %v3410
        %v4425 = vmax.f32 %v4417, %v3413
        %v4426 = vmax.f32 %v4418, %v3415
        %v4427 = vmax.f32 %v4419, %v3418
        %v4428 = vmax.f32 %v4420, %v3420
        %4437 = vrot.lane.b32.xlu0 %v4421, 64
        %v4438 = vpop.permute.xlu0 %4437
        %4439 = vrot.lane.b32.xlu0 %v4422, 64
        %v4440 = vpop.permute.xlu0 %4439
        %4441 = vrot.lane.b32.xlu0 %v4423, 64
        %v4442 = vpop.permute.xlu0 %4441
        %4443 = vrot.lane.b32.xlu0 %v4424, 64
        %v4444 = vpop.permute.xlu0 %4443
        %4445 = vrot.lane.b32.xlu0 %v4425, 64
        %v4446 = vpop.permute.xlu0 %4445
        %4447 = vrot.lane.b32.xlu0 %v4426, 64
        %v4448 = vpop.permute.xlu0 %4447
        %4449 = vrot.lane.b32.xlu0 %v4427, 64
        %v4450 = vpop.permute.xlu0 %4449
        %4451 = vrot.lane.b32.xlu0 %v4428, 64
        %v4452 = vpop.permute.xlu0 %4451
        %v4461 = vadd.f32 %v3383, %v4438
        %v4462 = vadd.f32 %v3385, %v4440
        %v4463 = vadd.f32 %v3388, %v4442
        %v4464 = vadd.f32 %v3390, %v4444
        %v4465 = vadd.f32 %v3393, %v4446
        %v4466 = vadd.f32 %v3395, %v4448
        %v4467 = vadd.f32 %v3398, %v4450
        %v4468 = vadd.f32 %v3400, %v4452
        %v4469 = vadd.f32 %v4461, %v3568
        %v4470 = vadd.f32 %v4462, %v3568
        %v4471 = vadd.f32 %v4463, %v3568
        %v4472 = vadd.f32 %v4464, %v3568
        %v4473 = vadd.f32 %v4465, %v3568
        %v4474 = vadd.f32 %v4466, %v3568
        %v4475 = vadd.f32 %v4467, %v3568
        %v4476 = vadd.f32 %v4468, %v3568
        %v4477 = vmax.f32 %v4469, 0.0
        %v4478 = vmax.f32 %v4470, 0.0
        %v4479 = vmax.f32 %v4471, 0.0
        %v4480 = vmax.f32 %v4472, 0.0
        %v4481 = vmax.f32 %v4473, 0.0
        %v4482 = vmax.f32 %v4474, 0.0
        %v4483 = vmax.f32 %v4475, 0.0
        %v4484 = vmax.f32 %v4476, 0.0
        %v4485 = vmax.f32 %v4381, %v4413
        %v4486 = vmax.f32 %v4382, %v4414
        %v4487 = vmax.f32 %v4383, %v4415
        %v4488 = vmax.f32 %v4384, %v4416
        %v4489 = vmax.f32 %v4385, %v4417
        %v4490 = vmax.f32 %v4386, %v4418
        %v4491 = vmax.f32 %v4387, %v4419
        %v4492 = vmax.f32 %v4388, %v4420
        %4501 = vrot.lane.b32.xlu0 %v4485, 64
        %v4502 = vpop.permute.xlu0 %4501
        %4503 = vrot.lane.b32.xlu0 %v4486, 64
        %v4504 = vpop.permute.xlu0 %4503
        %4505 = vrot.lane.b32.xlu0 %v4487, 64
        %v4506 = vpop.permute.xlu0 %4505
        %4507 = vrot.lane.b32.xlu0 %v4488, 64
        %v4508 = vpop.permute.xlu0 %4507
        %4509 = vrot.lane.b32.xlu0 %v4489, 64
        %v4510 = vpop.permute.xlu0 %4509
        %4511 = vrot.lane.b32.xlu0 %v4490, 64
        %v4512 = vpop.permute.xlu0 %4511
        %4513 = vrot.lane.b32.xlu0 %v4491, 64
        %v4514 = vpop.permute.xlu0 %4513
        %4515 = vrot.lane.b32.xlu0 %v4492, 64
        %v4516 = vpop.permute.xlu0 %4515
        %v4525 = vadd.f32 %v3403, %v4502
        %v4526 = vadd.f32 %v3405, %v4504
        %v4527 = vadd.f32 %v3408, %v4506
        %v4528 = vadd.f32 %v3410, %v4508
        %v4529 = vadd.f32 %v3413, %v4510
        %v4530 = vadd.f32 %v3415, %v4512
        %v4531 = vadd.f32 %v3418, %v4514
        %v4532 = vadd.f32 %v3420, %v4516
        %v4533 = vadd.f32 %v4525, %v3568
        %v4534 = vadd.f32 %v4526, %v3568
        %v4535 = vadd.f32 %v4527, %v3568
        %v4536 = vadd.f32 %v4528, %v3568
        %v4537 = vadd.f32 %v4529, %v3568
        %v4538 = vadd.f32 %v4530, %v3568
        %v4539 = vadd.f32 %v4531, %v3568
        %v4540 = vadd.f32 %v4532, %v3568
        %v4541 = vmax.f32 %v4533, 0.0
        %v4542 = vmax.f32 %v4534, 0.0
        %v4543 = vmax.f32 %v4535, 0.0
        %v4544 = vmax.f32 %v4536, 0.0
        %v4545 = vmax.f32 %v4537, 0.0
        %v4546 = vmax.f32 %v4538, 0.0
        %v4547 = vmax.f32 %v4539, 0.0
        %v4548 = vmax.f32 %v4540, 0.0
        %v4549 = vadd.f32 %v4477, %v4541
        %v4550 = vadd.f32 %v4478, %v4542
        %v4551 = vadd.f32 %v4479, %v4543
        %v4552 = vadd.f32 %v4480, %v4544
        %v4553 = vadd.f32 %v4481, %v4545
        %v4554 = vadd.f32 %v4482, %v4546
        %v4555 = vadd.f32 %v4483, %v4547
        %v4556 = vadd.f32 %v4484, %v4548
        %v4557 = vmax.f32 %v4389, %v4405
        %v4558 = vmax.f32 %v4390, %v4406
        %v4559 = vmax.f32 %v4391, %v4407
        %v4560 = vmax.f32 %v4392, %v4408
        %v4561 = vmax.f32 %v4393, %v4409
        %v4562 = vmax.f32 %v4394, %v4410
        %v4563 = vmax.f32 %v4395, %v4411
        %v4564 = vmax.f32 %v4396, %v4412
        %4573 = vrot.lane.b32.xlu0 %v4557, 64
        %v4574 = vpop.permute.xlu0 %4573
        %4575 = vrot.lane.b32.xlu0 %v4558, 64
        %v4576 = vpop.permute.xlu0 %4575
        %4577 = vrot.lane.b32.xlu0 %v4559, 64
        %v4578 = vpop.permute.xlu0 %4577
        %4579 = vrot.lane.b32.xlu0 %v4560, 64
        %v4580 = vpop.permute.xlu0 %4579
        %4581 = vrot.lane.b32.xlu0 %v4561, 64
        %v4582 = vpop.permute.xlu0 %4581
        %4583 = vrot.lane.b32.xlu0 %v4562, 64
        %v4584 = vpop.permute.xlu0 %4583
        %4585 = vrot.lane.b32.xlu0 %v4563, 64
        %v4586 = vpop.permute.xlu0 %4585
        %4587 = vrot.lane.b32.xlu0 %v4564, 64
        %v4588 = vpop.permute.xlu0 %4587
        %v4597 = vadd.f32 %v3423, %v4574
        %v4598 = vadd.f32 %v3425, %v4576
        %v4599 = vadd.f32 %v3428, %v4578
        %v4600 = vadd.f32 %v3430, %v4580
        %v4601 = vadd.f32 %v3433, %v4582
        %v4602 = vadd.f32 %v3435, %v4584
        %v4603 = vadd.f32 %v3438, %v4586
        %v4604 = vadd.f32 %v3440, %v4588
        %v4605 = vadd.f32 %v4597, %v3568
        %v4606 = vadd.f32 %v4598, %v3568
        %v4607 = vadd.f32 %v4599, %v3568
        %v4608 = vadd.f32 %v4600, %v3568
        %v4609 = vadd.f32 %v4601, %v3568
        %v4610 = vadd.f32 %v4602, %v3568
        %v4611 = vadd.f32 %v4603, %v3568
        %v4612 = vadd.f32 %v4604, %v3568
        %v4613 = vmax.f32 %v4605, 0.0
        %v4614 = vmax.f32 %v4606, 0.0
        %v4615 = vmax.f32 %v4607, 0.0
        %v4616 = vmax.f32 %v4608, 0.0
        %v4617 = vmax.f32 %v4609, 0.0
        %v4618 = vmax.f32 %v4610, 0.0
        %v4619 = vmax.f32 %v4611, 0.0
        %v4620 = vmax.f32 %v4612, 0.0
        %v4621 = vadd.f32 %v4549, %v4613
        %v4622 = vadd.f32 %v4550, %v4614
        %v4623 = vadd.f32 %v4551, %v4615
        %v4624 = vadd.f32 %v4552, %v4616
        %v4625 = vadd.f32 %v4553, %v4617
        %v4626 = vadd.f32 %v4554, %v4618
        %v4627 = vadd.f32 %v4555, %v4619
        %v4628 = vadd.f32 %v4556, %v4620
        %4637 = vrot.lane.b32.xlu0 %v4397, 64
        %v4638 = vpop.permute.xlu0 %4637
        %4639 = vrot.lane.b32.xlu0 %v4398, 64
        %v4640 = vpop.permute.xlu0 %4639
        %4641 = vrot.lane.b32.xlu0 %v4399, 64
        %v4642 = vpop.permute.xlu0 %4641
        %4643 = vrot.lane.b32.xlu0 %v4400, 64
        %v4644 = vpop.permute.xlu0 %4643
        %4645 = vrot.lane.b32.xlu0 %v4401, 64
        %v4646 = vpop.permute.xlu0 %4645
        %4647 = vrot.lane.b32.xlu0 %v4402, 64
        %v4648 = vpop.permute.xlu0 %4647
        %4649 = vrot.lane.b32.xlu0 %v4403, 64
        %v4650 = vpop.permute.xlu0 %4649
        %4651 = vrot.lane.b32.xlu0 %v4404, 64
        %v4652 = vpop.permute.xlu0 %4651
        %v4661 = vadd.f32 %v3443, %v4638
        %v4662 = vadd.f32 %v3445, %v4640
        %v4663 = vadd.f32 %v3448, %v4642
        %v4664 = vadd.f32 %v3450, %v4644
        %v4665 = vadd.f32 %v3453, %v4646
        %v4666 = vadd.f32 %v3455, %v4648
        %v4667 = vadd.f32 %v3458, %v4650
        %v4668 = vadd.f32 %v3460, %v4652
        %v4669 = vadd.f32 %v4661, %v3568
        %v4670 = vadd.f32 %v4662, %v3568
        %v4671 = vadd.f32 %v4663, %v3568
        %v4672 = vadd.f32 %v4664, %v3568
        %v4673 = vadd.f32 %v4665, %v3568
        %v4674 = vadd.f32 %v4666, %v3568
        %v4675 = vadd.f32 %v4667, %v3568
        %v4676 = vadd.f32 %v4668, %v3568
        %v4677 = vmax.f32 %v4669, 0.0
        %v4678 = vmax.f32 %v4670, 0.0
        %v4679 = vmax.f32 %v4671, 0.0
        %v4680 = vmax.f32 %v4672, 0.0
        %v4681 = vmax.f32 %v4673, 0.0
        %v4682 = vmax.f32 %v4674, 0.0
        %v4683 = vmax.f32 %v4675, 0.0
        %v4684 = vmax.f32 %v4676, 0.0
        %v4685 = vadd.f32 %v4621, %v4677
        %v4686 = vadd.f32 %v4622, %v4678
        %v4687 = vadd.f32 %v4623, %v4679
        %v4688 = vadd.f32 %v4624, %v4680
        %v4689 = vadd.f32 %v4625, %v4681
        %v4690 = vadd.f32 %v4626, %v4682
        %v4691 = vadd.f32 %v4627, %v4683
        %v4692 = vadd.f32 %v4628, %v4684
        %v4693 = vmax.f32 %v3383, %v3403
        %v4694 = vmax.f32 %v3385, %v3405
        %v4695 = vmax.f32 %v3388, %v3408
        %v4696 = vmax.f32 %v3390, %v3410
        %v4697 = vmax.f32 %v3393, %v3413
        %v4698 = vmax.f32 %v3395, %v3415
        %v4699 = vmax.f32 %v3398, %v3418
        %v4700 = vmax.f32 %v3400, %v3420
        %v4701 = vmax.f32 %v4693, %v3423
        %v4702 = vmax.f32 %v4694, %v3425
        %v4703 = vmax.f32 %v4695, %v3428
        %v4704 = vmax.f32 %v4696, %v3430
        %v4705 = vmax.f32 %v4697, %v3433
        %v4706 = vmax.f32 %v4698, %v3435
        %v4707 = vmax.f32 %v4699, %v3438
        %v4708 = vmax.f32 %v4700, %v3440
        %v4709 = vmax.f32 %v4701, %v3443
        %v4710 = vmax.f32 %v4702, %v3445
        %v4711 = vmax.f32 %v4703, %v3448
        %v4712 = vmax.f32 %v4704, %v3450
        %v4713 = vmax.f32 %v4705, %v3453
        %v4714 = vmax.f32 %v4706, %v3455
        %v4715 = vmax.f32 %v4707, %v3458
        %v4716 = vmax.f32 %v4708, %v3460
        %v4717 = vadd.f32 %v4709, %v3899
        %v4718 = vadd.f32 %v4710, %v3899
        %v4719 = vadd.f32 %v4711, %v3899
        %v4720 = vadd.f32 %v4712, %v3899
        %v4721 = vadd.f32 %v4713, %v3899
        %v4722 = vadd.f32 %v4714, %v3899
        %v4723 = vadd.f32 %v4715, %v3899
        %v4724 = vadd.f32 %v4716, %v3899
        %v4725 = vmax.f32 %v4717, 0.0
        %v4726 = vmax.f32 %v4718, 0.0
        %v4727 = vmax.f32 %v4719, 0.0
        %v4728 = vmax.f32 %v4720, 0.0
        %v4729 = vmax.f32 %v4721, 0.0
        %v4730 = vmax.f32 %v4722, 0.0
        %v4731 = vmax.f32 %v4723, 0.0
        %v4732 = vmax.f32 %v4724, 0.0
        %v4733 = vmul.f32 %v4725, 4.0
        %v4734 = vmul.f32 %v4726, 4.0
        %v4735 = vmul.f32 %v4727, 4.0
        %v4736 = vmul.f32 %v4728, 4.0
        %v4737 = vmul.f32 %v4729, 4.0
        %v4738 = vmul.f32 %v4730, 4.0
        %v4739 = vmul.f32 %v4731, 4.0
        %v4740 = vmul.f32 %v4732, 4.0
        %4749 = vrot.lane.b32.xlu0 %v4733, 64
        %v4750 = vpop.permute.xlu0 %4749
        %4751 = vrot.lane.b32.xlu0 %v4734, 64
        %v4752 = vpop.permute.xlu0 %4751
        %4753 = vrot.lane.b32.xlu0 %v4735, 64
        %v4754 = vpop.permute.xlu0 %4753
        %4755 = vrot.lane.b32.xlu0 %v4736, 64
        %v4756 = vpop.permute.xlu0 %4755
        %4757 = vrot.lane.b32.xlu0 %v4737, 64
        %v4758 = vpop.permute.xlu0 %4757
        %4759 = vrot.lane.b32.xlu0 %v4738, 64
        %v4760 = vpop.permute.xlu0 %4759
        %4761 = vrot.lane.b32.xlu0 %v4739, 64
        %v4762 = vpop.permute.xlu0 %4761
        %4763 = vrot.lane.b32.xlu0 %v4740, 64
        %v4764 = vpop.permute.xlu0 %4763
        %v4773 = vadd.f32 %v4685, %v4750
        %v4774 = vadd.f32 %v4686, %v4752
        %v4775 = vadd.f32 %v4687, %v4754
        %v4776 = vadd.f32 %v4688, %v4756
        %v4777 = vadd.f32 %v4689, %v4758
        %v4778 = vadd.f32 %v4690, %v4760
        %v4779 = vadd.f32 %v4691, %v4762
        %v4780 = vadd.f32 %v4692, %v4764
        %v4781 = vmul.f32 %v4773, 0.05882353
        %v4782 = vmul.f32 %v4774, 0.05882353
        %v4783 = vmul.f32 %v4775, 0.05882353
        %v4784 = vmul.f32 %v4776, 0.05882353
        %v4785 = vmul.f32 %v4777, 0.05882353
        %v4786 = vmul.f32 %v4778, 0.05882353
        %v4787 = vmul.f32 %v4779, 0.05882353
        %v4788 = vmul.f32 %v4780, 0.05882353
        %4797 = vrot.lane.b32.xlu0 %v3965, 64
        %v4798 = vpop.permute.xlu0 %4797
        %4799 = vrot.lane.b32.xlu0 %v3966, 64
        %v4800 = vpop.permute.xlu0 %4799
        %4801 = vrot.lane.b32.xlu0 %v3967, 64
        %v4802 = vpop.permute.xlu0 %4801
        %4803 = vrot.lane.b32.xlu0 %v3968, 64
        %v4804 = vpop.permute.xlu0 %4803
        %4805 = vrot.lane.b32.xlu0 %v3969, 64
        %v4806 = vpop.permute.xlu0 %4805
        %4807 = vrot.lane.b32.xlu0 %v3970, 64
        %v4808 = vpop.permute.xlu0 %4807
        %4809 = vrot.lane.b32.xlu0 %v3971, 64
        %v4810 = vpop.permute.xlu0 %4809
        %4811 = vrot.lane.b32.xlu0 %v3972, 64
        %v4812 = vpop.permute.xlu0 %4811
        %4829 = vrot.lane.b32.xlu0 %v2217, 64
        %v4830 = vpop.permute.xlu0 %4829
        %4831 = vrot.lane.b32.xlu0 %v2218, 64
        %v4832 = vpop.permute.xlu0 %4831
        %4833 = vrot.lane.b32.xlu0 %v2219, 64
        %v4834 = vpop.permute.xlu0 %4833
        %4835 = vrot.lane.b32.xlu0 %v2220, 64
        %v4836 = vpop.permute.xlu0 %4835
        %4837 = vrot.lane.b32.xlu0 %v2221, 64
        %v4838 = vpop.permute.xlu0 %4837
        %4839 = vrot.lane.b32.xlu0 %v2222, 64
        %v4840 = vpop.permute.xlu0 %4839
        %4841 = vrot.lane.b32.xlu0 %v2223, 64
        %v4842 = vpop.permute.xlu0 %4841
        %4843 = vrot.lane.b32.xlu0 %v2224, 64
        %v4844 = vpop.permute.xlu0 %4843
        %4861 = vrot.lane.b32.xlu0 %v4373, 64
        %v4862 = vpop.permute.xlu0 %4861
        %4863 = vrot.lane.b32.xlu0 %v4374, 64
        %v4864 = vpop.permute.xlu0 %4863
        %4865 = vrot.lane.b32.xlu0 %v4375, 64
        %v4866 = vpop.permute.xlu0 %4865
        %4867 = vrot.lane.b32.xlu0 %v4376, 64
        %v4868 = vpop.permute.xlu0 %4867
        %4869 = vrot.lane.b32.xlu0 %v4377, 64
        %v4870 = vpop.permute.xlu0 %4869
        %4871 = vrot.lane.b32.xlu0 %v4378, 64
        %v4872 = vpop.permute.xlu0 %4871
        %4873 = vrot.lane.b32.xlu0 %v4379, 64
        %v4874 = vpop.permute.xlu0 %4873
        %4875 = vrot.lane.b32.xlu0 %v4380, 64
        %v4876 = vpop.permute.xlu0 %4875
        %4893 = vrot.lane.b32.xlu0 %v2633, 64
        %v4894 = vpop.permute.xlu0 %4893
        %4895 = vrot.lane.b32.xlu0 %v2634, 64
        %v4896 = vpop.permute.xlu0 %4895
        %4897 = vrot.lane.b32.xlu0 %v2635, 64
        %v4898 = vpop.permute.xlu0 %4897
        %4899 = vrot.lane.b32.xlu0 %v2636, 64
        %v4900 = vpop.permute.xlu0 %4899
        %4901 = vrot.lane.b32.xlu0 %v2637, 64
        %v4902 = vpop.permute.xlu0 %4901
        %4903 = vrot.lane.b32.xlu0 %v2638, 64
        %v4904 = vpop.permute.xlu0 %4903
        %4905 = vrot.lane.b32.xlu0 %v2639, 64
        %v4906 = vpop.permute.xlu0 %4905
        %4907 = vrot.lane.b32.xlu0 %v2640, 64
        %v4908 = vpop.permute.xlu0 %4907
        %4925 = vrot.lane.b32.xlu0 %v4781, 64
        %v4926 = vpop.permute.xlu0 %4925
        %4927 = vrot.lane.b32.xlu0 %v4782, 64
        %v4928 = vpop.permute.xlu0 %4927
        %4929 = vrot.lane.b32.xlu0 %v4783, 64
        %v4930 = vpop.permute.xlu0 %4929
        %4931 = vrot.lane.b32.xlu0 %v4784, 64
        %v4932 = vpop.permute.xlu0 %4931
        %4933 = vrot.lane.b32.xlu0 %v4785, 64
        %v4934 = vpop.permute.xlu0 %4933
        %4935 = vrot.lane.b32.xlu0 %v4786, 64
        %v4936 = vpop.permute.xlu0 %4935
        %4937 = vrot.lane.b32.xlu0 %v4787, 64
        %v4938 = vpop.permute.xlu0 %4937
        %4939 = vrot.lane.b32.xlu0 %v4788, 64
        %v4940 = vpop.permute.xlu0 %4939
        %v4949 = vsel %vm877, %v1801, %v4798
        %v4950 = vsel %vm877, %v1802, %v4800
        %v4951 = vsel %vm877, %v1803, %v4802
        %v4952 = vsel %vm877, %v1804, %v4804
        %v4953 = vsel %vm877, %v1805, %v4806
        %v4954 = vsel %vm877, %v1806, %v4808
        %v4955 = vsel %vm877, %v1807, %v4810
        %v4956 = vsel %vm877, %v1808, %v4812
        %v4957 = vsel %vm877, %v4830, %v4862
        %v4958 = vsel %vm877, %v4832, %v4864
        %v4959 = vsel %vm877, %v4834, %v4866
        %v4960 = vsel %vm877, %v4836, %v4868
        %v4961 = vsel %vm877, %v4838, %v4870
        %v4962 = vsel %vm877, %v4840, %v4872
        %v4963 = vsel %vm877, %v4842, %v4874
        %v4964 = vsel %vm877, %v4844, %v4876
        %v4965 = vsel %vm877, %v4894, %v4926
        %v4966 = vsel %vm877, %v4896, %v4928
        %v4967 = vsel %vm877, %v4898, %v4930
        %v4968 = vsel %vm877, %v4900, %v4932
        %v4969 = vsel %vm877, %v4902, %v4934
        %v4970 = vsel %vm877, %v4904, %v4936
        %v4971 = vsel %vm877, %v4906, %v4938
        %v4972 = vsel %vm877, %v4908, %v4940
        %v4973 = vpack.c.bf16 %v4950, %v4949
        %v4974 = vpack.c.bf16 %v4958, %v4957
        %v4975 = vpack.c.bf16 %v4966, %v4965
        %v4976 = vpack.c.bf16 %v4952, %v4951
        %v4977 = vpack.c.bf16 %v4960, %v4959
        %v4978 = vpack.c.bf16 %v4968, %v4967
        %v4979 = vpack.c.bf16 %v4954, %v4953
        %v4980 = vpack.c.bf16 %v4962, %v4961
        %v4981 = vpack.c.bf16 %v4970, %v4969
        %v4982 = vpack.c.bf16 %v4956, %v4955
        %v4983 = vpack.c.bf16 %v4964, %v4963
        %v4984 = vpack.c.bf16 %v4972, %v4971
        %v4985 = vld [vmem:[%s5] sm:$0xf]
        %v4986 = vld [vmem:[%s5 + $0x4] sm:$0xf]
        %v4987 = vld [vmem:[%s5 + $0x8] sm:$0xf]
        %v4988 = vld [vmem:[%s5 + $0xc] sm:$0xf]
        %v4989 = vld [vmem:[%s5 + $0x10] sm:$0xf]
        %v4990 = vld [vmem:[%s5 + $0x14] sm:$0xf]
        %v4991 = vld [vmem:[%s5 + $0x18] sm:$0xf]
        %v4992 = vld [vmem:[%s5 + $0x1c] sm:$0xf]
        %v4993 = vld [vmem:[%s5 + $0x20] sm:$0xf]
        %v4994 = vld [vmem:[%s5 + $0x24] sm:$0xf]
        %v4995 = vld [vmem:[%s5 + $0x28] sm:$0xf]
        %v4996 = vld [vmem:[%s5 + $0x2c] sm:$0xf]
        %v4997 = vld [vmem:[%s5 + $0x30] sm:$0xf]
        %v4998 = vld [vmem:[%s5 + $0x34] sm:$0xf]
        %v4999 = vld [vmem:[%s5 + $0x38] sm:$0xf]
        %v5000 = vld [vmem:[%s5 + $0x3c] sm:$0xf]
        %v5001 = vld [vmem:[%s5 + $0x40] sm:$0xf]
        %v5002 = vld [vmem:[%s5 + $0x44] sm:$0xf]
        %v5003 = vld [vmem:[%s5 + $0x48] sm:$0xf]
        %v5004 = vld [vmem:[%s5 + $0x4c] sm:$0xf]
        %v5005 = vld [vmem:[%s5 + $0x50] sm:$0xf]
        %v5006 = vld [vmem:[%s5 + $0x54] sm:$0xf]
        %v5007 = vld [vmem:[%s5 + $0x58] sm:$0xf]
        %v5008 = vld [vmem:[%s5 + $0x5c] sm:$0xf]
        %v5009 = vld [vmem:[%s5 + $0x60] sm:$0xf]
        %v5010 = vld [vmem:[%s5 + $0x64] sm:$0xf]
        %v5011 = vld [vmem:[%s5 + $0x68] sm:$0xf]
        %v5012 = vld [vmem:[%s5 + $0x6c] sm:$0xf]
        %v5013 = vld [vmem:[%s5 + $0x70] sm:$0xf]
        %v5014 = vld [vmem:[%s5 + $0x74] sm:$0xf]
        %v5015 = vld [vmem:[%s5 + $0x78] sm:$0xf]
        %v5016 = vld [vmem:[%s5 + $0x7c] sm:$0xf]
        %v5017 = vld [vmem:[%s5 + $0x80] sm:$0xf]
        %v5018 = vld [vmem:[%s5 + $0x84] sm:$0xf]
        %v5019 = vld [vmem:[%s5 + $0x88] sm:$0xf]
        %v5020 = vld [vmem:[%s5 + $0x8c] sm:$0xf]
        %v5021 = vld [vmem:[%s5 + $0x90] sm:$0xf]
        %v5022 = vld [vmem:[%s5 + $0x94] sm:$0xf]
        %v5023 = vld [vmem:[%s5 + $0x98] sm:$0xf]
        %v5024 = vld [vmem:[%s5 + $0x9c] sm:$0xf]
        %v5025 = vld [vmem:[%s5 + $0xa0] sm:$0xf]
        %v5026 = vld [vmem:[%s5 + $0xa4] sm:$0xf]
        %v5027 = vld [vmem:[%s5 + $0xa8] sm:$0xf]
        %v5028 = vld [vmem:[%s5 + $0xac] sm:$0xf]
        %v5029 = vld [vmem:[%s5 + $0xb0] sm:$0xf]
        %v5030 = vld [vmem:[%s5 + $0xb4] sm:$0xf]
        %v5031 = vld [vmem:[%s5 + $0xb8] sm:$0xf]
        %v5032 = vld [vmem:[%s5 + $0xbc] sm:$0xf]
        %v5033 = vld [vmem:[%s6] sm:$0x1]
        %v5035 = vperm.slane %v5033, 0
        %v5085 = vunpack.c.l.b16 %v4985
        %v5086 = vunpack.c.l.b16 %v4986
        %v5087 = vunpack.c.l.b16 %v4987
        %v5088 = vunpack.c.l.b16 %v4988
        %v5089 = vunpack.c.l.b16 %v4989
        %v5090 = vunpack.c.l.b16 %v4990
        %v5091 = vunpack.c.l.b16 %v4991
        %v5092 = vunpack.c.l.b16 %v4992
        %v5093 = vunpack.c.l.b16 %v4993
        %v5094 = vunpack.c.l.b16 %v4994
        %v5095 = vunpack.c.l.b16 %v4995
        %v5096 = vunpack.c.l.b16 %v4996
        %v5097 = vunpack.c.l.b16 %v4997
        %v5098 = vunpack.c.l.b16 %v4998
        %v5099 = vunpack.c.l.b16 %v4999
        %v5100 = vunpack.c.l.b16 %v5000
        %v5101 = vunpack.c.l.b16 %v5001
        %v5102 = vunpack.c.l.b16 %v5002
        %v5103 = vunpack.c.l.b16 %v5003
        %v5104 = vunpack.c.l.b16 %v5004
        %v5105 = vunpack.c.l.b16 %v5005
        %v5106 = vunpack.c.l.b16 %v5006
        %v5107 = vunpack.c.l.b16 %v5007
        %v5108 = vunpack.c.l.b16 %v5008
        %v5109 = vunpack.c.l.b16 %v5009
        %v5110 = vunpack.c.l.b16 %v5010
        %v5111 = vunpack.c.l.b16 %v5011
        %v5112 = vunpack.c.l.b16 %v5012
        %v5113 = vunpack.c.l.b16 %v5013
        %v5114 = vunpack.c.l.b16 %v5014
        %v5115 = vunpack.c.l.b16 %v5015
        %v5116 = vunpack.c.l.b16 %v5016
        %v5117 = vunpack.c.l.b16 %v5017
        %v5118 = vunpack.c.l.b16 %v5018
        %v5119 = vunpack.c.l.b16 %v5019
        %v5120 = vunpack.c.l.b16 %v5020
        %v5121 = vunpack.c.l.b16 %v5021
        %v5122 = vunpack.c.l.b16 %v5022
        %v5123 = vunpack.c.l.b16 %v5023
        %v5124 = vunpack.c.l.b16 %v5024
        %v5125 = vunpack.c.l.b16 %v5025
        %v5126 = vunpack.c.l.b16 %v5026
        %v5127 = vunpack.c.l.b16 %v5027
        %v5128 = vunpack.c.l.b16 %v5028
        %v5129 = vunpack.c.l.b16 %v5029
        %v5130 = vunpack.c.l.b16 %v5030
        %v5131 = vunpack.c.l.b16 %v5031
        %v5132 = vunpack.c.l.b16 %v5032
        %v5133 = vpack.c.b16 %v5086, %v5085
        %v5134 = vpack.c.b16 %v5088, %v5087
        %v5135 = vpack.c.b16 %v5090, %v5089
        %v5136 = vpack.c.b16 %v5092, %v5091
        %v5137 = vpack.c.b16 %v5094, %v5093
        %v5138 = vpack.c.b16 %v5096, %v5095
        %v5139 = vpack.c.b16 %v5098, %v5097
        %v5140 = vpack.c.b16 %v5100, %v5099
        %v5141 = vpack.c.b16 %v5102, %v5101
        %v5142 = vpack.c.b16 %v5104, %v5103
        %v5143 = vpack.c.b16 %v5106, %v5105
        %v5144 = vpack.c.b16 %v5108, %v5107
        %v5145 = vpack.c.b16 %v5110, %v5109
        %v5146 = vpack.c.b16 %v5112, %v5111
        %v5147 = vpack.c.b16 %v5114, %v5113
        %v5148 = vpack.c.b16 %v5116, %v5115
        %v5149 = vpack.c.b16 %v5118, %v5117
        %v5150 = vpack.c.b16 %v5120, %v5119
        %v5151 = vpack.c.b16 %v5122, %v5121
        %v5152 = vpack.c.b16 %v5124, %v5123
        %v5153 = vpack.c.b16 %v5126, %v5125
        %v5154 = vpack.c.b16 %v5128, %v5127
        %v5155 = vpack.c.b16 %v5130, %v5129
        %v5156 = vpack.c.b16 %v5132, %v5131
        %5181 = vmatpush.bf16.msra.mxu0 %v5140
        %5182 = vmatpush.bf16.msra.mxu0 %v5139
        %5183 = vmatpush.bf16.msra.mxu0 %v5138
        %5184 = vmatpush.bf16.msra.mxu0 %v5137
        %5185 = vmatpush.bf16.msra.mxu0 %v5136
        %5186 = vmatpush.bf16.msra.mxu0 %v5135
        %5187 = vmatpush.bf16.msra.mxu0 %v5134
        %5188 = vmatpush.bf16.msra.mxu0 %v5133
        %5189 = vmatmul.bf16.gmra.mxu0 %v4973
        %v5190 = vpop.f32.mrf.mxu0
        %v5191 = vadd.f32 %v5035, %v5190
        %v5192 = vpop.f32.mrf.mxu0
        %v5193 = vadd.f32 %v5035, %v5192
        %5194 = vmatmul.bf16.gmra.mxu0 %v4976
        %v5195 = vpop.f32.mrf.mxu0
        %v5196 = vadd.f32 %v5035, %v5195
        %v5197 = vpop.f32.mrf.mxu0
        %v5198 = vadd.f32 %v5035, %v5197
        %5199 = vmatmul.bf16.gmra.mxu0 %v4979
        %v5200 = vpop.f32.mrf.mxu0
        %v5201 = vadd.f32 %v5035, %v5200
        %v5202 = vpop.f32.mrf.mxu0
        %v5203 = vadd.f32 %v5035, %v5202
        %5204 = vmatmul.bf16.gmra.mxu0 %v4982
        %v5205 = vpop.f32.mrf.mxu0
        %v5206 = vadd.f32 %v5035, %v5205
        %v5207 = vpop.f32.mrf.mxu0
        %v5208 = vadd.f32 %v5035, %v5207
        %5209 = vdwg.mxu0
        %5210 = vmatpush.bf16.msra.mxu0 %v5148
        %5211 = vmatpush.bf16.msra.mxu0 %v5147
        %5212 = vmatpush.bf16.msra.mxu0 %v5146
        %5213 = vmatpush.bf16.msra.mxu0 %v5145
        %5214 = vmatpush.bf16.msra.mxu0 %v5144
        %5215 = vmatpush.bf16.msra.mxu0 %v5143
        %5216 = vmatpush.bf16.msra.mxu0 %v5142
        %5217 = vmatpush.bf16.msra.mxu0 %v5141
        %5218 = vmatmul.bf16.gmra.mxu0 %v4974
        %v5219 = vpop.f32.mrf.mxu0
        %v5220 = vadd.f32 %v5191, %v5219
        %v5221 = vpop.f32.mrf.mxu0
        %v5222 = vadd.f32 %v5193, %v5221
        %5223 = vmatmul.bf16.gmra.mxu0 %v4977
        %v5224 = vpop.f32.mrf.mxu0
        %v5225 = vadd.f32 %v5196, %v5224
        %v5226 = vpop.f32.mrf.mxu0
        %v5227 = vadd.f32 %v5198, %v5226
        %5228 = vmatmul.bf16.gmra.mxu0 %v4980
        %v5229 = vpop.f32.mrf.mxu0
        %v5230 = vadd.f32 %v5201, %v5229
        %v5231 = vpop.f32.mrf.mxu0
        %v5232 = vadd.f32 %v5203, %v5231
        %5233 = vmatmul.bf16.gmra.mxu0 %v4983
        %v5234 = vpop.f32.mrf.mxu0
        %v5235 = vadd.f32 %v5206, %v5234
        %v5236 = vpop.f32.mrf.mxu0
        %v5237 = vadd.f32 %v5208, %v5236
        %5238 = vdwg.mxu0
        %5239 = vmatpush.bf16.msra.mxu0 %v5156
        %5240 = vmatpush.bf16.msra.mxu0 %v5155
        %5241 = vmatpush.bf16.msra.mxu0 %v5154
        %5242 = vmatpush.bf16.msra.mxu0 %v5153
        %5243 = vmatpush.bf16.msra.mxu0 %v5152
        %5244 = vmatpush.bf16.msra.mxu0 %v5151
        %5245 = vmatpush.bf16.msra.mxu0 %v5150
        %5246 = vmatpush.bf16.msra.mxu0 %v5149
        %5247 = vmatmul.bf16.gmra.mxu0 %v4975
        %v5248 = vpop.f32.mrf.mxu0
        %v5249 = vadd.f32 %v5220, %v5248
        %v5250 = vpop.f32.mrf.mxu0
        %v5251 = vadd.f32 %v5222, %v5250
        %5252 = vmatmul.bf16.gmra.mxu0 %v4978
        %v5253 = vpop.f32.mrf.mxu0
        %v5254 = vadd.f32 %v5225, %v5253
        %v5255 = vpop.f32.mrf.mxu0
        %v5256 = vadd.f32 %v5227, %v5255
        %5257 = vmatmul.bf16.gmra.mxu0 %v4981
        %v5258 = vpop.f32.mrf.mxu0
        %v5259 = vadd.f32 %v5230, %v5258
        %v5260 = vpop.f32.mrf.mxu0
        %v5261 = vadd.f32 %v5232, %v5260
        %5262 = vmatmul.bf16.gmra.mxu0 %v4984
        %v5263 = vpop.f32.mrf.mxu0
        %v5264 = vadd.f32 %v5235, %v5263
        %v5265 = vpop.f32.mrf.mxu0
        %v5266 = vadd.f32 %v5237, %v5265
        %5267 = vdwg.mxu0
        %5269 = vset.pattern.permute.xlu0 51
        %5270 = vperm.xlu0 %5269, %v329
        %v5271 = vpop.permute.xlu0 %5270
        %5274 = vset.pattern.permute.xlu0 51
        %5275 = vperm.xlu0 %5274, %v330
        %v5276 = vpop.permute.xlu0 %5275
        %5279 = vset.pattern.permute.xlu0 51
        %5280 = vperm.xlu0 %5279, %v331
        %v5281 = vpop.permute.xlu0 %5280
        %5284 = vset.pattern.permute.xlu0 51
        %5285 = vperm.xlu0 %5284, %v332
        %v5286 = vpop.permute.xlu0 %5285
        %5289 = vset.pattern.permute.xlu0 51
        %5290 = vperm.xlu0 %5289, %v333
        %v5291 = vpop.permute.xlu0 %5290
        %5294 = vset.pattern.permute.xlu0 51
        %5295 = vperm.xlu0 %5294, %v334
        %v5296 = vpop.permute.xlu0 %5295
        %5299 = vset.pattern.permute.xlu0 51
        %5300 = vperm.xlu0 %5299, %v335
        %v5301 = vpop.permute.xlu0 %5300
        %5304 = vset.pattern.permute.xlu0 51
        %5305 = vperm.xlu0 %5304, %v336
        %v5306 = vpop.permute.xlu0 %5305
        %v5308 = vmul.f32 %v5249, %v5271
        %v5309 = vmul.f32 %v5251, %v5276
        %v5310 = vmul.f32 %v5254, %v5281
        %v5311 = vmul.f32 %v5256, %v5286
        %v5312 = vmul.f32 %v5259, %v5291
        %v5313 = vmul.f32 %v5261, %v5296
        %v5314 = vmul.f32 %v5264, %v5301
        %v5315 = vmul.f32 %v5266, %v5306
        %5316 = vst [vmem:[%s320] sm:$0xff] %v5308
        %5317 = vst [vmem:[%s320 + $0x8] sm:$0xff] %v5309
        %5318 = vst [vmem:[%s320 + $0x10] sm:$0xff] %v5310
        %5319 = vst [vmem:[%s320 + $0x18] sm:$0xff] %v5311
        %5320 = vst [vmem:[%s320 + $0x20] sm:$0xff] %v5312
        %5321 = vst [vmem:[%s320 + $0x28] sm:$0xff] %v5313
        %5322 = vst [vmem:[%s320 + $0x30] sm:$0xff] %v5314
        %5323 = vst [vmem:[%s320 + $0x38] sm:$0xff] %v5315
        %s5324 = sand.u32 %s183, 1
        %s5325 = scalar_lea.sflag [#allocation5], %s5324
        %s5326 = sand.u32 %s183, 1
        %s5327 = smul.addr %s5326, 64
        %s5328 = scalar_lea.vmem [#allocation9], %s5327
        // Predicated region
        $region61: #{tpu_custom_call.1} parent=47 // pred_check
          %p5329 = pneg %p193
        $region62: #{tpu_custom_call.1} parent=47 // pred_check_branch
          %5331 = sbr.rel (%p5329) target = $region64
        $region63: #{tpu_custom_call.1} parent=47 // pred_region
          %s5332 = smul.u32 8, %s23
          %5334 = vsyncadd %s5325, 0
          %s5335 = smul.addr %s5332, 8
          %s5336 = scalar_lea.hbm %s7, %s5335
          %s5337 = sshll.u32 %s5328, 4
          %s5338 = int_to_ptr.vmem [resolvable:$true] %s5337
          %s5339 = sshll.u32 %s5336, 4
          %s5340 = int_to_ptr.hbm [resolvable:$true] %s5339
          %5345 = dma.vmem_to_hbm [thread:$0]  %s5338, 1024, %s5340, %s5325, 128, 128, 8
        $region64: #{tpu_custom_call.1} parent=47 // pred_fallthru
          _
      $region48: #{tpu_custom_call.1} parent=5 // pred_fallthru
        _
      %p5346 = scmp.le.s32.totalorder 2, %s18
      // Predicated region
      $region65: #{tpu_custom_call.1} parent=5 // pred_check
        %p5347 = pneg %p5346
      $region66: #{tpu_custom_call.1} parent=5 // pred_check_branch
        %5349 = sbr.rel (%p5347) target = $region68
      $region67: #{tpu_custom_call.1} parent=5 // pred_region
        %s5350 = ssub.s32 %s18, 2
        // Predicated region
        $region69: #{tpu_custom_call.1} parent=67 // pred_check
          %p5351 = pneg %p199
        $region70: #{tpu_custom_call.1} parent=67 // pred_check_branch
          %5353 = sbr.rel (%p5351) target = $region72
        $region71: #{tpu_custom_call.1} parent=67 // pred_region
          %s5354 = sand.u32 %s184, 1
          %s5355 = scalar_lea.sflag [#allocation5], %s5354
          %s5356 = sand.u32 %s184, 1
          %s5357 = smul.addr %s5356, 64
          %s5358 = scalar_lea.vmem [#allocation9], %s5357
          %5360 = dma.done %s5355, 1024
        $region72: #{tpu_custom_call.1} parent=67 // pred_fallthru
          _
      $region68: #{tpu_custom_call.1} parent=5 // pred_fallthru
        _
    $region6: #{tpu_custom_call.1} parent=1 // loop_footer
      %s22 = sadd.s32 1, %s18
    $region7: #{tpu_custom_call.1} parent=1 // loop_footer_branch
      %17 = sbr.rel target = $region3
    $region8: #{tpu_custom_call.1} parent=1 // loop_exit
      _
    %5361 = vsyncpa [#allocation4], 1
    %s5362 = scalar_lea.sflag [#allocation4], 1
    %5363 = vsyncpa %s5362, 1
    %5364 = vsyncpa [#allocation7], 1
    %5365 = vsyncpa [#allocation5], 1
    %s5366 = scalar_lea.sflag [#allocation5], 1
    %5367 = vsyncpa %s5366, 1

</llo_original>
